<compile_context>
chip_gen: v5e
topology: v5e:2x2
jax: 0.10.0
libtpu: 0.0.40
codegen_flags: <defaults>
</compile_context>

<pallas_src>
import math
import jax
import jax.numpy as jnp
from jax import lax
from jax.experimental import pallas as pl
from jax.experimental.pallas import tpu as pltpu


# ----------------------------------------------------------------------------- kernel

def _fused_bilstm(x_bf16, wih_bf16, whh_bf16, bias_f32, slab_ref):
    """Bidirectional LSTM over x:(S, Din) with both directions fused into one
    gate matmul per step.

    Weight layout (built host-side by `_fuse_bilstm_weights`):
      wih  : (Din, 8H) bf16, columns [i_f,i_b | f_f,f_b | g_f,g_b | o_f,o_b]
      whh  : (2H, 8H)  bf16, block-diagonal (rows ordered [h_f | h_b])
      bias : (1, 8H)   f32,  b_ih + b_hh folded, same column layout
    The fused cell is algebraically a single LSTM of width G = 2H, so the gate
    slices below are contiguous.  State stays f32; bf16 only at the MXU
    boundary.  Per-step outputs go straight into the VMEM scratch slab.
    """
    S = x_bf16.shape[0]
    H = whh_bf16.shape[0] // 2
    G = 2 * H                                              # fused hidden width

    # Input projection hoisted out of the recurrence (one matmul, both dirs).
    gx = jnp.dot(x_bf16, wih_bf16,
                 preferred_element_type=jnp.float32) + bias_f32        # (S, 8H) f32

    # fw gate columns use gx[t]; bw gate columns use gx[S-1-t].
    is_fw = (lax.broadcasted_iota(jnp.int32, (1, 4 * G), 1) % G) < H

    h = jnp.zeros((1, G), jnp.float32)
    c = jnp.zeros((1, G), jnp.float32)
    # S / E are small & static here -> fully unrolled.
    # TODO(synk): at production S switch to lax.fori_loop with a modest unroll.
    for t in range(S):
        tb = S - 1 - t
        gx_t = jnp.where(is_fw, gx[t:t + 1, :], gx[tb:tb + 1, :])       # (1, 8H)
        gates = gx_t + jnp.dot(h.astype(jnp.bfloat16), whh_bf16,
                               preferred_element_type=jnp.float32)      # (1, 8H)
        sg = jax.nn.sigmoid(gates)            # full-width EUP, slice afterwards
        tg = jnp.tanh(gates)
        c = sg[:, G:2 * G] * c + sg[:, 0:G] * tg[:, 2 * G:3 * G]
        h = sg[:, 3 * G:4 * G] * jnp.tanh(c)                            # (1, 2H)
        slab_ref[pl.ds(t, 1), 0:H] = h[:, 0:H]        # fw output @ position t
        slab_ref[pl.ds(tb, 1), H:G] = h[:, H:G]       # bw output @ position S-1-t
    return slab_ref[...]                                               # (S, 2H) f32


def selector_kernel(x_ref, ent_ref, mask_ref,
                    e_wih, e_whh, e_b,
                    n_wih, n_whh, n_b,
                    wq_t_ref, wk_ref, vseg_ref,
                    wd_q_ref, wd_c_ref, bd_ref, wo_ref, bo_ref,
                    out_ref,
                    enc_slab, ent_slab):
    # Grid is over the batch: every ref below is one batch element.
    # TODO(synk): verify in the bundle dump that the data-independent encoder and
    #             entity recurrences are interleaved by the scheduler; if not,
    #             fuse the two step loops at source.

    # ---- 1) src bi-LSTM encoder (fw+bw fused per step) ------------------------
    enc = _fused_bilstm(x_ref[0], e_wih[...], e_whh[...], e_b[...], enc_slab)   # (S, 2H)
    enc_bf = enc.astype(jnp.bfloat16)

    # ---- 2) masked mean of entity word embeddings (f32 elementwise) -----------
    ent = ent_ref[0]                                       # (E, W, De) f32
    msk = mask_ref[0]                                      # (E, W)     f32
    num = jnp.sum(msk[:, :, None] * ent, axis=1)           # (E, De)
    den = jnp.maximum(jnp.sum(msk, axis=1, keepdims=True), 1.0)   # clamp(1)
    avg = (num / den).astype(jnp.bfloat16)

    # ---- 3) entity fw/bw LSTMCell sweep == fused bi-LSTM -----------------------
    q = _fused_bilstm(avg, n_wih[...], n_whh[...], n_b[...], ent_slab)          # (E, 2Eh)
    q_bf = q.astype(jnp.bfloat16)

    # ---- 4) Bahdanau attention, lane-dense (E, S*A) energy ---------------------
    S = enc.shape[0]
    pq = jnp.dot(q_bf, wq_t_ref[...], preferred_element_type=jnp.float32)   # (E, S*A)
    pk = jnp.dot(enc_bf, wk_ref[...], preferred_element_type=jnp.float32)   # (S, A)
    pk_flat = jnp.concatenate([pk[s:s + 1, :] for s in range(S)], axis=1)   # (1, S*A)
    energy = jnp.tanh(pq + pk_flat)                                          # (E, S*A)
    # v-weighted segment sum over A as one MXU push: vseg = kron(I_S, v).
    scores = jnp.dot(energy.astype(jnp.bfloat16), vseg_ref[...],
                     preferred_element_type=jnp.float32)                     # (E, S)
    scores = scores - jnp.max(scores, axis=-1, keepdims=True)
    es = jnp.exp(scores)
    alphas = es * pl.reciprocal(jnp.sum(es, axis=-1, keepdims=True), approx=True)
    ctx = jnp.dot(alphas.astype(jnp.bfloat16), enc_bf,
                  preferred_element_type=jnp.float32)                        # (E, 2H)

    # ---- 5) dense(ReLU) + output projection (split weights, no concat) --------
    dense = jnp.maximum(
        jnp.dot(q_bf, wd_q_ref[...], preferred_element_type=jnp.float32)
        + jnp.dot(ctx.astype(jnp.bfloat16), wd_c_ref[...],
                  preferred_element_type=jnp.float32)
        + bd_ref[...], 0.0)                                                   # (E, Dd)
    # TODO(synk): if E or T grows, emit a lane-dense (B*E, T) output slab instead.
    out_ref[0] = (jnp.dot(dense.astype(jnp.bfloat16), wo_ref[...],
                          preferred_element_type=jnp.float32)
                  + bo_ref[...])                                              # (E, T)


# ----------------------------------------------------------------------------- wrapper

def _fuse_bilstm_weights(fwd, bwd):
    """Interleave fw/bw LSTM weights so both directions' gates come from ONE
    matmul per step: columns [i_f,i_b,f_f,f_b,g_f,g_b,o_f,o_b], Whh block-diag."""
    din, h4 = fwd['wih'].shape
    H = h4 // 4
    wih = jnp.stack([fwd['wih'].reshape(din, 4, H),
                     bwd['wih'].reshape(din, 4, H)], axis=2).reshape(din, 8 * H)
    whh = jnp.zeros((2 * H, 4, 2, H), jnp.float32)
    whh = whh.at[:H, :, 0, :].set(fwd['whh'].reshape(H, 4, H))
    whh = whh.at[H:, :, 1, :].set(bwd['whh'].reshape(H, 4, H))
    whh = whh.reshape(2 * H, 8 * H)
    b = jnp.stack([fwd['b'].reshape(4, H),
                   bwd['b'].reshape(4, H)], axis=1).reshape(1, 8 * H)
    return (wih.astype(jnp.bfloat16), whh.astype(jnp.bfloat16),
            b.astype(jnp.float32))


def _whole(a):
    """Whole-array weight block; same block index at every grid step (resident)."""
    zeros = (0,) * a.ndim
    return pl.BlockSpec(a.shape, lambda b, _z=zeros: _z)


def fused_selector(x, ent_emb, mask, p):
    B, S, Din = x.shape
    _, E, W, De = ent_emb.shape
    H = p['enc_f']['whh'].shape[0]
    Eh = p['ent_f']['whh'].shape[0]
    T = p['out_w'].shape[1]

    # ---- host-side static weight prep (fused/tiled layouts, bf16 MXU operands)
    e_wih, e_whh, e_b = _fuse_bilstm_weights(p['enc_f'], p['enc_b'])
    n_wih, n_whh, n_b = _fuse_bilstm_weights(p['ent_f'], p['ent_b'])
    wq_t = jnp.tile(p['attn_wq'], (1, S)).astype(jnp.bfloat16)          # (2Eh, S*A)
    wk = p['attn_wk'].astype(jnp.bfloat16)                              # (2H, A)
    vseg = jnp.kron(jnp.eye(S, dtype=jnp.float32),
                    p['attn_v'].reshape(-1, 1)).astype(jnp.bfloat16)    # (S*A, S)
    eh2 = 2 * Eh
    wd_q = p['dense_w'][:eh2].astype(jnp.bfloat16)   # feat = cat([q, ctx]) order
    wd_c = p['dense_w'][eh2:].astype(jnp.bfloat16)   # of the PyTorch model
    wo = p['out_w'].astype(jnp.bfloat16)

    args = (x.astype(jnp.bfloat16), ent_emb, mask,
            e_wih, e_whh, e_b, n_wih, n_whh, n_b,
            wq_t, wk, vseg, wd_q, wd_c, p['dense_b'], wo, p['out_b'])

    in_specs = [pl.BlockSpec((1, S, Din), lambda b: (b, 0, 0)),
                pl.BlockSpec((1, E, W, De), lambda b: (b, 0, 0, 0)),
                pl.BlockSpec((1, E, W), lambda b: (b, 0, 0))] + \
               [_whole(a) for a in args[3:]]

    # Grid over the batch: v7x's two TensorCores take different batch elements
    # ("parallel"); on v5e/v6e this is just the sequential outer loop.
    # TODO(synk): at production sizes re-derive the per-step VMEM budget against
    #             v7x's 64 MiB (gx / enc / energy residents) and tile S as well.
    return pl.pallas_call(
        selector_kernel,
        out_shape=jax.ShapeDtypeStruct((B, E, T), jnp.float32),
        grid=(B,),
        in_specs=in_specs,
        out_specs=pl.BlockSpec((1, E, T), lambda b: (b, 0, 0)),
        scratch_shapes=[pltpu.VMEM((S, 2 * H), jnp.float32),
                        pltpu.VMEM((E, 2 * Eh), jnp.float32)],
        compiler_params=pltpu.CompilerParams(
            dimension_semantics=("parallel",),
            vmem_limit_bytes=32 * 1024 * 1024),
    )(*args)


def selector_forward(params, src_input, src_input_lengths, answer_tag_input,
                     end_tag_input, entity_seq_input, entity_type_seq_input,
                     tgt_input, tgt_input_lengths, answer_input):
    # Embedding gathers + input concat stay in plain JAX (no clean small-scale
    # Pallas equivalent for the gathers); everything downstream is one kernel.
    src_emb = jnp.take(params['src_embedding'], src_input, axis=0)            # (B,S,De)
    ans_emb = jnp.take(params['answer_tag_embedding'], answer_tag_input, 0)   # (B,S,Dt)
    end_emb = jnp.take(params['end_tag_embedding'], end_tag_input, 0)         # (B,S,Dt)
    x = jnp.concatenate([src_emb, ans_emb, end_emb], axis=-1)                 # (B,S,Din)

    ent_emb = jnp.take(params['src_embedding'], entity_seq_input, axis=0)     # (B,E,W,De)
    mask = jnp.sign(entity_seq_input).astype(jnp.float32)                     # (B,E,W)

    return fused_selector(x, ent_emb, mask, params)                           # (B,E,T)


# ----------------------------------------------------------------------------- params

def init_params(key, cfg):
    ks = jax.random.split(key, 16)

    def u(k, shape, scale=0.1):
        return jax.random.uniform(k, shape, jnp.float32, -scale, scale)

    De, Dt = cfg['embedding_size'], cfg['tagging_embedding_size']
    H, Eh = cfg['encoder_hidden_size'], cfg['entity_encoder_hidden_size']
    A, Dd, T = cfg['attn_size'], cfg['entity_dense_size'], cfg['entity_tag_num']
    Din = De + 2 * Dt

    p = {}
    p['src_embedding'] = u(ks[0], (cfg['src_vocab_size'], De)).at[0].set(0.0)  # padding_idx=0
    p['answer_tag_embedding'] = u(ks[1], (cfg['answer_class_num'], Dt))
    p['end_tag_embedding'] = u(ks[2], (cfg['end_tag_num'], Dt))

    def lstm_dir(k, din, h):
        k1, k2, k3 = jax.random.split(k, 3)
        s = 1.0 / math.sqrt(h)
        return {'wih': u(k1, (din, 4 * h), s),
                'whh': u(k2, (h, 4 * h), s),
                'b': u(k3, (1, 4 * h), s)}          # b_ih + b_hh folded together

    p['enc_f'] = lstm_dir(ks[3], Din, H)
    p['enc_b'] = lstm_dir(ks[4], Din, H)
    p['ent_f'] = lstm_dir(ks[5], De, Eh)
    p['ent_b'] = lstm_dir(ks[6], De, Eh)

    p['attn_wq'] = u(ks[7], (2 * Eh, A), 1.0 / math.sqrt(2 * Eh))
    p['attn_wk'] = u(ks[8], (2 * H, A), 1.0 / math.sqrt(2 * H))
    p['attn_v'] = u(ks[9], (1, A), 1.0 / math.sqrt(A))

    fd = 2 * Eh + 2 * H
    p['dense_w'] = u(ks[10], (fd, Dd), math.sqrt(6.0 / (fd + Dd)))   # xavier_uniform
    p['dense_b'] = u(ks[11], (1, Dd), 1.0 / math.sqrt(fd))
    p['out_w'] = u(ks[12], (Dd, T), math.sqrt(6.0 / (Dd + T)))       # xavier_uniform
    p['out_b'] = u(ks[13], (1, T), 1.0 / math.sqrt(Dd))
    return p


# ----------------------------------------------------------------------------- main

if __name__ == "__main__":
    cfg = dict(src_vocab_size=50, tgt_vocab_size=50, embedding_size=32,
               tagging_embedding_size=8, answer_class_num=4, end_tag_num=3,
               encoder_hidden_size=32, entity_encoder_hidden_size=16,
               attn_size=16, entity_dense_size=32, entity_tag_num=4,
               num_layers=1, dropout=0.0)

    key = jax.random.PRNGKey(0)
    pkey, dkey = jax.random.split(key)
    params = init_params(pkey, cfg)

    B, S, E, W = 2, 8, 4, 3
    k1, k2, k3, k4 = jax.random.split(dkey, 4)
    src_input = jax.random.randint(k1, (B, S), 1, cfg['src_vocab_size'], dtype=jnp.int32)
    answer_tag_input = jax.random.randint(k2, (B, S), 0, cfg['answer_class_num'], dtype=jnp.int32)
    end_tag_input = jax.random.randint(k3, (B, S), 0, cfg['end_tag_num'], dtype=jnp.int32)
    entity_seq_input = jax.random.randint(k4, (B, E, W), 0, cfg['src_vocab_size'], dtype=jnp.int32)
    entity_seq_input = entity_seq_input.at[0, 0].set(0)   # all-pad entity: exercises clamp(1)
    src_input_lengths = jnp.full((B,), S, dtype=jnp.int32)

    logits = selector_forward(params, src_input, src_input_lengths, answer_tag_input,
                              end_tag_input, entity_seq_input, None, None, None, None)
    jax.block_until_ready(logits)
    assert logits.shape == (B, E, cfg['entity_tag_num'])
    assert bool(jnp.all(jnp.isfinite(logits)))
    print("KERNEL_OK")
</pallas_src>

<mosaic_0001>
module attributes {stable_mosaic.version = 11 : i64} {
  func.func @selector_kernel(%arg0: i32, %arg1: memref<1x8x48xbf16, #tpu.memory_space<vmem>>, %arg2: memref<1x4x3x32xf32, #tpu.memory_space<vmem>>, %arg3: memref<1x4x3xf32, #tpu.memory_space<vmem>>, %arg4: memref<48x256xbf16, #tpu.memory_space<vmem>>, %arg5: memref<64x256xbf16, #tpu.memory_space<vmem>>, %arg6: memref<1x256xf32, #tpu.memory_space<vmem>>, %arg7: memref<32x128xbf16, #tpu.memory_space<vmem>>, %arg8: memref<32x128xbf16, #tpu.memory_space<vmem>>, %arg9: memref<1x128xf32, #tpu.memory_space<vmem>>, %arg10: memref<32x128xbf16, #tpu.memory_space<vmem>>, %arg11: memref<64x16xbf16, #tpu.memory_space<vmem>>, %arg12: memref<128x8xbf16, #tpu.memory_space<vmem>>, %arg13: memref<32x32xbf16, #tpu.memory_space<vmem>>, %arg14: memref<64x32xbf16, #tpu.memory_space<vmem>>, %arg15: memref<1x32xf32, #tpu.memory_space<vmem>>, %arg16: memref<32x4xbf16, #tpu.memory_space<vmem>>, %arg17: memref<1x4xf32, #tpu.memory_space<vmem>>, %arg18: memref<1x4x4xf32, #tpu.memory_space<vmem>>, %arg19: memref<8x64xf32, #tpu.memory_space<vmem>>, %arg20: memref<4x32xf32, #tpu.memory_space<vmem>>) attributes {dimension_semantics = [#tpu.dimension_semantics<parallel>], iteration_bounds = array<i64: 2>, scalar_prefetch = 0 : i64, scratch_operands = 2 : i64, tpu.core_type = #tpu.core_type<tc>, window_params = [{transform_indices = @transform_0, window_bounds = array<i64: 1, 8, 48>}, {transform_indices = @transform_1, window_bounds = array<i64: 1, 4, 3, 32>}, {transform_indices = @transform_2, window_bounds = array<i64: 1, 4, 3>}, {pipeline_mode = #tpu.pipeline_mode<synchronous>, transform_indices = @transform_3, window_bounds = array<i64: 48, 256>}, {pipeline_mode = #tpu.pipeline_mode<synchronous>, transform_indices = @transform_4, window_bounds = array<i64: 64, 256>}, {pipeline_mode = #tpu.pipeline_mode<synchronous>, transform_indices = @transform_5, window_bounds = array<i64: 1, 256>}, {pipeline_mode = #tpu.pipeline_mode<synchronous>, transform_indices = @transform_6, window_bounds = array<i64: 32, 128>}, {pipeline_mode = #tpu.pipeline_mode<synchronous>, transform_indices = @transform_7, window_bounds = array<i64: 32, 128>}, {pipeline_mode = #tpu.pipeline_mode<synchronous>, transform_indices = @transform_8, window_bounds = array<i64: 1, 128>}, {pipeline_mode = #tpu.pipeline_mode<synchronous>, transform_indices = @transform_9, window_bounds = array<i64: 32, 128>}, {pipeline_mode = #tpu.pipeline_mode<synchronous>, transform_indices = @transform_10, window_bounds = array<i64: 64, 16>}, {pipeline_mode = #tpu.pipeline_mode<synchronous>, transform_indices = @transform_11, window_bounds = array<i64: 128, 8>}, {pipeline_mode = #tpu.pipeline_mode<synchronous>, transform_indices = @transform_12, window_bounds = array<i64: 32, 32>}, {pipeline_mode = #tpu.pipeline_mode<synchronous>, transform_indices = @transform_13, window_bounds = array<i64: 64, 32>}, {pipeline_mode = #tpu.pipeline_mode<synchronous>, transform_indices = @transform_14, window_bounds = array<i64: 1, 32>}, {pipeline_mode = #tpu.pipeline_mode<synchronous>, transform_indices = @transform_15, window_bounds = array<i64: 32, 4>}, {pipeline_mode = #tpu.pipeline_mode<synchronous>, transform_indices = @transform_16, window_bounds = array<i64: 1, 4>}, {transform_indices = @transform_17, window_bounds = array<i64: 1, 4, 4>}]} {
    %c0 = arith.constant 0 : index
    %c0_0 = arith.constant 0 : index
    %c0_1 = arith.constant 0 : index
    %0 = vector.load %arg1[%c0, %c0_0, %c0_1] : memref<1x8x48xbf16, #tpu.memory_space<vmem>>, vector<1x8x48xbf16>
    %1 = vector.shape_cast %0 : vector<1x8x48xbf16> to vector<8x48xbf16>
    %c0_2 = arith.constant 0 : index
    %c0_3 = arith.constant 0 : index
    %2 = vector.load %arg4[%c0_2, %c0_3] : memref<48x256xbf16, #tpu.memory_space<vmem>>, vector<48x256xbf16>
    %c0_4 = arith.constant 0 : index
    %c0_5 = arith.constant 0 : index
    %3 = vector.load %arg5[%c0_4, %c0_5] : memref<64x256xbf16, #tpu.memory_space<vmem>>, vector<64x256xbf16>
    %c0_6 = arith.constant 0 : index
    %c0_7 = arith.constant 0 : index
    %4 = vector.load %arg6[%c0_6, %c0_7] : memref<1x256xf32, #tpu.memory_space<vmem>>, vector<1x256xf32>
    %cst = arith.constant dense<0.000000e+00> : vector<8x256xf32>
    %5 = tpu.matmul %1, %2, %cst {dimension_numbers = #tpu.dot_dimension_numbers<[1], [0], [0], [1], [0, 0, 1, 1], [], []>} : vector<8x48xbf16>, vector<48x256xbf16>, vector<8x256xf32> -> vector<8x256xf32>
    %6 = vector.broadcast %4 : vector<1x256xf32> to vector<8x256xf32>
    %7 = arith.addf %5, %6 : vector<8x256xf32>
    %8 = tpu.iota {dimensions = array<i32: 1>} : vector<1x256xi32>
    %c64_i32 = arith.constant 64 : i32
    %c0_i32 = arith.constant 0 : i32
    %9 = arith.cmpi eq, %c64_i32, %c0_i32 : i32
    %c1_i32 = arith.constant 1 : i32
    %10 = arith.select %9, %c1_i32, %c64_i32 : i32
    %11 = vector.broadcast %10 : i32 to vector<1x256xi32>
    %12 = arith.remsi %8, %11 : vector<1x256xi32>
    %c0_i32_8 = arith.constant 0 : i32
    %13 = vector.broadcast %c0_i32_8 : i32 to vector<1x256xi32>
    %14 = arith.cmpi ne, %12, %13 : vector<1x256xi32>
    %c0_i32_9 = arith.constant 0 : i32
    %15 = vector.broadcast %c0_i32_9 : i32 to vector<1x256xi32>
    %16 = arith.cmpi slt, %12, %15 : vector<1x256xi32>
    %c0_i32_10 = arith.constant 0 : i32
    %17 = arith.cmpi slt, %10, %c0_i32_10 : i32
    %18 = vector.broadcast %17 : i1 to vector<1x256xi1>
    %19 = vector.broadcast %18 : vector<1x256xi1> to vector<1x256xi1>
    %20 = arith.xori %16, %19 : vector<1x256xi1>
    %21 = arith.andi %20, %14 : vector<1x256xi1>
    %22 = vector.broadcast %10 : i32 to vector<1x256xi32>
    %23 = arith.addi %12, %22 : vector<1x256xi32>
    %24 = arith.select %21, %23, %12 : vector<1x256xi1>, vector<1x256xi32>
    %c32_i32 = arith.constant 32 : i32
    %25 = vector.broadcast %c32_i32 : i32 to vector<1x256xi32>
    %26 = arith.cmpi slt, %24, %25 : vector<1x256xi32>
    %cst_11 = arith.constant 0.000000e+00 : f32
    %27 = vector.broadcast %cst_11 : f32 to vector<1x64xf32>
    %cst_12 = arith.constant 0.000000e+00 : f32
    %28 = vector.broadcast %cst_12 : f32 to vector<1x64xf32>
    %29 = vector.extract_strided_slice %7 {offsets = [0, 0], sizes = [1, 256], strides = [1, 1]} : vector<8x256xf32> to vector<1x256xf32>
    %30 = vector.extract_strided_slice %7 {offsets = [7, 0], sizes = [1, 256], strides = [1, 1]} : vector<8x256xf32> to vector<1x256xf32>
    %31 = arith.select %26, %29, %30 : vector<1x256xi1>, vector<1x256xf32>
    %32 = arith.truncf %27 : vector<1x64xf32> to vector<1x64xbf16>
    %cst_13 = arith.constant dense<0.000000e+00> : vector<1x256xf32>
    %33 = tpu.matmul %32, %3, %cst_13 {dimension_numbers = #tpu.dot_dimension_numbers<[1], [0], [0], [1], [0, 0, 1, 1], [], []>} : vector<1x64xbf16>, vector<64x256xbf16>, vector<1x256xf32> -> vector<1x256xf32>
    %34 = arith.addf %31, %33 : vector<1x256xf32>
    %35 = arith.negf %34 : vector<1x256xf32>
    %36 = math.exp %35 : vector<1x256xf32>
    %cst_14 = arith.constant 1.000000e+00 : f32
    %37 = vector.broadcast %cst_14 : f32 to vector<1x256xf32>
    %38 = arith.addf %37, %36 : vector<1x256xf32>
    %39 = arith.divf %37, %38 : vector<1x256xf32>
    %40 = math.tanh %34 : vector<1x256xf32>
    %41 = vector.extract_strided_slice %39 {offsets = [0, 64], sizes = [1, 64], strides = [1, 1]} : vector<1x256xf32> to vector<1x64xf32>
    %42 = arith.mulf %41, %28 : vector<1x64xf32>
    %43 = vector.extract_strided_slice %39 {offsets = [0, 0], sizes = [1, 64], strides = [1, 1]} : vector<1x256xf32> to vector<1x64xf32>
    %44 = vector.extract_strided_slice %40 {offsets = [0, 128], sizes = [1, 64], strides = [1, 1]} : vector<1x256xf32> to vector<1x64xf32>
    %45 = arith.mulf %43, %44 : vector<1x64xf32>
    %46 = arith.addf %42, %45 : vector<1x64xf32>
    %47 = vector.extract_strided_slice %39 {offsets = [0, 192], sizes = [1, 64], strides = [1, 1]} : vector<1x256xf32> to vector<1x64xf32>
    %48 = math.tanh %46 : vector<1x64xf32>
    %49 = arith.mulf %47, %48 : vector<1x64xf32>
    %50 = vector.extract_strided_slice %49 {offsets = [0, 0], sizes = [1, 32], strides = [1, 1]} : vector<1x64xf32> to vector<1x32xf32>
    %c0_15 = arith.constant 0 : index
    %c0_16 = arith.constant 0 : index
    %51 = vector.load %arg19[%c0_15, %c0_16] : memref<8x64xf32, #tpu.memory_space<vmem>>, vector<1x32xf32>
    tpu.vector_store %arg19[%c0_15, %c0_16], %50 {strides = array<i32>} : memref<8x64xf32, #tpu.memory_space<vmem>>, vector<1x32xf32>,
    %52 = vector.extract_strided_slice %49 {offsets = [0, 32], sizes = [1, 32], strides = [1, 1]} : vector<1x64xf32> to vector<1x32xf32>
    %c7 = arith.constant 7 : index
    %c32 = arith.constant 32 : index
    %53 = vector.load %arg19[%c7, %c32] : memref<8x64xf32, #tpu.memory_space<vmem>>, vector<1x32xf32>
    tpu.vector_store %arg19[%c7, %c32], %52 {strides = array<i32>} : memref<8x64xf32, #tpu.memory_space<vmem>>, vector<1x32xf32>,
    %54 = vector.extract_strided_slice %7 {offsets = [1, 0], sizes = [1, 256], strides = [1, 1]} : vector<8x256xf32> to vector<1x256xf32>
    %55 = vector.extract_strided_slice %7 {offsets = [6, 0], sizes = [1, 256], strides = [1, 1]} : vector<8x256xf32> to vector<1x256xf32>
    %56 = arith.select %26, %54, %55 : vector<1x256xi1>, vector<1x256xf32>
    %57 = arith.truncf %49 : vector<1x64xf32> to vector<1x64xbf16>
    %cst_17 = arith.constant dense<0.000000e+00> : vector<1x256xf32>
    %58 = tpu.matmul %57, %3, %cst_17 {dimension_numbers = #tpu.dot_dimension_numbers<[1], [0], [0], [1], [0, 0, 1, 1], [], []>} : vector<1x64xbf16>, vector<64x256xbf16>, vector<1x256xf32> -> vector<1x256xf32>
    %59 = arith.addf %56, %58 : vector<1x256xf32>
    %60 = arith.negf %59 : vector<1x256xf32>
    %61 = math.exp %60 : vector<1x256xf32>
    %cst_18 = arith.constant 1.000000e+00 : f32
    %62 = vector.broadcast %cst_18 : f32 to vector<1x256xf32>
    %63 = arith.addf %62, %61 : vector<1x256xf32>
    %64 = arith.divf %62, %63 : vector<1x256xf32>
    %65 = math.tanh %59 : vector<1x256xf32>
    %66 = vector.extract_strided_slice %64 {offsets = [0, 64], sizes = [1, 64], strides = [1, 1]} : vector<1x256xf32> to vector<1x64xf32>
    %67 = arith.mulf %66, %46 : vector<1x64xf32>
    %68 = vector.extract_strided_slice %64 {offsets = [0, 0], sizes = [1, 64], strides = [1, 1]} : vector<1x256xf32> to vector<1x64xf32>
    %69 = vector.extract_strided_slice %65 {offsets = [0, 128], sizes = [1, 64], strides = [1, 1]} : vector<1x256xf32> to vector<1x64xf32>
    %70 = arith.mulf %68, %69 : vector<1x64xf32>
    %71 = arith.addf %67, %70 : vector<1x64xf32>
    %72 = vector.extract_strided_slice %64 {offsets = [0, 192], sizes = [1, 64], strides = [1, 1]} : vector<1x256xf32> to vector<1x64xf32>
    %73 = math.tanh %71 : vector<1x64xf32>
    %74 = arith.mulf %72, %73 : vector<1x64xf32>
    %75 = vector.extract_strided_slice %74 {offsets = [0, 0], sizes = [1, 32], strides = [1, 1]} : vector<1x64xf32> to vector<1x32xf32>
    %c1 = arith.constant 1 : index
    %c0_19 = arith.constant 0 : index
    %76 = vector.load %arg19[%c1, %c0_19] : memref<8x64xf32, #tpu.memory_space<vmem>>, vector<1x32xf32>
    tpu.vector_store %arg19[%c1, %c0_19], %75 {strides = array<i32>} : memref<8x64xf32, #tpu.memory_space<vmem>>, vector<1x32xf32>,
    %77 = vector.extract_strided_slice %74 {offsets = [0, 32], sizes = [1, 32], strides = [1, 1]} : vector<1x64xf32> to vector<1x32xf32>
    %c6 = arith.constant 6 : index
    %c32_20 = arith.constant 32 : index
    %78 = vector.load %arg19[%c6, %c32_20] : memref<8x64xf32, #tpu.memory_space<vmem>>, vector<1x32xf32>
    tpu.vector_store %arg19[%c6, %c32_20], %77 {strides = array<i32>} : memref<8x64xf32, #tpu.memory_space<vmem>>, vector<1x32xf32>,
    %79 = vector.extract_strided_slice %7 {offsets = [2, 0], sizes = [1, 256], strides = [1, 1]} : vector<8x256xf32> to vector<1x256xf32>
    %80 = vector.extract_strided_slice %7 {offsets = [5, 0], sizes = [1, 256], strides = [1, 1]} : vector<8x256xf32> to vector<1x256xf32>
    %81 = arith.select %26, %79, %80 : vector<1x256xi1>, vector<1x256xf32>
    %82 = arith.truncf %74 : vector<1x64xf32> to vector<1x64xbf16>
    %cst_21 = arith.constant dense<0.000000e+00> : vector<1x256xf32>
    %83 = tpu.matmul %82, %3, %cst_21 {dimension_numbers = #tpu.dot_dimension_numbers<[1], [0], [0], [1], [0, 0, 1, 1], [], []>} : vector<1x64xbf16>, vector<64x256xbf16>, vector<1x256xf32> -> vector<1x256xf32>
    %84 = arith.addf %81, %83 : vector<1x256xf32>
    %85 = arith.negf %84 : vector<1x256xf32>
    %86 = math.exp %85 : vector<1x256xf32>
    %cst_22 = arith.constant 1.000000e+00 : f32
    %87 = vector.broadcast %cst_22 : f32 to vector<1x256xf32>
    %88 = arith.addf %87, %86 : vector<1x256xf32>
    %89 = arith.divf %87, %88 : vector<1x256xf32>
    %90 = math.tanh %84 : vector<1x256xf32>
    %91 = vector.extract_strided_slice %89 {offsets = [0, 64], sizes = [1, 64], strides = [1, 1]} : vector<1x256xf32> to vector<1x64xf32>
    %92 = arith.mulf %91, %71 : vector<1x64xf32>
    %93 = vector.extract_strided_slice %89 {offsets = [0, 0], sizes = [1, 64], strides = [1, 1]} : vector<1x256xf32> to vector<1x64xf32>
    %94 = vector.extract_strided_slice %90 {offsets = [0, 128], sizes = [1, 64], strides = [1, 1]} : vector<1x256xf32> to vector<1x64xf32>
    %95 = arith.mulf %93, %94 : vector<1x64xf32>
    %96 = arith.addf %92, %95 : vector<1x64xf32>
    %97 = vector.extract_strided_slice %89 {offsets = [0, 192], sizes = [1, 64], strides = [1, 1]} : vector<1x256xf32> to vector<1x64xf32>
    %98 = math.tanh %96 : vector<1x64xf32>
    %99 = arith.mulf %97, %98 : vector<1x64xf32>
    %100 = vector.extract_strided_slice %99 {offsets = [0, 0], sizes = [1, 32], strides = [1, 1]} : vector<1x64xf32> to vector<1x32xf32>
    %c2 = arith.constant 2 : index
    %c0_23 = arith.constant 0 : index
    %101 = vector.load %arg19[%c2, %c0_23] : memref<8x64xf32, #tpu.memory_space<vmem>>, vector<1x32xf32>
    tpu.vector_store %arg19[%c2, %c0_23], %100 {strides = array<i32>} : memref<8x64xf32, #tpu.memory_space<vmem>>, vector<1x32xf32>,
    %102 = vector.extract_strided_slice %99 {offsets = [0, 32], sizes = [1, 32], strides = [1, 1]} : vector<1x64xf32> to vector<1x32xf32>
    %c5 = arith.constant 5 : index
    %c32_24 = arith.constant 32 : index
    %103 = vector.load %arg19[%c5, %c32_24] : memref<8x64xf32, #tpu.memory_space<vmem>>, vector<1x32xf32>
    tpu.vector_store %arg19[%c5, %c32_24], %102 {strides = array<i32>} : memref<8x64xf32, #tpu.memory_space<vmem>>, vector<1x32xf32>,
    %104 = vector.extract_strided_slice %7 {offsets = [3, 0], sizes = [1, 256], strides = [1, 1]} : vector<8x256xf32> to vector<1x256xf32>
    %105 = vector.extract_strided_slice %7 {offsets = [4, 0], sizes = [1, 256], strides = [1, 1]} : vector<8x256xf32> to vector<1x256xf32>
    %106 = arith.select %26, %104, %105 : vector<1x256xi1>, vector<1x256xf32>
    %107 = arith.truncf %99 : vector<1x64xf32> to vector<1x64xbf16>
    %cst_25 = arith.constant dense<0.000000e+00> : vector<1x256xf32>
    %108 = tpu.matmul %107, %3, %cst_25 {dimension_numbers = #tpu.dot_dimension_numbers<[1], [0], [0], [1], [0, 0, 1, 1], [], []>} : vector<1x64xbf16>, vector<64x256xbf16>, vector<1x256xf32> -> vector<1x256xf32>
    %109 = arith.addf %106, %108 : vector<1x256xf32>
    %110 = arith.negf %109 : vector<1x256xf32>
    %111 = math.exp %110 : vector<1x256xf32>
    %cst_26 = arith.constant 1.000000e+00 : f32
    %112 = vector.broadcast %cst_26 : f32 to vector<1x256xf32>
    %113 = arith.addf %112, %111 : vector<1x256xf32>
    %114 = arith.divf %112, %113 : vector<1x256xf32>
    %115 = math.tanh %109 : vector<1x256xf32>
    %116 = vector.extract_strided_slice %114 {offsets = [0, 64], sizes = [1, 64], strides = [1, 1]} : vector<1x256xf32> to vector<1x64xf32>
    %117 = arith.mulf %116, %96 : vector<1x64xf32>
    %118 = vector.extract_strided_slice %114 {offsets = [0, 0], sizes = [1, 64], strides = [1, 1]} : vector<1x256xf32> to vector<1x64xf32>
    %119 = vector.extract_strided_slice %115 {offsets = [0, 128], sizes = [1, 64], strides = [1, 1]} : vector<1x256xf32> to vector<1x64xf32>
    %120 = arith.mulf %118, %119 : vector<1x64xf32>
    %121 = arith.addf %117, %120 : vector<1x64xf32>
    %122 = vector.extract_strided_slice %114 {offsets = [0, 192], sizes = [1, 64], strides = [1, 1]} : vector<1x256xf32> to vector<1x64xf32>
    %123 = math.tanh %121 : vector<1x64xf32>
    %124 = arith.mulf %122, %123 : vector<1x64xf32>
    %125 = vector.extract_strided_slice %124 {offsets = [0, 0], sizes = [1, 32], strides = [1, 1]} : vector<1x64xf32> to vector<1x32xf32>
    %c3 = arith.constant 3 : index
    %c0_27 = arith.constant 0 : index
    %126 = vector.load %arg19[%c3, %c0_27] : memref<8x64xf32, #tpu.memory_space<vmem>>, vector<1x32xf32>
    tpu.vector_store %arg19[%c3, %c0_27], %125 {strides = array<i32>} : memref<8x64xf32, #tpu.memory_space<vmem>>, vector<1x32xf32>,
    %127 = vector.extract_strided_slice %124 {offsets = [0, 32], sizes = [1, 32], strides = [1, 1]} : vector<1x64xf32> to vector<1x32xf32>
    %c4 = arith.constant 4 : index
    %c32_28 = arith.constant 32 : index
    %128 = vector.load %arg19[%c4, %c32_28] : memref<8x64xf32, #tpu.memory_space<vmem>>, vector<1x32xf32>
    tpu.vector_store %arg19[%c4, %c32_28], %127 {strides = array<i32>} : memref<8x64xf32, #tpu.memory_space<vmem>>, vector<1x32xf32>,
    %129 = vector.extract_strided_slice %7 {offsets = [4, 0], sizes = [1, 256], strides = [1, 1]} : vector<8x256xf32> to vector<1x256xf32>
    %130 = vector.extract_strided_slice %7 {offsets = [3, 0], sizes = [1, 256], strides = [1, 1]} : vector<8x256xf32> to vector<1x256xf32>
    %131 = arith.select %26, %129, %130 : vector<1x256xi1>, vector<1x256xf32>
    %132 = arith.truncf %124 : vector<1x64xf32> to vector<1x64xbf16>
    %cst_29 = arith.constant dense<0.000000e+00> : vector<1x256xf32>
    %133 = tpu.matmul %132, %3, %cst_29 {dimension_numbers = #tpu.dot_dimension_numbers<[1], [0], [0], [1], [0, 0, 1, 1], [], []>} : vector<1x64xbf16>, vector<64x256xbf16>, vector<1x256xf32> -> vector<1x256xf32>
    %134 = arith.addf %131, %133 : vector<1x256xf32>
    %135 = arith.negf %134 : vector<1x256xf32>
    %136 = math.exp %135 : vector<1x256xf32>
    %cst_30 = arith.constant 1.000000e+00 : f32
    %137 = vector.broadcast %cst_30 : f32 to vector<1x256xf32>
    %138 = arith.addf %137, %136 : vector<1x256xf32>
    %139 = arith.divf %137, %138 : vector<1x256xf32>
    %140 = math.tanh %134 : vector<1x256xf32>
    %141 = vector.extract_strided_slice %139 {offsets = [0, 64], sizes = [1, 64], strides = [1, 1]} : vector<1x256xf32> to vector<1x64xf32>
    %142 = arith.mulf %141, %121 : vector<1x64xf32>
    %143 = vector.extract_strided_slice %139 {offsets = [0, 0], sizes = [1, 64], strides = [1, 1]} : vector<1x256xf32> to vector<1x64xf32>
    %144 = vector.extract_strided_slice %140 {offsets = [0, 128], sizes = [1, 64], strides = [1, 1]} : vector<1x256xf32> to vector<1x64xf32>
    %145 = arith.mulf %143, %144 : vector<1x64xf32>
    %146 = arith.addf %142, %145 : vector<1x64xf32>
    %147 = vector.extract_strided_slice %139 {offsets = [0, 192], sizes = [1, 64], strides = [1, 1]} : vector<1x256xf32> to vector<1x64xf32>
    %148 = math.tanh %146 : vector<1x64xf32>
    %149 = arith.mulf %147, %148 : vector<1x64xf32>
    %150 = vector.extract_strided_slice %149 {offsets = [0, 0], sizes = [1, 32], strides = [1, 1]} : vector<1x64xf32> to vector<1x32xf32>
    %c4_31 = arith.constant 4 : index
    %c0_32 = arith.constant 0 : index
    %151 = vector.load %arg19[%c4_31, %c0_32] : memref<8x64xf32, #tpu.memory_space<vmem>>, vector<1x32xf32>
    tpu.vector_store %arg19[%c4_31, %c0_32], %150 {strides = array<i32>} : memref<8x64xf32, #tpu.memory_space<vmem>>, vector<1x32xf32>,
    %152 = vector.extract_strided_slice %149 {offsets = [0, 32], sizes = [1, 32], strides = [1, 1]} : vector<1x64xf32> to vector<1x32xf32>
    %c3_33 = arith.constant 3 : index
    %c32_34 = arith.constant 32 : index
    %153 = vector.load %arg19[%c3_33, %c32_34] : memref<8x64xf32, #tpu.memory_space<vmem>>, vector<1x32xf32>
    tpu.vector_store %arg19[%c3_33, %c32_34], %152 {strides = array<i32>} : memref<8x64xf32, #tpu.memory_space<vmem>>, vector<1x32xf32>,
    %154 = vector.extract_strided_slice %7 {offsets = [5, 0], sizes = [1, 256], strides = [1, 1]} : vector<8x256xf32> to vector<1x256xf32>
    %155 = vector.extract_strided_slice %7 {offsets = [2, 0], sizes = [1, 256], strides = [1, 1]} : vector<8x256xf32> to vector<1x256xf32>
    %156 = arith.select %26, %154, %155 : vector<1x256xi1>, vector<1x256xf32>
    %157 = arith.truncf %149 : vector<1x64xf32> to vector<1x64xbf16>
    %cst_35 = arith.constant dense<0.000000e+00> : vector<1x256xf32>
    %158 = tpu.matmul %157, %3, %cst_35 {dimension_numbers = #tpu.dot_dimension_numbers<[1], [0], [0], [1], [0, 0, 1, 1], [], []>} : vector<1x64xbf16>, vector<64x256xbf16>, vector<1x256xf32> -> vector<1x256xf32>
    %159 = arith.addf %156, %158 : vector<1x256xf32>
    %160 = arith.negf %159 : vector<1x256xf32>
    %161 = math.exp %160 : vector<1x256xf32>
    %cst_36 = arith.constant 1.000000e+00 : f32
    %162 = vector.broadcast %cst_36 : f32 to vector<1x256xf32>
    %163 = arith.addf %162, %161 : vector<1x256xf32>
    %164 = arith.divf %162, %163 : vector<1x256xf32>
    %165 = math.tanh %159 : vector<1x256xf32>
    %166 = vector.extract_strided_slice %164 {offsets = [0, 64], sizes = [1, 64], strides = [1, 1]} : vector<1x256xf32> to vector<1x64xf32>
    %167 = arith.mulf %166, %146 : vector<1x64xf32>
    %168 = vector.extract_strided_slice %164 {offsets = [0, 0], sizes = [1, 64], strides = [1, 1]} : vector<1x256xf32> to vector<1x64xf32>
    %169 = vector.extract_strided_slice %165 {offsets = [0, 128], sizes = [1, 64], strides = [1, 1]} : vector<1x256xf32> to vector<1x64xf32>
    %170 = arith.mulf %168, %169 : vector<1x64xf32>
    %171 = arith.addf %167, %170 : vector<1x64xf32>
    %172 = vector.extract_strided_slice %164 {offsets = [0, 192], sizes = [1, 64], strides = [1, 1]} : vector<1x256xf32> to vector<1x64xf32>
    %173 = math.tanh %171 : vector<1x64xf32>
    %174 = arith.mulf %172, %173 : vector<1x64xf32>
    %175 = vector.extract_strided_slice %174 {offsets = [0, 0], sizes = [1, 32], strides = [1, 1]} : vector<1x64xf32> to vector<1x32xf32>
    %c5_37 = arith.constant 5 : index
    %c0_38 = arith.constant 0 : index
    %176 = vector.load %arg19[%c5_37, %c0_38] : memref<8x64xf32, #tpu.memory_space<vmem>>, vector<1x32xf32>
    tpu.vector_store %arg19[%c5_37, %c0_38], %175 {strides = array<i32>} : memref<8x64xf32, #tpu.memory_space<vmem>>, vector<1x32xf32>,
    %177 = vector.extract_strided_slice %174 {offsets = [0, 32], sizes = [1, 32], strides = [1, 1]} : vector<1x64xf32> to vector<1x32xf32>
    %c2_39 = arith.constant 2 : index
    %c32_40 = arith.constant 32 : index
    %178 = vector.load %arg19[%c2_39, %c32_40] : memref<8x64xf32, #tpu.memory_space<vmem>>, vector<1x32xf32>
    tpu.vector_store %arg19[%c2_39, %c32_40], %177 {strides = array<i32>} : memref<8x64xf32, #tpu.memory_space<vmem>>, vector<1x32xf32>,
    %179 = vector.extract_strided_slice %7 {offsets = [6, 0], sizes = [1, 256], strides = [1, 1]} : vector<8x256xf32> to vector<1x256xf32>
    %180 = vector.extract_strided_slice %7 {offsets = [1, 0], sizes = [1, 256], strides = [1, 1]} : vector<8x256xf32> to vector<1x256xf32>
    %181 = arith.select %26, %179, %180 : vector<1x256xi1>, vector<1x256xf32>
    %182 = arith.truncf %174 : vector<1x64xf32> to vector<1x64xbf16>
    %cst_41 = arith.constant dense<0.000000e+00> : vector<1x256xf32>
    %183 = tpu.matmul %182, %3, %cst_41 {dimension_numbers = #tpu.dot_dimension_numbers<[1], [0], [0], [1], [0, 0, 1, 1], [], []>} : vector<1x64xbf16>, vector<64x256xbf16>, vector<1x256xf32> -> vector<1x256xf32>
    %184 = arith.addf %181, %183 : vector<1x256xf32>
    %185 = arith.negf %184 : vector<1x256xf32>
    %186 = math.exp %185 : vector<1x256xf32>
    %cst_42 = arith.constant 1.000000e+00 : f32
    %187 = vector.broadcast %cst_42 : f32 to vector<1x256xf32>
    %188 = arith.addf %187, %186 : vector<1x256xf32>
    %189 = arith.divf %187, %188 : vector<1x256xf32>
    %190 = math.tanh %184 : vector<1x256xf32>
    %191 = vector.extract_strided_slice %189 {offsets = [0, 64], sizes = [1, 64], strides = [1, 1]} : vector<1x256xf32> to vector<1x64xf32>
    %192 = arith.mulf %191, %171 : vector<1x64xf32>
    %193 = vector.extract_strided_slice %189 {offsets = [0, 0], sizes = [1, 64], strides = [1, 1]} : vector<1x256xf32> to vector<1x64xf32>
    %194 = vector.extract_strided_slice %190 {offsets = [0, 128], sizes = [1, 64], strides = [1, 1]} : vector<1x256xf32> to vector<1x64xf32>
    %195 = arith.mulf %193, %194 : vector<1x64xf32>
    %196 = arith.addf %192, %195 : vector<1x64xf32>
    %197 = vector.extract_strided_slice %189 {offsets = [0, 192], sizes = [1, 64], strides = [1, 1]} : vector<1x256xf32> to vector<1x64xf32>
    %198 = math.tanh %196 : vector<1x64xf32>
    %199 = arith.mulf %197, %198 : vector<1x64xf32>
    %200 = vector.extract_strided_slice %199 {offsets = [0, 0], sizes = [1, 32], strides = [1, 1]} : vector<1x64xf32> to vector<1x32xf32>
    %c6_43 = arith.constant 6 : index
    %c0_44 = arith.constant 0 : index
    %201 = vector.load %arg19[%c6_43, %c0_44] : memref<8x64xf32, #tpu.memory_space<vmem>>, vector<1x32xf32>
    tpu.vector_store %arg19[%c6_43, %c0_44], %200 {strides = array<i32>} : memref<8x64xf32, #tpu.memory_space<vmem>>, vector<1x32xf32>,
    %202 = vector.extract_strided_slice %199 {offsets = [0, 32], sizes = [1, 32], strides = [1, 1]} : vector<1x64xf32> to vector<1x32xf32>
    %c1_45 = arith.constant 1 : index
    %c32_46 = arith.constant 32 : index
    %203 = vector.load %arg19[%c1_45, %c32_46] : memref<8x64xf32, #tpu.memory_space<vmem>>, vector<1x32xf32>
    tpu.vector_store %arg19[%c1_45, %c32_46], %202 {strides = array<i32>} : memref<8x64xf32, #tpu.memory_space<vmem>>, vector<1x32xf32>,
    %204 = vector.extract_strided_slice %7 {offsets = [7, 0], sizes = [1, 256], strides = [1, 1]} : vector<8x256xf32> to vector<1x256xf32>
    %205 = vector.extract_strided_slice %7 {offsets = [0, 0], sizes = [1, 256], strides = [1, 1]} : vector<8x256xf32> to vector<1x256xf32>
    %206 = arith.select %26, %204, %205 : vector<1x256xi1>, vector<1x256xf32>
    %207 = arith.truncf %199 : vector<1x64xf32> to vector<1x64xbf16>
    %cst_47 = arith.constant dense<0.000000e+00> : vector<1x256xf32>
    %208 = tpu.matmul %207, %3, %cst_47 {dimension_numbers = #tpu.dot_dimension_numbers<[1], [0], [0], [1], [0, 0, 1, 1], [], []>} : vector<1x64xbf16>, vector<64x256xbf16>, vector<1x256xf32> -> vector<1x256xf32>
    %209 = arith.addf %206, %208 : vector<1x256xf32>
    %210 = arith.negf %209 : vector<1x256xf32>
    %211 = math.exp %210 : vector<1x256xf32>
    %cst_48 = arith.constant 1.000000e+00 : f32
    %212 = vector.broadcast %cst_48 : f32 to vector<1x256xf32>
    %213 = arith.addf %212, %211 : vector<1x256xf32>
    %214 = arith.divf %212, %213 : vector<1x256xf32>
    %215 = math.tanh %209 : vector<1x256xf32>
    %216 = vector.extract_strided_slice %214 {offsets = [0, 64], sizes = [1, 64], strides = [1, 1]} : vector<1x256xf32> to vector<1x64xf32>
    %217 = arith.mulf %216, %196 : vector<1x64xf32>
    %218 = vector.extract_strided_slice %214 {offsets = [0, 0], sizes = [1, 64], strides = [1, 1]} : vector<1x256xf32> to vector<1x64xf32>
    %219 = vector.extract_strided_slice %215 {offsets = [0, 128], sizes = [1, 64], strides = [1, 1]} : vector<1x256xf32> to vector<1x64xf32>
    %220 = arith.mulf %218, %219 : vector<1x64xf32>
    %221 = arith.addf %217, %220 : vector<1x64xf32>
    %222 = vector.extract_strided_slice %214 {offsets = [0, 192], sizes = [1, 64], strides = [1, 1]} : vector<1x256xf32> to vector<1x64xf32>
    %223 = math.tanh %221 : vector<1x64xf32>
    %224 = arith.mulf %222, %223 : vector<1x64xf32>
    %225 = vector.extract_strided_slice %224 {offsets = [0, 0], sizes = [1, 32], strides = [1, 1]} : vector<1x64xf32> to vector<1x32xf32>
    %c7_49 = arith.constant 7 : index
    %c0_50 = arith.constant 0 : index
    %226 = vector.load %arg19[%c7_49, %c0_50] : memref<8x64xf32, #tpu.memory_space<vmem>>, vector<1x32xf32>
    tpu.vector_store %arg19[%c7_49, %c0_50], %225 {strides = array<i32>} : memref<8x64xf32, #tpu.memory_space<vmem>>, vector<1x32xf32>,
    %227 = vector.extract_strided_slice %224 {offsets = [0, 32], sizes = [1, 32], strides = [1, 1]} : vector<1x64xf32> to vector<1x32xf32>
    %c0_51 = arith.constant 0 : index
    %c32_52 = arith.constant 32 : index
    %228 = vector.load %arg19[%c0_51, %c32_52] : memref<8x64xf32, #tpu.memory_space<vmem>>, vector<1x32xf32>
    tpu.vector_store %arg19[%c0_51, %c32_52], %227 {strides = array<i32>} : memref<8x64xf32, #tpu.memory_space<vmem>>, vector<1x32xf32>,
    %c0_53 = arith.constant 0 : index
    %c0_54 = arith.constant 0 : index
    %229 = vector.load %arg19[%c0_53, %c0_54] : memref<8x64xf32, #tpu.memory_space<vmem>>, vector<8x64xf32>
    %230 = arith.truncf %229 : vector<8x64xf32> to vector<8x64xbf16>
    %c0_55 = arith.constant 0 : index
    %c0_56 = arith.constant 0 : index
    %c0_57 = arith.constant 0 : index
    %c0_58 = arith.constant 0 : index
    %231 = vector.load %arg2[%c0_55, %c0_56, %c0_57, %c0_58] : memref<1x4x3x32xf32, #tpu.memory_space<vmem>>, vector<1x4x3x32xf32>
    %232 = vector.shape_cast %231 : vector<1x4x3x32xf32> to vector<4x3x32xf32>
    %c0_59 = arith.constant 0 : index
    %c0_60 = arith.constant 0 : index
    %c0_61 = arith.constant 0 : index
    %233 = vector.load %arg3[%c0_59, %c0_60, %c0_61] : memref<1x4x3xf32, #tpu.memory_space<vmem>>, vector<1x4x3xf32>
    %234 = vector.shape_cast %233 : vector<1x4x3xf32> to vector<4x3xf32>
    %235 = vector.shape_cast %234 : vector<4x3xf32> to vector<4x3x1xf32>
    %236 = vector.broadcast %235 : vector<4x3x1xf32> to vector<4x3x32xf32>
    %237 = arith.mulf %236, %232 : vector<4x3x32xf32>
    %cst_62 = arith.constant dense<0.000000e+00> : vector<4x32xf32>
    %238 = vector.multi_reduction <add>, %237, %cst_62 [1] : vector<4x3x32xf32> to vector<4x32xf32>
    %cst_63 = arith.constant dense<0.000000e+00> : vector<4xf32>
    %239 = vector.multi_reduction <add>, %234, %cst_63 [1] : vector<4x3xf32> to vector<4xf32>
    %240 = vector.shape_cast %239 : vector<4xf32> to vector<4x1xf32>
    %cst_64 = arith.constant 1.000000e+00 : f32
    %241 = vector.broadcast %cst_64 : f32 to vector<4x1xf32>
    %242 = arith.maximumf %240, %241 : vector<4x1xf32>
    %243 = vector.broadcast %242 : vector<4x1xf32> to vector<4x32xf32>
    %244 = arith.divf %238, %243 : vector<4x32xf32>
    %245 = arith.truncf %244 : vector<4x32xf32> to vector<4x32xbf16>
    %c0_65 = arith.constant 0 : index
    %c0_66 = arith.constant 0 : index
    %246 = vector.load %arg7[%c0_65, %c0_66] : memref<32x128xbf16, #tpu.memory_space<vmem>>, vector<32x128xbf16>
    %c0_67 = arith.constant 0 : index
    %c0_68 = arith.constant 0 : index
    %247 = vector.load %arg8[%c0_67, %c0_68] : memref<32x128xbf16, #tpu.memory_space<vmem>>, vector<32x128xbf16>
    %c0_69 = arith.constant 0 : index
    %c0_70 = arith.constant 0 : index
    %248 = vector.load %arg9[%c0_69, %c0_70] : memref<1x128xf32, #tpu.memory_space<vmem>>, vector<1x128xf32>
    %cst_71 = arith.constant dense<0.000000e+00> : vector<4x128xf32>
    %249 = tpu.matmul %245, %246, %cst_71 {dimension_numbers = #tpu.dot_dimension_numbers<[1], [0], [0], [1], [0, 0, 1, 1], [], []>} : vector<4x32xbf16>, vector<32x128xbf16>, vector<4x128xf32> -> vector<4x128xf32>
    %250 = vector.broadcast %248 : vector<1x128xf32> to vector<4x128xf32>
    %251 = arith.addf %249, %250 : vector<4x128xf32>
    %252 = tpu.iota {dimensions = array<i32: 1>} : vector<1x128xi32>
    %c32_i32_72 = arith.constant 32 : i32
    %c0_i32_73 = arith.constant 0 : i32
    %253 = arith.cmpi eq, %c32_i32_72, %c0_i32_73 : i32
    %c1_i32_74 = arith.constant 1 : i32
    %254 = arith.select %253, %c1_i32_74, %c32_i32_72 : i32
    %255 = vector.broadcast %254 : i32 to vector<1x128xi32>
    %256 = arith.remsi %252, %255 : vector<1x128xi32>
    %c0_i32_75 = arith.constant 0 : i32
    %257 = vector.broadcast %c0_i32_75 : i32 to vector<1x128xi32>
    %258 = arith.cmpi ne, %256, %257 : vector<1x128xi32>
    %c0_i32_76 = arith.constant 0 : i32
    %259 = vector.broadcast %c0_i32_76 : i32 to vector<1x128xi32>
    %260 = arith.cmpi slt, %256, %259 : vector<1x128xi32>
    %c0_i32_77 = arith.constant 0 : i32
    %261 = arith.cmpi slt, %254, %c0_i32_77 : i32
    %262 = vector.broadcast %261 : i1 to vector<1x128xi1>
    %263 = vector.broadcast %262 : vector<1x128xi1> to vector<1x128xi1>
    %264 = arith.xori %260, %263 : vector<1x128xi1>
    %265 = arith.andi %264, %258 : vector<1x128xi1>
    %266 = vector.broadcast %254 : i32 to vector<1x128xi32>
    %267 = arith.addi %256, %266 : vector<1x128xi32>
    %268 = arith.select %265, %267, %256 : vector<1x128xi1>, vector<1x128xi32>
    %c16_i32 = arith.constant 16 : i32
    %269 = vector.broadcast %c16_i32 : i32 to vector<1x128xi32>
    %270 = arith.cmpi slt, %268, %269 : vector<1x128xi32>
    %cst_78 = arith.constant 0.000000e+00 : f32
    %271 = vector.broadcast %cst_78 : f32 to vector<1x32xf32>
    %cst_79 = arith.constant 0.000000e+00 : f32
    %272 = vector.broadcast %cst_79 : f32 to vector<1x32xf32>
    %273 = vector.extract_strided_slice %251 {offsets = [0, 0], sizes = [1, 128], strides = [1, 1]} : vector<4x128xf32> to vector<1x128xf32>
    %274 = vector.extract_strided_slice %251 {offsets = [3, 0], sizes = [1, 128], strides = [1, 1]} : vector<4x128xf32> to vector<1x128xf32>
    %275 = arith.select %270, %273, %274 : vector<1x128xi1>, vector<1x128xf32>
    %276 = arith.truncf %271 : vector<1x32xf32> to vector<1x32xbf16>
    %cst_80 = arith.constant dense<0.000000e+00> : vector<1x128xf32>
    %277 = tpu.matmul %276, %247, %cst_80 {dimension_numbers = #tpu.dot_dimension_numbers<[1], [0], [0], [1], [0, 0, 1, 1], [], []>} : vector<1x32xbf16>, vector<32x128xbf16>, vector<1x128xf32> -> vector<1x128xf32>
    %278 = arith.addf %275, %277 : vector<1x128xf32>
    %279 = arith.negf %278 : vector<1x128xf32>
    %280 = math.exp %279 : vector<1x128xf32>
    %cst_81 = arith.constant 1.000000e+00 : f32
    %281 = vector.broadcast %cst_81 : f32 to vector<1x128xf32>
    %282 = arith.addf %281, %280 : vector<1x128xf32>
    %283 = arith.divf %281, %282 : vector<1x128xf32>
    %284 = math.tanh %278 : vector<1x128xf32>
    %285 = vector.extract_strided_slice %283 {offsets = [0, 32], sizes = [1, 32], strides = [1, 1]} : vector<1x128xf32> to vector<1x32xf32>
    %286 = arith.mulf %285, %272 : vector<1x32xf32>
    %287 = vector.extract_strided_slice %283 {offsets = [0, 0], sizes = [1, 32], strides = [1, 1]} : vector<1x128xf32> to vector<1x32xf32>
    %288 = vector.extract_strided_slice %284 {offsets = [0, 64], sizes = [1, 32], strides = [1, 1]} : vector<1x128xf32> to vector<1x32xf32>
    %289 = arith.mulf %287, %288 : vector<1x32xf32>
    %290 = arith.addf %286, %289 : vector<1x32xf32>
    %291 = vector.extract_strided_slice %283 {offsets = [0, 96], sizes = [1, 32], strides = [1, 1]} : vector<1x128xf32> to vector<1x32xf32>
    %292 = math.tanh %290 : vector<1x32xf32>
    %293 = arith.mulf %291, %292 : vector<1x32xf32>
    %294 = vector.extract_strided_slice %293 {offsets = [0, 0], sizes = [1, 16], strides = [1, 1]} : vector<1x32xf32> to vector<1x16xf32>
    %c0_82 = arith.constant 0 : index
    %c0_83 = arith.constant 0 : index
    %295 = vector.load %arg20[%c0_82, %c0_83] : memref<4x32xf32, #tpu.memory_space<vmem>>, vector<1x16xf32>
    tpu.vector_store %arg20[%c0_82, %c0_83], %294 {strides = array<i32>} : memref<4x32xf32, #tpu.memory_space<vmem>>, vector<1x16xf32>,
    %296 = vector.extract_strided_slice %293 {offsets = [0, 16], sizes = [1, 16], strides = [1, 1]} : vector<1x32xf32> to vector<1x16xf32>
    %c3_84 = arith.constant 3 : index
    %c16 = arith.constant 16 : index
    %297 = vector.load %arg20[%c3_84, %c16] : memref<4x32xf32, #tpu.memory_space<vmem>>, vector<1x16xf32>
    tpu.vector_store %arg20[%c3_84, %c16], %296 {strides = array<i32>} : memref<4x32xf32, #tpu.memory_space<vmem>>, vector<1x16xf32>,
    %298 = vector.extract_strided_slice %251 {offsets = [1, 0], sizes = [1, 128], strides = [1, 1]} : vector<4x128xf32> to vector<1x128xf32>
    %299 = vector.extract_strided_slice %251 {offsets = [2, 0], sizes = [1, 128], strides = [1, 1]} : vector<4x128xf32> to vector<1x128xf32>
    %300 = arith.select %270, %298, %299 : vector<1x128xi1>, vector<1x128xf32>
    %301 = arith.truncf %293 : vector<1x32xf32> to vector<1x32xbf16>
    %cst_85 = arith.constant dense<0.000000e+00> : vector<1x128xf32>
    %302 = tpu.matmul %301, %247, %cst_85 {dimension_numbers = #tpu.dot_dimension_numbers<[1], [0], [0], [1], [0, 0, 1, 1], [], []>} : vector<1x32xbf16>, vector<32x128xbf16>, vector<1x128xf32> -> vector<1x128xf32>
    %303 = arith.addf %300, %302 : vector<1x128xf32>
    %304 = arith.negf %303 : vector<1x128xf32>
    %305 = math.exp %304 : vector<1x128xf32>
    %cst_86 = arith.constant 1.000000e+00 : f32
    %306 = vector.broadcast %cst_86 : f32 to vector<1x128xf32>
    %307 = arith.addf %306, %305 : vector<1x128xf32>
    %308 = arith.divf %306, %307 : vector<1x128xf32>
    %309 = math.tanh %303 : vector<1x128xf32>
    %310 = vector.extract_strided_slice %308 {offsets = [0, 32], sizes = [1, 32], strides = [1, 1]} : vector<1x128xf32> to vector<1x32xf32>
    %311 = arith.mulf %310, %290 : vector<1x32xf32>
    %312 = vector.extract_strided_slice %308 {offsets = [0, 0], sizes = [1, 32], strides = [1, 1]} : vector<1x128xf32> to vector<1x32xf32>
    %313 = vector.extract_strided_slice %309 {offsets = [0, 64], sizes = [1, 32], strides = [1, 1]} : vector<1x128xf32> to vector<1x32xf32>
    %314 = arith.mulf %312, %313 : vector<1x32xf32>
    %315 = arith.addf %311, %314 : vector<1x32xf32>
    %316 = vector.extract_strided_slice %308 {offsets = [0, 96], sizes = [1, 32], strides = [1, 1]} : vector<1x128xf32> to vector<1x32xf32>
    %317 = math.tanh %315 : vector<1x32xf32>
    %318 = arith.mulf %316, %317 : vector<1x32xf32>
    %319 = vector.extract_strided_slice %318 {offsets = [0, 0], sizes = [1, 16], strides = [1, 1]} : vector<1x32xf32> to vector<1x16xf32>
    %c1_87 = arith.constant 1 : index
    %c0_88 = arith.constant 0 : index
    %320 = vector.load %arg20[%c1_87, %c0_88] : memref<4x32xf32, #tpu.memory_space<vmem>>, vector<1x16xf32>
    tpu.vector_store %arg20[%c1_87, %c0_88], %319 {strides = array<i32>} : memref<4x32xf32, #tpu.memory_space<vmem>>, vector<1x16xf32>,
    %321 = vector.extract_strided_slice %318 {offsets = [0, 16], sizes = [1, 16], strides = [1, 1]} : vector<1x32xf32> to vector<1x16xf32>
    %c2_89 = arith.constant 2 : index
    %c16_90 = arith.constant 16 : index
    %322 = vector.load %arg20[%c2_89, %c16_90] : memref<4x32xf32, #tpu.memory_space<vmem>>, vector<1x16xf32>
    tpu.vector_store %arg20[%c2_89, %c16_90], %321 {strides = array<i32>} : memref<4x32xf32, #tpu.memory_space<vmem>>, vector<1x16xf32>,
    %323 = vector.extract_strided_slice %251 {offsets = [2, 0], sizes = [1, 128], strides = [1, 1]} : vector<4x128xf32> to vector<1x128xf32>
    %324 = vector.extract_strided_slice %251 {offsets = [1, 0], sizes = [1, 128], strides = [1, 1]} : vector<4x128xf32> to vector<1x128xf32>
    %325 = arith.select %270, %323, %324 : vector<1x128xi1>, vector<1x128xf32>
    %326 = arith.truncf %318 : vector<1x32xf32> to vector<1x32xbf16>
    %cst_91 = arith.constant dense<0.000000e+00> : vector<1x128xf32>
    %327 = tpu.matmul %326, %247, %cst_91 {dimension_numbers = #tpu.dot_dimension_numbers<[1], [0], [0], [1], [0, 0, 1, 1], [], []>} : vector<1x32xbf16>, vector<32x128xbf16>, vector<1x128xf32> -> vector<1x128xf32>
    %328 = arith.addf %325, %327 : vector<1x128xf32>
    %329 = arith.negf %328 : vector<1x128xf32>
    %330 = math.exp %329 : vector<1x128xf32>
    %cst_92 = arith.constant 1.000000e+00 : f32
    %331 = vector.broadcast %cst_92 : f32 to vector<1x128xf32>
    %332 = arith.addf %331, %330 : vector<1x128xf32>
    %333 = arith.divf %331, %332 : vector<1x128xf32>
    %334 = math.tanh %328 : vector<1x128xf32>
    %335 = vector.extract_strided_slice %333 {offsets = [0, 32], sizes = [1, 32], strides = [1, 1]} : vector<1x128xf32> to vector<1x32xf32>
    %336 = arith.mulf %335, %315 : vector<1x32xf32>
    %337 = vector.extract_strided_slice %333 {offsets = [0, 0], sizes = [1, 32], strides = [1, 1]} : vector<1x128xf32> to vector<1x32xf32>
    %338 = vector.extract_strided_slice %334 {offsets = [0, 64], sizes = [1, 32], strides = [1, 1]} : vector<1x128xf32> to vector<1x32xf32>
    %339 = arith.mulf %337, %338 : vector<1x32xf32>
    %340 = arith.addf %336, %339 : vector<1x32xf32>
    %341 = vector.extract_strided_slice %333 {offsets = [0, 96], sizes = [1, 32], strides = [1, 1]} : vector<1x128xf32> to vector<1x32xf32>
    %342 = math.tanh %340 : vector<1x32xf32>
    %343 = arith.mulf %341, %342 : vector<1x32xf32>
    %344 = vector.extract_strided_slice %343 {offsets = [0, 0], sizes = [1, 16], strides = [1, 1]} : vector<1x32xf32> to vector<1x16xf32>
    %c2_93 = arith.constant 2 : index
    %c0_94 = arith.constant 0 : index
    %345 = vector.load %arg20[%c2_93, %c0_94] : memref<4x32xf32, #tpu.memory_space<vmem>>, vector<1x16xf32>
    tpu.vector_store %arg20[%c2_93, %c0_94], %344 {strides = array<i32>} : memref<4x32xf32, #tpu.memory_space<vmem>>, vector<1x16xf32>,
    %346 = vector.extract_strided_slice %343 {offsets = [0, 16], sizes = [1, 16], strides = [1, 1]} : vector<1x32xf32> to vector<1x16xf32>
    %c1_95 = arith.constant 1 : index
    %c16_96 = arith.constant 16 : index
    %347 = vector.load %arg20[%c1_95, %c16_96] : memref<4x32xf32, #tpu.memory_space<vmem>>, vector<1x16xf32>
    tpu.vector_store %arg20[%c1_95, %c16_96], %346 {strides = array<i32>} : memref<4x32xf32, #tpu.memory_space<vmem>>, vector<1x16xf32>,
    %348 = vector.extract_strided_slice %251 {offsets = [3, 0], sizes = [1, 128], strides = [1, 1]} : vector<4x128xf32> to vector<1x128xf32>
    %349 = vector.extract_strided_slice %251 {offsets = [0, 0], sizes = [1, 128], strides = [1, 1]} : vector<4x128xf32> to vector<1x128xf32>
    %350 = arith.select %270, %348, %349 : vector<1x128xi1>, vector<1x128xf32>
    %351 = arith.truncf %343 : vector<1x32xf32> to vector<1x32xbf16>
    %cst_97 = arith.constant dense<0.000000e+00> : vector<1x128xf32>
    %352 = tpu.matmul %351, %247, %cst_97 {dimension_numbers = #tpu.dot_dimension_numbers<[1], [0], [0], [1], [0, 0, 1, 1], [], []>} : vector<1x32xbf16>, vector<32x128xbf16>, vector<1x128xf32> -> vector<1x128xf32>
    %353 = arith.addf %350, %352 : vector<1x128xf32>
    %354 = arith.negf %353 : vector<1x128xf32>
    %355 = math.exp %354 : vector<1x128xf32>
    %cst_98 = arith.constant 1.000000e+00 : f32
    %356 = vector.broadcast %cst_98 : f32 to vector<1x128xf32>
    %357 = arith.addf %356, %355 : vector<1x128xf32>
    %358 = arith.divf %356, %357 : vector<1x128xf32>
    %359 = math.tanh %353 : vector<1x128xf32>
    %360 = vector.extract_strided_slice %358 {offsets = [0, 32], sizes = [1, 32], strides = [1, 1]} : vector<1x128xf32> to vector<1x32xf32>
    %361 = arith.mulf %360, %340 : vector<1x32xf32>
    %362 = vector.extract_strided_slice %358 {offsets = [0, 0], sizes = [1, 32], strides = [1, 1]} : vector<1x128xf32> to vector<1x32xf32>
    %363 = vector.extract_strided_slice %359 {offsets = [0, 64], sizes = [1, 32], strides = [1, 1]} : vector<1x128xf32> to vector<1x32xf32>
    %364 = arith.mulf %362, %363 : vector<1x32xf32>
    %365 = arith.addf %361, %364 : vector<1x32xf32>
    %366 = vector.extract_strided_slice %358 {offsets = [0, 96], sizes = [1, 32], strides = [1, 1]} : vector<1x128xf32> to vector<1x32xf32>
    %367 = math.tanh %365 : vector<1x32xf32>
    %368 = arith.mulf %366, %367 : vector<1x32xf32>
    %369 = vector.extract_strided_slice %368 {offsets = [0, 0], sizes = [1, 16], strides = [1, 1]} : vector<1x32xf32> to vector<1x16xf32>
    %c3_99 = arith.constant 3 : index
    %c0_100 = arith.constant 0 : index
    %370 = vector.load %arg20[%c3_99, %c0_100] : memref<4x32xf32, #tpu.memory_space<vmem>>, vector<1x16xf32>
    tpu.vector_store %arg20[%c3_99, %c0_100], %369 {strides = array<i32>} : memref<4x32xf32, #tpu.memory_space<vmem>>, vector<1x16xf32>,
    %371 = vector.extract_strided_slice %368 {offsets = [0, 16], sizes = [1, 16], strides = [1, 1]} : vector<1x32xf32> to vector<1x16xf32>
    %c0_101 = arith.constant 0 : index
    %c16_102 = arith.constant 16 : index
    %372 = vector.load %arg20[%c0_101, %c16_102] : memref<4x32xf32, #tpu.memory_space<vmem>>, vector<1x16xf32>
    tpu.vector_store %arg20[%c0_101, %c16_102], %371 {strides = array<i32>} : memref<4x32xf32, #tpu.memory_space<vmem>>, vector<1x16xf32>,
    %c0_103 = arith.constant 0 : index
    %c0_104 = arith.constant 0 : index
    %373 = vector.load %arg20[%c0_103, %c0_104] : memref<4x32xf32, #tpu.memory_space<vmem>>, vector<4x32xf32>
    %374 = arith.truncf %373 : vector<4x32xf32> to vector<4x32xbf16>
    %c0_105 = arith.constant 0 : index
    %c0_106 = arith.constant 0 : index
    %375 = vector.load %arg10[%c0_105, %c0_106] : memref<32x128xbf16, #tpu.memory_space<vmem>>, vector<32x128xbf16>
    %cst_107 = arith.constant dense<0.000000e+00> : vector<4x128xf32>
    %376 = tpu.matmul %374, %375, %cst_107 {dimension_numbers = #tpu.dot_dimension_numbers<[1], [0], [0], [1], [0, 0, 1, 1], [], []>} : vector<4x32xbf16>, vector<32x128xbf16>, vector<4x128xf32> -> vector<4x128xf32>
    %c0_108 = arith.constant 0 : index
    %c0_109 = arith.constant 0 : index
    %377 = vector.load %arg11[%c0_108, %c0_109] : memref<64x16xbf16, #tpu.memory_space<vmem>>, vector<64x16xbf16>
    %cst_110 = arith.constant dense<0.000000e+00> : vector<8x16xf32>
    %378 = tpu.matmul %230, %377, %cst_110 {dimension_numbers = #tpu.dot_dimension_numbers<[1], [0], [0], [1], [0, 0, 1, 1], [], []>} : vector<8x64xbf16>, vector<64x16xbf16>, vector<8x16xf32> -> vector<8x16xf32>
    %379 = vector.extract_strided_slice %378 {offsets = [0, 0], sizes = [1, 16], strides = [1, 1]} : vector<8x16xf32> to vector<1x16xf32>
    %380 = vector.extract_strided_slice %378 {offsets = [1, 0], sizes = [1, 16], strides = [1, 1]} : vector<8x16xf32> to vector<1x16xf32>
    %381 = vector.extract_strided_slice %378 {offsets = [2, 0], sizes = [1, 16], strides = [1, 1]} : vector<8x16xf32> to vector<1x16xf32>
    %382 = vector.extract_strided_slice %378 {offsets = [3, 0], sizes = [1, 16], strides = [1, 1]} : vector<8x16xf32> to vector<1x16xf32>
    %383 = vector.extract_strided_slice %378 {offsets = [4, 0], sizes = [1, 16], strides = [1, 1]} : vector<8x16xf32> to vector<1x16xf32>
    %384 = vector.extract_strided_slice %378 {offsets = [5, 0], sizes = [1, 16], strides = [1, 1]} : vector<8x16xf32> to vector<1x16xf32>
    %385 = vector.extract_strided_slice %378 {offsets = [6, 0], sizes = [1, 16], strides = [1, 1]} : vector<8x16xf32> to vector<1x16xf32>
    %386 = vector.extract_strided_slice %378 {offsets = [7, 0], sizes = [1, 16], strides = [1, 1]} : vector<8x16xf32> to vector<1x16xf32>
    %387 = tpu.concatenate %379, %380, %381, %382, %383, %384, %385, %386 in 1 : vector<1x16xf32>, vector<1x16xf32>, vector<1x16xf32>, vector<1x16xf32>, vector<1x16xf32>, vector<1x16xf32>, vector<1x16xf32>, vector<1x16xf32> -> vector<1x128xf32>
    %388 = vector.broadcast %387 : vector<1x128xf32> to vector<4x128xf32>
    %389 = arith.addf %376, %388 : vector<4x128xf32>
    %390 = math.tanh %389 : vector<4x128xf32>
    %391 = arith.truncf %390 : vector<4x128xf32> to vector<4x128xbf16>
    %c0_111 = arith.constant 0 : index
    %c0_112 = arith.constant 0 : index
    %392 = vector.load %arg12[%c0_111, %c0_112] : memref<128x8xbf16, #tpu.memory_space<vmem>>, vector<128x8xbf16>
    %cst_113 = arith.constant dense<0.000000e+00> : vector<4x8xf32>
    %393 = tpu.matmul %391, %392, %cst_113 {dimension_numbers = #tpu.dot_dimension_numbers<[1], [0], [0], [1], [0, 0, 1, 1], [], []>} : vector<4x128xbf16>, vector<128x8xbf16>, vector<4x8xf32> -> vector<4x8xf32>
    %cst_114 = arith.constant dense<0xFF800000> : vector<4xf32>
    %394 = vector.multi_reduction <maximumf>, %393, %cst_114 [1] : vector<4x8xf32> to vector<4xf32>
    %395 = vector.shape_cast %394 : vector<4xf32> to vector<4x1xf32>
    %396 = vector.broadcast %395 : vector<4x1xf32> to vector<4x8xf32>
    %397 = arith.subf %393, %396 : vector<4x8xf32>
    %398 = math.exp %397 : vector<4x8xf32>
    %cst_115 = arith.constant dense<0.000000e+00> : vector<4xf32>
    %399 = vector.multi_reduction <add>, %398, %cst_115 [1] : vector<4x8xf32> to vector<4xf32>
    %400 = vector.shape_cast %399 : vector<4xf32> to vector<4x1xf32>
    %401 = tpu.reciprocal %400 {approx = true} : vector<4x1xf32> -> vector<4x1xf32>
    %402 = vector.broadcast %401 : vector<4x1xf32> to vector<4x8xf32>
    %403 = arith.mulf %398, %402 : vector<4x8xf32>
    %404 = arith.truncf %403 : vector<4x8xf32> to vector<4x8xbf16>
    %cst_116 = arith.constant dense<0.000000e+00> : vector<4x64xf32>
    %405 = tpu.matmul %404, %230, %cst_116 {dimension_numbers = #tpu.dot_dimension_numbers<[1], [0], [0], [1], [0, 0, 1, 1], [], []>} : vector<4x8xbf16>, vector<8x64xbf16>, vector<4x64xf32> -> vector<4x64xf32>
    %c0_117 = arith.constant 0 : index
    %c0_118 = arith.constant 0 : index
    %406 = vector.load %arg13[%c0_117, %c0_118] : memref<32x32xbf16, #tpu.memory_space<vmem>>, vector<32x32xbf16>
    %cst_119 = arith.constant dense<0.000000e+00> : vector<4x32xf32>
    %407 = tpu.matmul %374, %406, %cst_119 {dimension_numbers = #tpu.dot_dimension_numbers<[1], [0], [0], [1], [0, 0, 1, 1], [], []>} : vector<4x32xbf16>, vector<32x32xbf16>, vector<4x32xf32> -> vector<4x32xf32>
    %408 = arith.truncf %405 : vector<4x64xf32> to vector<4x64xbf16>
    %c0_120 = arith.constant 0 : index
    %c0_121 = arith.constant 0 : index
    %409 = vector.load %arg14[%c0_120, %c0_121] : memref<64x32xbf16, #tpu.memory_space<vmem>>, vector<64x32xbf16>
    %cst_122 = arith.constant dense<0.000000e+00> : vector<4x32xf32>
    %410 = tpu.matmul %408, %409, %cst_122 {dimension_numbers = #tpu.dot_dimension_numbers<[1], [0], [0], [1], [0, 0, 1, 1], [], []>} : vector<4x64xbf16>, vector<64x32xbf16>, vector<4x32xf32> -> vector<4x32xf32>
    %411 = arith.addf %407, %410 : vector<4x32xf32>
    %c0_123 = arith.constant 0 : index
    %c0_124 = arith.constant 0 : index
    %412 = vector.load %arg15[%c0_123, %c0_124] : memref<1x32xf32, #tpu.memory_space<vmem>>, vector<1x32xf32>
    %413 = vector.broadcast %412 : vector<1x32xf32> to vector<4x32xf32>
    %414 = arith.addf %411, %413 : vector<4x32xf32>
    %cst_125 = arith.constant 0.000000e+00 : f32
    %415 = vector.broadcast %cst_125 : f32 to vector<4x32xf32>
    %416 = arith.maximumf %414, %415 : vector<4x32xf32>
    %417 = arith.truncf %416 : vector<4x32xf32> to vector<4x32xbf16>
    %c0_126 = arith.constant 0 : index
    %c0_127 = arith.constant 0 : index
    %418 = vector.load %arg16[%c0_126, %c0_127] : memref<32x4xbf16, #tpu.memory_space<vmem>>, vector<32x4xbf16>
    %cst_128 = arith.constant dense<0.000000e+00> : vector<4x4xf32>
    %419 = tpu.matmul %417, %418, %cst_128 {dimension_numbers = #tpu.dot_dimension_numbers<[1], [0], [0], [1], [0, 0, 1, 1], [], []>} : vector<4x32xbf16>, vector<32x4xbf16>, vector<4x4xf32> -> vector<4x4xf32>
    %c0_129 = arith.constant 0 : index
    %c0_130 = arith.constant 0 : index
    %420 = vector.load %arg17[%c0_129, %c0_130] : memref<1x4xf32, #tpu.memory_space<vmem>>, vector<1x4xf32>
    %421 = vector.broadcast %420 : vector<1x4xf32> to vector<4x4xf32>
    %422 = arith.addf %419, %421 : vector<4x4xf32>
    %c0_131 = arith.constant 0 : index
    %c0_132 = arith.constant 0 : index
    %c0_133 = arith.constant 0 : index
    %423 = vector.load %arg18[%c0_131, %c0_132, %c0_133] : memref<1x4x4xf32, #tpu.memory_space<vmem>>, vector<1x4x4xf32>
    %424 = vector.shape_cast %423 : vector<1x4x4xf32> to vector<4x4xf32>
    %425 = vector.shape_cast %422 : vector<4x4xf32> to vector<1x4x4xf32>
    tpu.vector_store %arg18[%c0_131, %c0_132, %c0_133], %425 {strides = array<i32>} : memref<1x4x4xf32, #tpu.memory_space<vmem>>, vector<1x4x4xf32>,
    return
  }
  func.func @transform_0(%arg0: i32) -> (i32, i32, i32) {
    %c0_i32 = arith.constant 0 : i32
    %c0_i32_0 = arith.constant 0 : i32
    %c0_i32_1 = arith.constant 0 : i32
    return %arg0, %c0_i32, %c0_i32_0 : i32, i32, i32
  }
  func.func @transform_1(%arg0: i32) -> (i32, i32, i32, i32) {
    %c0_i32 = arith.constant 0 : i32
    %c0_i32_0 = arith.constant 0 : i32
    %c0_i32_1 = arith.constant 0 : i32
    %c0_i32_2 = arith.constant 0 : i32
    return %arg0, %c0_i32, %c0_i32_0, %c0_i32_1 : i32, i32, i32, i32
  }
  func.func @transform_2(%arg0: i32) -> (i32, i32, i32) {
    %c0_i32 = arith.constant 0 : i32
    %c0_i32_0 = arith.constant 0 : i32
    %c0_i32_1 = arith.constant 0 : i32
    return %arg0, %c0_i32, %c0_i32_0 : i32, i32, i32
  }
  func.func @transform_3(%arg0: i32) -> (i32, i32) {
    %c0_i32 = arith.constant 0 : i32
    %c0_i32_0 = arith.constant 0 : i32
    %c0_i32_1 = arith.constant 0 : i32
    return %c0_i32, %c0_i32_0 : i32, i32
  }
  func.func @transform_4(%arg0: i32) -> (i32, i32) {
    %c0_i32 = arith.constant 0 : i32
    %c0_i32_0 = arith.constant 0 : i32
    %c0_i32_1 = arith.constant 0 : i32
    return %c0_i32, %c0_i32_0 : i32, i32
  }
  func.func @transform_5(%arg0: i32) -> (i32, i32) {
    %c0_i32 = arith.constant 0 : i32
    %c0_i32_0 = arith.constant 0 : i32
    %c0_i32_1 = arith.constant 0 : i32
    return %c0_i32, %c0_i32_0 : i32, i32
  }
  func.func @transform_6(%arg0: i32) -> (i32, i32) {
    %c0_i32 = arith.constant 0 : i32
    %c0_i32_0 = arith.constant 0 : i32
    %c0_i32_1 = arith.constant 0 : i32
    return %c0_i32, %c0_i32_0 : i32, i32
  }
  func.func @transform_7(%arg0: i32) -> (i32, i32) {
    %c0_i32 = arith.constant 0 : i32
    %c0_i32_0 = arith.constant 0 : i32
    %c0_i32_1 = arith.constant 0 : i32
    return %c0_i32, %c0_i32_0 : i32, i32
  }
  func.func @transform_8(%arg0: i32) -> (i32, i32) {
    %c0_i32 = arith.constant 0 : i32
    %c0_i32_0 = arith.constant 0 : i32
    %c0_i32_1 = arith.constant 0 : i32
    return %c0_i32, %c0_i32_0 : i32, i32
  }
  func.func @transform_9(%arg0: i32) -> (i32, i32) {
    %c0_i32 = arith.constant 0 : i32
    %c0_i32_0 = arith.constant 0 : i32
    %c0_i32_1 = arith.constant 0 : i32
    return %c0_i32, %c0_i32_0 : i32, i32
  }
  func.func @transform_10(%arg0: i32) -> (i32, i32) {
    %c0_i32 = arith.constant 0 : i32
    %c0_i32_0 = arith.constant 0 : i32
    %c0_i32_1 = arith.constant 0 : i32
    return %c0_i32, %c0_i32_0 : i32, i32
  }
  func.func @transform_11(%arg0: i32) -> (i32, i32) {
    %c0_i32 = arith.constant 0 : i32
    %c0_i32_0 = arith.constant 0 : i32
    %c0_i32_1 = arith.constant 0 : i32
    return %c0_i32, %c0_i32_0 : i32, i32
  }
  func.func @transform_12(%arg0: i32) -> (i32, i32) {
    %c0_i32 = arith.constant 0 : i32
    %c0_i32_0 = arith.constant 0 : i32
    %c0_i32_1 = arith.constant 0 : i32
    return %c0_i32, %c0_i32_0 : i32, i32
  }
  func.func @transform_13(%arg0: i32) -> (i32, i32) {
    %c0_i32 = arith.constant 0 : i32
    %c0_i32_0 = arith.constant 0 : i32
    %c0_i32_1 = arith.constant 0 : i32
    return %c0_i32, %c0_i32_0 : i32, i32
  }
  func.func @transform_14(%arg0: i32) -> (i32, i32) {
    %c0_i32 = arith.constant 0 : i32
    %c0_i32_0 = arith.constant 0 : i32
    %c0_i32_1 = arith.constant 0 : i32
    return %c0_i32, %c0_i32_0 : i32, i32
  }
  func.func @transform_15(%arg0: i32) -> (i32, i32) {
    %c0_i32 = arith.constant 0 : i32
    %c0_i32_0 = arith.constant 0 : i32
    %c0_i32_1 = arith.constant 0 : i32
    return %c0_i32, %c0_i32_0 : i32, i32
  }
  func.func @transform_16(%arg0: i32) -> (i32, i32) {
    %c0_i32 = arith.constant 0 : i32
    %c0_i32_0 = arith.constant 0 : i32
    %c0_i32_1 = arith.constant 0 : i32
    return %c0_i32, %c0_i32_0 : i32, i32
  }
  func.func @transform_17(%arg0: i32) -> (i32, i32, i32) {
    %c0_i32 = arith.constant 0 : i32
    %c0_i32_0 = arith.constant 0 : i32
    %c0_i32_1 = arith.constant 0 : i32
    return %arg0, %c0_i32, %c0_i32_0 : i32, i32, i32
  }
}

</mosaic_0001>

<llo_original>
// kernel: tpu_custom_call.1
$region0: #{tpu_custom_call.1}
  #allocation0 [shape = 'u32[]', space=smem, size = 0x4, offset = 0x4, fixed_abs, tag = 'smem constant byte address 0x4 - core index']
  #allocation1 [shape = 'u32[72,128]{1,0:T(1,128)}', space=vmem, size = 0x9000, scoped, tag = 'internal scratch']
  #allocation2 [shape = 'f32[8,64]{1,0:T(8,128)}', space=vmem, size = 0x1000, scoped, tag = 'scratch operand']
  #allocation3 [shape = 'f32[4,32]{1,0:T(4,128)}', space=vmem, size = 0x800, scoped, tag = 'scratch operand']
  %s0 = inlined_call_operand.vmem [shape: bf16[2,8,48], index: 0, kind: input, shape index: {}]
  %s1 = inlined_call_operand.vmem [shape: f32[2,4,3,32], index: 1, kind: input, shape index: {}]
  %s2 = inlined_call_operand.vmem [shape: f32[2,4,3], index: 2, kind: input, shape index: {}]
  %s3 = inlined_call_operand.vmem [shape: bf16[48,256], index: 3, kind: input, shape index: {}]
  %s4 = inlined_call_operand.vmem [shape: bf16[64,256], index: 4, kind: input, shape index: {}]
  %s5 = inlined_call_operand.vmem [shape: f32[1,256], index: 5, kind: input, shape index: {}]
  %s6 = inlined_call_operand.vmem [shape: bf16[32,128], index: 6, kind: input, shape index: {}]
  %s7 = inlined_call_operand.vmem [shape: bf16[32,128], index: 7, kind: input, shape index: {}]
  %s8 = inlined_call_operand.vmem [shape: f32[1,128], index: 8, kind: input, shape index: {}]
  %s9 = inlined_call_operand.vmem [shape: bf16[32,128], index: 9, kind: input, shape index: {}]
  %s10 = inlined_call_operand.vmem [shape: bf16[64,16], index: 10, kind: input, shape index: {}]
  %s11 = inlined_call_operand.vmem [shape: bf16[128,8], index: 11, kind: input, shape index: {}]
  %s12 = inlined_call_operand.vmem [shape: bf16[32,32], index: 12, kind: input, shape index: {}]
  %s13 = inlined_call_operand.vmem [shape: bf16[64,32], index: 13, kind: input, shape index: {}]
  %s14 = inlined_call_operand.vmem [shape: f32[1,32], index: 14, kind: input, shape index: {}]
  %s15 = inlined_call_operand.vmem [shape: bf16[32,4], index: 15, kind: input, shape index: {}]
  %s16 = inlined_call_operand.vmem [shape: f32[1,4], index: 16, kind: input, shape index: {}]
  %s17 = inlined_call_operand.hbm [shape: f32[2,4,4], index: 17, kind: output, shape index: {}]
  %s18 = sld [smem:[#allocation0]]
  $region101: #{tpu_custom_call.1} parent=0
    _
  %s20 = ssub.s32 1, %s18
  %s21 = scalar_select 0, %s20, %s18
  $region1: #{tpu_custom_call.1} parent=0
    #allocation4 [shape = 'u8[4096]{0}', space=vmem, size = 0x1000, scoped, tag = 'output window, operand 0']
    #allocation5 [shape = 's32[2]{0}', space=sflag, size = 0x8, scoped, tag = 'scoped memory for tpu_custom_call.1']
    %22 = vsyncpa [#allocation5], 0
    %s23 = scalar_lea.sflag [#allocation5], 1
    %24 = vsyncpa %s23, 0
    loop: start=0, step=1, limit=4
    $region2: #{tpu_custom_call.1} parent=1 // loop_pre_header
      _
    $region3: #{tpu_custom_call.1} parent=1 // loop_header
      %s26 = sphi 0, %s30
      %p27 = scmp.ge.s32.totalorder %s26, 4
      %s36 = sphi 0, %s38
      %s39 = sphi 0, %s36
      %s40 = sphi 0, %s39
      %s56 = sphi 0, %s40
      %s62 = sphi 0, %s64
      %s65 = sphi 0, %s62
      %s66 = sphi 0, %s65
      %s82 = sphi 0, %s66
      %s88 = sphi 0, %s90
      %s91 = sphi 0, %s88
      %s92 = sphi 0, %s91
      %s108 = sphi 0, %s92
      %s112 = sphi 0, %s112
      %s114 = sphi 0, %s112
      %s115 = sphi 0, %s114
      %s129 = sphi 0, %s115
      %s133 = sphi 0, %s133
      %s135 = sphi 0, %s133
      %s136 = sphi 0, %s135
      %s150 = sphi 0, %s136
      %s154 = sphi 0, %s154
      %s156 = sphi 0, %s154
      %s157 = sphi 0, %s156
      %s171 = sphi 0, %s157
      %s175 = sphi 0, %s175
      %s177 = sphi 0, %s175
      %s178 = sphi 0, %s177
      %s192 = sphi 0, %s178
      %s196 = sphi 0, %s196
      %s198 = sphi 0, %s196
      %s199 = sphi 0, %s198
      %s213 = sphi 0, %s199
      %s217 = sphi 0, %s217
      %s219 = sphi 0, %s217
      %s220 = sphi 0, %s219
      %s234 = sphi 0, %s220
      %s238 = sphi 0, %s238
      %s240 = sphi 0, %s238
      %s241 = sphi 0, %s240
      %s255 = sphi 0, %s241
      %s259 = sphi 0, %s259
      %s261 = sphi 0, %s259
      %s262 = sphi 0, %s261
      %s276 = sphi 0, %s262
      %s280 = sphi 0, %s280
      %s282 = sphi 0, %s280
      %s283 = sphi 0, %s282
      %s297 = sphi 0, %s283
      %s301 = sphi 0, %s301
      %s303 = sphi 0, %s301
      %s304 = sphi 0, %s303
      %s318 = sphi 0, %s304
      %s322 = sphi 0, %s322
      %s324 = sphi 0, %s322
      %s325 = sphi 0, %s324
      %s339 = sphi 0, %s325
      %s343 = sphi 0, %s343
      %s345 = sphi 0, %s343
      %s346 = sphi 0, %s345
      %s360 = sphi 0, %s346
      %s364 = sphi 0, %s364
      %s366 = sphi 0, %s364
      %s367 = sphi 0, %s366
      %s381 = sphi 0, %s367
      %s385 = sphi 0, %s385
      %s387 = sphi 0, %s385
      %s388 = sphi 0, %s387
      %s402 = sphi 0, %s388
      %s408 = sphi 0, %s410
      %s411 = sphi 0, %s408
      %s412 = sphi 0, %s411
      %s428 = sphi 0, %s412
    $region4: #{tpu_custom_call.1} parent=1 // loop_header_branch
      %29 = sbr.rel (%p27) target = $region8
    $region5: #{tpu_custom_call.1} parent=1 // loop_body
      %s31 = ssub.s32 %s26, 1
      %s32 = ssub.s32 %s26, 2
      %s33 = sadd.s32 %s26, 1
      %s34 = ssub.s32 %s26, %s33
      %p35 = scmp.eq.s32.totalorder %s34, 0
      %s37 = sadd.s32 %s36, 1
      %s38 = scalar_select %p35, %s36, %s37
      %p41 = pneg %p35
      %p42 = scmp.eq.s32.totalorder %s26, 1
      %p43 = por %p41, %p42
      %p44 = scmp.ne.s32.totalorder %s36, %s39
      %p45 = scmp.eq.s32.totalorder %s26, 0
      %p46 = por %p44, %p45
      %p47 = scmp.ne.s32.totalorder %s36, %s39
      %p48 = scmp.eq.s32.totalorder %s31, 1
      %p49 = por %p47, %p48
      %p50 = scmp.ne.s32.totalorder %s39, %s40
      %p51 = scmp.eq.s32.totalorder %s31, 0
      %p52 = por %p50, %p51
      %p53 = scmp.ne.s32.totalorder %s39, %s40
      %p54 = scmp.eq.s32.totalorder %s32, 1
      %p55 = por %p53, %p54
      %p57 = scmp.ne.s32.totalorder %s40, %s56
      %p58 = scmp.eq.s32.totalorder %s32, 0
      %p59 = por %p57, %p58
      %s60 = ssub.s32 %s26, %s33
      %p61 = scmp.eq.s32.totalorder %s60, 0
      %s63 = sadd.s32 %s62, 1
      %s64 = scalar_select %p61, %s62, %s63
      %p67 = pneg %p61
      %p68 = scmp.eq.s32.totalorder %s26, 1
      %p69 = por %p67, %p68
      %p70 = scmp.ne.s32.totalorder %s62, %s65
      %p71 = scmp.eq.s32.totalorder %s26, 0
      %p72 = por %p70, %p71
      %p73 = scmp.ne.s32.totalorder %s62, %s65
      %p74 = scmp.eq.s32.totalorder %s31, 1
      %p75 = por %p73, %p74
      %p76 = scmp.ne.s32.totalorder %s65, %s66
      %p77 = scmp.eq.s32.totalorder %s31, 0
      %p78 = por %p76, %p77
      %p79 = scmp.ne.s32.totalorder %s65, %s66
      %p80 = scmp.eq.s32.totalorder %s32, 1
      %p81 = por %p79, %p80
      %p83 = scmp.ne.s32.totalorder %s66, %s82
      %p84 = scmp.eq.s32.totalorder %s32, 0
      %p85 = por %p83, %p84
      %s86 = ssub.s32 %s26, %s33
      %p87 = scmp.eq.s32.totalorder %s86, 0
      %s89 = sadd.s32 %s88, 1
      %s90 = scalar_select %p87, %s88, %s89
      %p93 = pneg %p87
      %p94 = scmp.eq.s32.totalorder %s26, 1
      %p95 = por %p93, %p94
      %p96 = scmp.ne.s32.totalorder %s88, %s91
      %p97 = scmp.eq.s32.totalorder %s26, 0
      %p98 = por %p96, %p97
      %p99 = scmp.ne.s32.totalorder %s88, %s91
      %p100 = scmp.eq.s32.totalorder %s31, 1
      %p101 = por %p99, %p100
      %p102 = scmp.ne.s32.totalorder %s91, %s92
      %p103 = scmp.eq.s32.totalorder %s31, 0
      %p104 = por %p102, %p103
      %p105 = scmp.ne.s32.totalorder %s91, %s92
      %p106 = scmp.eq.s32.totalorder %s32, 1
      %p107 = por %p105, %p106
      %p109 = scmp.ne.s32.totalorder %s92, %s108
      %p110 = scmp.eq.s32.totalorder %s32, 0
      %p111 = por %p109, %p110
      %s113 = sadd.s32 %s112, 1
      %p116 = scmp.eq.s32.totalorder %s26, 1
      %p117 = scmp.ne.s32.totalorder %s112, %s114
      %p118 = scmp.eq.s32.totalorder %s26, 0
      %p119 = por %p117, %p118
      %p120 = scmp.ne.s32.totalorder %s112, %s114
      %p121 = scmp.eq.s32.totalorder %s31, 1
      %p122 = por %p120, %p121
      %p123 = scmp.ne.s32.totalorder %s114, %s115
      %p124 = scmp.eq.s32.totalorder %s31, 0
      %p125 = por %p123, %p124
      %p126 = scmp.ne.s32.totalorder %s114, %s115
      %p127 = scmp.eq.s32.totalorder %s32, 1
      %p128 = por %p126, %p127
      %p130 = scmp.ne.s32.totalorder %s115, %s129
      %p131 = scmp.eq.s32.totalorder %s32, 0
      %p132 = por %p130, %p131
      %s134 = sadd.s32 %s133, 1
      %p137 = scmp.eq.s32.totalorder %s26, 1
      %p138 = scmp.ne.s32.totalorder %s133, %s135
      %p139 = scmp.eq.s32.totalorder %s26, 0
      %p140 = por %p138, %p139
      %p141 = scmp.ne.s32.totalorder %s133, %s135
      %p142 = scmp.eq.s32.totalorder %s31, 1
      %p143 = por %p141, %p142
      %p144 = scmp.ne.s32.totalorder %s135, %s136
      %p145 = scmp.eq.s32.totalorder %s31, 0
      %p146 = por %p144, %p145
      %p147 = scmp.ne.s32.totalorder %s135, %s136
      %p148 = scmp.eq.s32.totalorder %s32, 1
      %p149 = por %p147, %p148
      %p151 = scmp.ne.s32.totalorder %s136, %s150
      %p152 = scmp.eq.s32.totalorder %s32, 0
      %p153 = por %p151, %p152
      %s155 = sadd.s32 %s154, 1
      %p158 = scmp.eq.s32.totalorder %s26, 1
      %p159 = scmp.ne.s32.totalorder %s154, %s156
      %p160 = scmp.eq.s32.totalorder %s26, 0
      %p161 = por %p159, %p160
      %p162 = scmp.ne.s32.totalorder %s154, %s156
      %p163 = scmp.eq.s32.totalorder %s31, 1
      %p164 = por %p162, %p163
      %p165 = scmp.ne.s32.totalorder %s156, %s157
      %p166 = scmp.eq.s32.totalorder %s31, 0
      %p167 = por %p165, %p166
      %p168 = scmp.ne.s32.totalorder %s156, %s157
      %p169 = scmp.eq.s32.totalorder %s32, 1
      %p170 = por %p168, %p169
      %p172 = scmp.ne.s32.totalorder %s157, %s171
      %p173 = scmp.eq.s32.totalorder %s32, 0
      %p174 = por %p172, %p173
      %s176 = sadd.s32 %s175, 1
      %p179 = scmp.eq.s32.totalorder %s26, 1
      %p180 = scmp.ne.s32.totalorder %s175, %s177
      %p181 = scmp.eq.s32.totalorder %s26, 0
      %p182 = por %p180, %p181
      %p183 = scmp.ne.s32.totalorder %s175, %s177
      %p184 = scmp.eq.s32.totalorder %s31, 1
      %p185 = por %p183, %p184
      %p186 = scmp.ne.s32.totalorder %s177, %s178
      %p187 = scmp.eq.s32.totalorder %s31, 0
      %p188 = por %p186, %p187
      %p189 = scmp.ne.s32.totalorder %s177, %s178
      %p190 = scmp.eq.s32.totalorder %s32, 1
      %p191 = por %p189, %p190
      %p193 = scmp.ne.s32.totalorder %s178, %s192
      %p194 = scmp.eq.s32.totalorder %s32, 0
      %p195 = por %p193, %p194
      %s197 = sadd.s32 %s196, 1
      %p200 = scmp.eq.s32.totalorder %s26, 1
      %p201 = scmp.ne.s32.totalorder %s196, %s198
      %p202 = scmp.eq.s32.totalorder %s26, 0
      %p203 = por %p201, %p202
      %p204 = scmp.ne.s32.totalorder %s196, %s198
      %p205 = scmp.eq.s32.totalorder %s31, 1
      %p206 = por %p204, %p205
      %p207 = scmp.ne.s32.totalorder %s198, %s199
      %p208 = scmp.eq.s32.totalorder %s31, 0
      %p209 = por %p207, %p208
      %p210 = scmp.ne.s32.totalorder %s198, %s199
      %p211 = scmp.eq.s32.totalorder %s32, 1
      %p212 = por %p210, %p211
      %p214 = scmp.ne.s32.totalorder %s199, %s213
      %p215 = scmp.eq.s32.totalorder %s32, 0
      %p216 = por %p214, %p215
      %s218 = sadd.s32 %s217, 1
      %p221 = scmp.eq.s32.totalorder %s26, 1
      %p222 = scmp.ne.s32.totalorder %s217, %s219
      %p223 = scmp.eq.s32.totalorder %s26, 0
      %p224 = por %p222, %p223
      %p225 = scmp.ne.s32.totalorder %s217, %s219
      %p226 = scmp.eq.s32.totalorder %s31, 1
      %p227 = por %p225, %p226
      %p228 = scmp.ne.s32.totalorder %s219, %s220
      %p229 = scmp.eq.s32.totalorder %s31, 0
      %p230 = por %p228, %p229
      %p231 = scmp.ne.s32.totalorder %s219, %s220
      %p232 = scmp.eq.s32.totalorder %s32, 1
      %p233 = por %p231, %p232
      %p235 = scmp.ne.s32.totalorder %s220, %s234
      %p236 = scmp.eq.s32.totalorder %s32, 0
      %p237 = por %p235, %p236
      %s239 = sadd.s32 %s238, 1
      %p242 = scmp.eq.s32.totalorder %s26, 1
      %p243 = scmp.ne.s32.totalorder %s238, %s240
      %p244 = scmp.eq.s32.totalorder %s26, 0
      %p245 = por %p243, %p244
      %p246 = scmp.ne.s32.totalorder %s238, %s240
      %p247 = scmp.eq.s32.totalorder %s31, 1
      %p248 = por %p246, %p247
      %p249 = scmp.ne.s32.totalorder %s240, %s241
      %p250 = scmp.eq.s32.totalorder %s31, 0
      %p251 = por %p249, %p250
      %p252 = scmp.ne.s32.totalorder %s240, %s241
      %p253 = scmp.eq.s32.totalorder %s32, 1
      %p254 = por %p252, %p253
      %p256 = scmp.ne.s32.totalorder %s241, %s255
      %p257 = scmp.eq.s32.totalorder %s32, 0
      %p258 = por %p256, %p257
      %s260 = sadd.s32 %s259, 1
      %p263 = scmp.eq.s32.totalorder %s26, 1
      %p264 = scmp.ne.s32.totalorder %s259, %s261
      %p265 = scmp.eq.s32.totalorder %s26, 0
      %p266 = por %p264, %p265
      %p267 = scmp.ne.s32.totalorder %s259, %s261
      %p268 = scmp.eq.s32.totalorder %s31, 1
      %p269 = por %p267, %p268
      %p270 = scmp.ne.s32.totalorder %s261, %s262
      %p271 = scmp.eq.s32.totalorder %s31, 0
      %p272 = por %p270, %p271
      %p273 = scmp.ne.s32.totalorder %s261, %s262
      %p274 = scmp.eq.s32.totalorder %s32, 1
      %p275 = por %p273, %p274
      %p277 = scmp.ne.s32.totalorder %s262, %s276
      %p278 = scmp.eq.s32.totalorder %s32, 0
      %p279 = por %p277, %p278
      %s281 = sadd.s32 %s280, 1
      %p284 = scmp.eq.s32.totalorder %s26, 1
      %p285 = scmp.ne.s32.totalorder %s280, %s282
      %p286 = scmp.eq.s32.totalorder %s26, 0
      %p287 = por %p285, %p286
      %p288 = scmp.ne.s32.totalorder %s280, %s282
      %p289 = scmp.eq.s32.totalorder %s31, 1
      %p290 = por %p288, %p289
      %p291 = scmp.ne.s32.totalorder %s282, %s283
      %p292 = scmp.eq.s32.totalorder %s31, 0
      %p293 = por %p291, %p292
      %p294 = scmp.ne.s32.totalorder %s282, %s283
      %p295 = scmp.eq.s32.totalorder %s32, 1
      %p296 = por %p294, %p295
      %p298 = scmp.ne.s32.totalorder %s283, %s297
      %p299 = scmp.eq.s32.totalorder %s32, 0
      %p300 = por %p298, %p299
      %s302 = sadd.s32 %s301, 1
      %p305 = scmp.eq.s32.totalorder %s26, 1
      %p306 = scmp.ne.s32.totalorder %s301, %s303
      %p307 = scmp.eq.s32.totalorder %s26, 0
      %p308 = por %p306, %p307
      %p309 = scmp.ne.s32.totalorder %s301, %s303
      %p310 = scmp.eq.s32.totalorder %s31, 1
      %p311 = por %p309, %p310
      %p312 = scmp.ne.s32.totalorder %s303, %s304
      %p313 = scmp.eq.s32.totalorder %s31, 0
      %p314 = por %p312, %p313
      %p315 = scmp.ne.s32.totalorder %s303, %s304
      %p316 = scmp.eq.s32.totalorder %s32, 1
      %p317 = por %p315, %p316
      %p319 = scmp.ne.s32.totalorder %s304, %s318
      %p320 = scmp.eq.s32.totalorder %s32, 0
      %p321 = por %p319, %p320
      %s323 = sadd.s32 %s322, 1
      %p326 = scmp.eq.s32.totalorder %s26, 1
      %p327 = scmp.ne.s32.totalorder %s322, %s324
      %p328 = scmp.eq.s32.totalorder %s26, 0
      %p329 = por %p327, %p328
      %p330 = scmp.ne.s32.totalorder %s322, %s324
      %p331 = scmp.eq.s32.totalorder %s31, 1
      %p332 = por %p330, %p331
      %p333 = scmp.ne.s32.totalorder %s324, %s325
      %p334 = scmp.eq.s32.totalorder %s31, 0
      %p335 = por %p333, %p334
      %p336 = scmp.ne.s32.totalorder %s324, %s325
      %p337 = scmp.eq.s32.totalorder %s32, 1
      %p338 = por %p336, %p337
      %p340 = scmp.ne.s32.totalorder %s325, %s339
      %p341 = scmp.eq.s32.totalorder %s32, 0
      %p342 = por %p340, %p341
      %s344 = sadd.s32 %s343, 1
      %p347 = scmp.eq.s32.totalorder %s26, 1
      %p348 = scmp.ne.s32.totalorder %s343, %s345
      %p349 = scmp.eq.s32.totalorder %s26, 0
      %p350 = por %p348, %p349
      %p351 = scmp.ne.s32.totalorder %s343, %s345
      %p352 = scmp.eq.s32.totalorder %s31, 1
      %p353 = por %p351, %p352
      %p354 = scmp.ne.s32.totalorder %s345, %s346
      %p355 = scmp.eq.s32.totalorder %s31, 0
      %p356 = por %p354, %p355
      %p357 = scmp.ne.s32.totalorder %s345, %s346
      %p358 = scmp.eq.s32.totalorder %s32, 1
      %p359 = por %p357, %p358
      %p361 = scmp.ne.s32.totalorder %s346, %s360
      %p362 = scmp.eq.s32.totalorder %s32, 0
      %p363 = por %p361, %p362
      %s365 = sadd.s32 %s364, 1
      %p368 = scmp.eq.s32.totalorder %s26, 1
      %p369 = scmp.ne.s32.totalorder %s364, %s366
      %p370 = scmp.eq.s32.totalorder %s26, 0
      %p371 = por %p369, %p370
      %p372 = scmp.ne.s32.totalorder %s364, %s366
      %p373 = scmp.eq.s32.totalorder %s31, 1
      %p374 = por %p372, %p373
      %p375 = scmp.ne.s32.totalorder %s366, %s367
      %p376 = scmp.eq.s32.totalorder %s31, 0
      %p377 = por %p375, %p376
      %p378 = scmp.ne.s32.totalorder %s366, %s367
      %p379 = scmp.eq.s32.totalorder %s32, 1
      %p380 = por %p378, %p379
      %p382 = scmp.ne.s32.totalorder %s367, %s381
      %p383 = scmp.eq.s32.totalorder %s32, 0
      %p384 = por %p382, %p383
      %s386 = sadd.s32 %s385, 1
      %p389 = scmp.eq.s32.totalorder %s26, 1
      %p390 = scmp.ne.s32.totalorder %s385, %s387
      %p391 = scmp.eq.s32.totalorder %s26, 0
      %p392 = por %p390, %p391
      %p393 = scmp.ne.s32.totalorder %s385, %s387
      %p394 = scmp.eq.s32.totalorder %s31, 1
      %p395 = por %p393, %p394
      %p396 = scmp.ne.s32.totalorder %s387, %s388
      %p397 = scmp.eq.s32.totalorder %s31, 0
      %p398 = por %p396, %p397
      %p399 = scmp.ne.s32.totalorder %s387, %s388
      %p400 = scmp.eq.s32.totalorder %s32, 1
      %p401 = por %p399, %p400
      %p403 = scmp.ne.s32.totalorder %s388, %s402
      %p404 = scmp.eq.s32.totalorder %s32, 0
      %p405 = por %p403, %p404
      %s406 = ssub.s32 %s26, %s33
      %p407 = scmp.eq.s32.totalorder %s406, 0
      %s409 = sadd.s32 %s408, 1
      %s410 = scalar_select %p407, %s408, %s409
      %p413 = pneg %p407
      %p414 = scmp.eq.s32.totalorder %s26, 1
      %p415 = por %p413, %p414
      %p416 = scmp.ne.s32.totalorder %s408, %s411
      %p417 = scmp.eq.s32.totalorder %s26, 0
      %p418 = por %p416, %p417
      %p419 = scmp.ne.s32.totalorder %s408, %s411
      %p420 = scmp.eq.s32.totalorder %s31, 1
      %p421 = por %p419, %p420
      %p422 = scmp.ne.s32.totalorder %s411, %s412
      %p423 = scmp.eq.s32.totalorder %s31, 0
      %p424 = por %p422, %p423
      %p425 = scmp.ne.s32.totalorder %s411, %s412
      %p426 = scmp.eq.s32.totalorder %s32, 1
      %p427 = por %p425, %p426
      %p429 = scmp.ne.s32.totalorder %s412, %s428
      %p430 = scmp.eq.s32.totalorder %s32, 0
      %p431 = por %p429, %p430
      %p432 = scmp.le.s32.totalorder 1, %s26
      %p433 = scmp.lt.s32.totalorder %s26, 3
      %p434 = pnand %p432, %p433
      %p435 = pneg %p434
      // Predicated region
      $region9: #{tpu_custom_call.1} parent=5 // pred_check
        _
      $region10: #{tpu_custom_call.1} parent=5 // pred_check_branch
        %437 = sbr.rel (%p434) target = $region12
      $region11: #{tpu_custom_call.1} parent=5 // pred_region
        %s438 = ssub.s32 %s26, 1
        // Predicated region
        $region13: #{tpu_custom_call.1} parent=11 // pred_check
          %p439 = pneg %p125
        $region14: #{tpu_custom_call.1} parent=11 // pred_check_branch
          %441 = sbr.rel (%p439) target = $region16
        $region15: #{tpu_custom_call.1} parent=11 // pred_region
          _
        $region16: #{tpu_custom_call.1} parent=11 // pred_fallthru
          _
        // Predicated region
        $region17: #{tpu_custom_call.1} parent=11 // pred_check
          %p442 = pneg %p146
        $region18: #{tpu_custom_call.1} parent=11 // pred_check_branch
          %444 = sbr.rel (%p442) target = $region20
        $region19: #{tpu_custom_call.1} parent=11 // pred_region
          _
        $region20: #{tpu_custom_call.1} parent=11 // pred_fallthru
          _
        // Predicated region
        $region21: #{tpu_custom_call.1} parent=11 // pred_check
          %p445 = pneg %p167
        $region22: #{tpu_custom_call.1} parent=11 // pred_check_branch
          %447 = sbr.rel (%p445) target = $region24
        $region23: #{tpu_custom_call.1} parent=11 // pred_region
          _
        $region24: #{tpu_custom_call.1} parent=11 // pred_fallthru
          _
        // Predicated region
        $region25: #{tpu_custom_call.1} parent=11 // pred_check
          %p448 = pneg %p188
        $region26: #{tpu_custom_call.1} parent=11 // pred_check_branch
          %450 = sbr.rel (%p448) target = $region28
        $region27: #{tpu_custom_call.1} parent=11 // pred_region
          _
        $region28: #{tpu_custom_call.1} parent=11 // pred_fallthru
          _
        // Predicated region
        $region29: #{tpu_custom_call.1} parent=11 // pred_check
          %p451 = pneg %p209
        $region30: #{tpu_custom_call.1} parent=11 // pred_check_branch
          %453 = sbr.rel (%p451) target = $region32
        $region31: #{tpu_custom_call.1} parent=11 // pred_region
          _
        $region32: #{tpu_custom_call.1} parent=11 // pred_fallthru
          _
        // Predicated region
        $region33: #{tpu_custom_call.1} parent=11 // pred_check
          %p454 = pneg %p230
        $region34: #{tpu_custom_call.1} parent=11 // pred_check_branch
          %456 = sbr.rel (%p454) target = $region36
        $region35: #{tpu_custom_call.1} parent=11 // pred_region
          _
        $region36: #{tpu_custom_call.1} parent=11 // pred_fallthru
          _
        // Predicated region
        $region37: #{tpu_custom_call.1} parent=11 // pred_check
          %p457 = pneg %p251
        $region38: #{tpu_custom_call.1} parent=11 // pred_check_branch
          %459 = sbr.rel (%p457) target = $region40
        $region39: #{tpu_custom_call.1} parent=11 // pred_region
          _
        $region40: #{tpu_custom_call.1} parent=11 // pred_fallthru
          _
        // Predicated region
        $region41: #{tpu_custom_call.1} parent=11 // pred_check
          %p460 = pneg %p272
        $region42: #{tpu_custom_call.1} parent=11 // pred_check_branch
          %462 = sbr.rel (%p460) target = $region44
        $region43: #{tpu_custom_call.1} parent=11 // pred_region
          _
        $region44: #{tpu_custom_call.1} parent=11 // pred_fallthru
          _
        // Predicated region
        $region45: #{tpu_custom_call.1} parent=11 // pred_check
          %p463 = pneg %p293
        $region46: #{tpu_custom_call.1} parent=11 // pred_check_branch
          %465 = sbr.rel (%p463) target = $region48
        $region47: #{tpu_custom_call.1} parent=11 // pred_region
          _
        $region48: #{tpu_custom_call.1} parent=11 // pred_fallthru
          _
        // Predicated region
        $region49: #{tpu_custom_call.1} parent=11 // pred_check
          %p466 = pneg %p314
        $region50: #{tpu_custom_call.1} parent=11 // pred_check_branch
          %468 = sbr.rel (%p466) target = $region52
        $region51: #{tpu_custom_call.1} parent=11 // pred_region
          _
        $region52: #{tpu_custom_call.1} parent=11 // pred_fallthru
          _
        // Predicated region
        $region53: #{tpu_custom_call.1} parent=11 // pred_check
          %p469 = pneg %p335
        $region54: #{tpu_custom_call.1} parent=11 // pred_check_branch
          %471 = sbr.rel (%p469) target = $region56
        $region55: #{tpu_custom_call.1} parent=11 // pred_region
          _
        $region56: #{tpu_custom_call.1} parent=11 // pred_fallthru
          _
        // Predicated region
        $region57: #{tpu_custom_call.1} parent=11 // pred_check
          %p472 = pneg %p356
        $region58: #{tpu_custom_call.1} parent=11 // pred_check_branch
          %474 = sbr.rel (%p472) target = $region60
        $region59: #{tpu_custom_call.1} parent=11 // pred_region
          _
        $region60: #{tpu_custom_call.1} parent=11 // pred_fallthru
          _
        // Predicated region
        $region61: #{tpu_custom_call.1} parent=11 // pred_check
          %p475 = pneg %p377
        $region62: #{tpu_custom_call.1} parent=11 // pred_check_branch
          %477 = sbr.rel (%p475) target = $region64
        $region63: #{tpu_custom_call.1} parent=11 // pred_region
          _
        $region64: #{tpu_custom_call.1} parent=11 // pred_fallthru
          _
        // Predicated region
        $region65: #{tpu_custom_call.1} parent=11 // pred_check
          %p478 = pneg %p398
        $region66: #{tpu_custom_call.1} parent=11 // pred_check_branch
          %480 = sbr.rel (%p478) target = $region68
        $region67: #{tpu_custom_call.1} parent=11 // pred_region
          _
        $region68: #{tpu_custom_call.1} parent=11 // pred_fallthru
          _
      $region12: #{tpu_custom_call.1} parent=5 // pred_fallthru
        _
      %p481 = scmp.lt.s32.totalorder %s26, 2
      // Predicated region
      $region69: #{tpu_custom_call.1} parent=5 // pred_check
        %p482 = pneg %p481
      $region70: #{tpu_custom_call.1} parent=5 // pred_check_branch
        %484 = sbr.rel (%p482) target = $region72
      $region71: #{tpu_custom_call.1} parent=5 // pred_region
        // Predicated region
        $region73: #{tpu_custom_call.1} parent=71 // pred_check
          %p485 = pneg %p46
        $region74: #{tpu_custom_call.1} parent=71 // pred_check_branch
          %487 = sbr.rel (%p485) target = $region76
        $region75: #{tpu_custom_call.1} parent=71 // pred_region
          %p488 = scmp.lt.s32.totalorder %s26, 1
          %s489 = scalar_select %p488, %s26, 1
          %s490 = smul.addr %s489, 4
          %s491 = scalar_lea.vmem %s0, %s490
        $region76: #{tpu_custom_call.1} parent=71 // pred_fallthru
          _
        // Predicated region
        $region77: #{tpu_custom_call.1} parent=71 // pred_check
          %p492 = pneg %p72
        $region78: #{tpu_custom_call.1} parent=71 // pred_check_branch
          %494 = sbr.rel (%p492) target = $region80
        $region79: #{tpu_custom_call.1} parent=71 // pred_region
          %p495 = scmp.lt.s32.totalorder %s26, 1
          %s496 = scalar_select %p495, %s26, 1
          %s497 = smul.addr %s496, 4
          %s498 = smul.addr %s497, 4
          %s499 = scalar_lea.vmem %s1, %s498
        $region80: #{tpu_custom_call.1} parent=71 // pred_fallthru
          _
        // Predicated region
        $region81: #{tpu_custom_call.1} parent=71 // pred_check
          %p500 = pneg %p98
        $region82: #{tpu_custom_call.1} parent=71 // pred_check_branch
          %502 = sbr.rel (%p500) target = $region84
        $region83: #{tpu_custom_call.1} parent=71 // pred_region
          %p503 = scmp.lt.s32.totalorder %s26, 1
          %s504 = scalar_select %p503, %s26, 1
          %s505 = smul.addr %s504, 4
          %s506 = scalar_lea.vmem %s2, %s505
        $region84: #{tpu_custom_call.1} parent=71 // pred_fallthru
          _
      $region72: #{tpu_custom_call.1} parent=5 // pred_fallthru
        _
      %p507 = scmp.le.s32.totalorder 1, %s26
      %p508 = scmp.lt.s32.totalorder %s26, 3
      %p509 = pnand %p507, %p508
      %p510 = pneg %p509
      // Predicated region
      $region85: #{tpu_custom_call.1} parent=5 // pred_check
        _
      $region86: #{tpu_custom_call.1} parent=5 // pred_check_branch
        %512 = sbr.rel (%p509) target = $region88
      $region87: #{tpu_custom_call.1} parent=5 // pred_region
        %s513 = ssub.s32 %s26, 1
        %p514 = scmp.lt.s32.totalorder %s31, 1
        %s515 = scalar_select %p514, %s31, 1
        %s516 = smul.addr %s515, 4
        %s517 = scalar_lea.vmem %s0, %s516
        %p518 = pneg %p52
        %p519 = pneg %p49
        %p520 = scmp.lt.s32.totalorder %s31, 1
        %s521 = scalar_select %p520, %s31, 1
        %s522 = smul.addr %s521, 4
        %s523 = smul.addr %s522, 4
        %s524 = scalar_lea.vmem %s1, %s523
        %p525 = pneg %p78
        %p526 = pneg %p75
        %p527 = scmp.lt.s32.totalorder %s31, 1
        %s528 = scalar_select %p527, %s31, 1
        %s529 = smul.addr %s528, 4
        %s530 = scalar_lea.vmem %s2, %s529
        %p531 = pneg %p104
        %p532 = pneg %p101
        %p533 = pneg %p125
        %p534 = pneg %p122
        %p535 = pneg %p146
        %p536 = pneg %p143
        %p537 = pneg %p167
        %p538 = pneg %p164
        %p539 = pneg %p188
        %p540 = pneg %p185
        %p541 = pneg %p209
        %p542 = pneg %p206
        %p543 = pneg %p230
        %p544 = pneg %p227
        %p545 = pneg %p251
        %p546 = pneg %p248
        %p547 = pneg %p272
        %p548 = pneg %p269
        %p549 = pneg %p293
        %p550 = pneg %p290
        %p551 = pneg %p314
        %p552 = pneg %p311
        %p553 = pneg %p335
        %p554 = pneg %p332
        %p555 = pneg %p356
        %p556 = pneg %p353
        %p557 = pneg %p377
        %p558 = pneg %p374
        %p559 = pneg %p398
        %p560 = pneg %p395
        %p561 = pneg %p424
        %p562 = pneg %p421
        %s563 = sand.u32 %s411, 1
        %s564 = scalar_lea.sflag [#allocation5], %s563
        %s565 = sand.u32 %s411, 1
        %s566 = smul.addr %s565, 4
        %s567 = scalar_lea.vmem [#allocation4], %s566
        %p568 = scmp.lt.s32.totalorder %s31, 1
        %s569 = scalar_select %p568, %s31, 1
        %s570 = smul.addr %s569, 4
        %s571 = scalar_lea.vmem %s0, %s570
        %p572 = scmp.lt.s32.totalorder %s31, 1
        %s573 = scalar_select %p572, %s31, 1
        %s574 = smul.addr %s573, 4
        %s575 = smul.addr %s574, 4
        %s576 = scalar_lea.vmem %s1, %s575
        %p577 = scmp.lt.s32.totalorder %s31, 1
        %s578 = scalar_select %p577, %s31, 1
        %s579 = smul.addr %s578, 4
        %s580 = scalar_lea.vmem %s2, %s579
        %v582 = vld [vmem:[%s571] sm:$0xf]
        %v583 = vld [vmem:[%s3] sm:$0xff]
        %v584 = vld [vmem:[%s3 + $0x8] sm:$0xff]
        %v585 = vld [vmem:[%s3 + $0x10] sm:$0xff]
        %v586 = vld [vmem:[%s3 + $0x18] sm:$0xff]
        %v587 = vld [vmem:[%s3 + $0x20] sm:$0xff]
        %v588 = vld [vmem:[%s3 + $0x28] sm:$0xff]
        %v589 = vld [vmem:[%s4] sm:$0xff]
        %v590 = vld [vmem:[%s4 + $0x8] sm:$0xff]
        %v591 = vld [vmem:[%s4 + $0x10] sm:$0xff]
        %v592 = vld [vmem:[%s4 + $0x18] sm:$0xff]
        %v593 = vld [vmem:[%s4 + $0x20] sm:$0xff]
        %v594 = vld [vmem:[%s4 + $0x28] sm:$0xff]
        %v595 = vld [vmem:[%s4 + $0x30] sm:$0xff]
        %v596 = vld [vmem:[%s4 + $0x38] sm:$0xff]
        %v597 = vld [vmem:[%s5] sm:$0x3]
        %v599 = vperm.slane %v597, 0
        %v600 = vperm.slane %v597, 1
        %v609 = vunpack.c.l.b16 %v583
        %v610 = vunpack.c.h.b16 %v583
        %v611 = vunpack.c.l.b16 %v584
        %v612 = vunpack.c.h.b16 %v584
        %v613 = vunpack.c.l.b16 %v585
        %v614 = vunpack.c.h.b16 %v585
        %v615 = vunpack.c.l.b16 %v586
        %v616 = vunpack.c.h.b16 %v586
        %v617 = vunpack.c.l.b16 %v587
        %v618 = vunpack.c.h.b16 %v587
        %v619 = vunpack.c.l.b16 %v588
        %v620 = vunpack.c.h.b16 %v588
        %v621 = vpack.c.b16 %v611, %v609
        %v622 = vpack.c.b16 %v612, %v610
        %v623 = vpack.c.b16 %v615, %v613
        %v624 = vpack.c.b16 %v616, %v614
        %v625 = vpack.c.b16 %v619, %v617
        %v626 = vpack.c.b16 %v620, %v618
        %vm633 = vcmask 392192
        %v635 = vsel %vm633, %v582, 0
        %637 = vmatpush.bf16.msra.mxu0 0
        %638 = vmatpush.bf16.msra.mxu0 0
        %639 = vmatpush.bf16.msra.mxu0 0
        %640 = vmatpush.bf16.msra.mxu0 0
        %641 = vmatpush.bf16.msra.mxu0 0
        %642 = vmatpush.bf16.msra.mxu0 %v625
        %643 = vmatpush.bf16.msra.mxu0 %v623
        %644 = vmatpush.bf16.msra.mxu0 %v621
        %645 = vmatmul.bf16.gmra.mxu0 %v635
        %v646 = vpop.f32.mrf.mxu0
        %v647 = vadd.f32 %v599, %v646
        %v648 = vpop.f32.mrf.mxu0
        %649 = vdwg.mxu0
        %650 = vmatpush.bf16.msra.mxu0 0
        %651 = vmatpush.bf16.msra.mxu0 0
        %652 = vmatpush.bf16.msra.mxu0 0
        %653 = vmatpush.bf16.msra.mxu0 0
        %654 = vmatpush.bf16.msra.mxu0 0
        %655 = vmatpush.bf16.msra.mxu0 %v626
        %656 = vmatpush.bf16.msra.mxu0 %v624
        %657 = vmatpush.bf16.msra.mxu0 %v622
        %658 = vmatmul.bf16.gmra.mxu0 %v635
        %v659 = vpop.f32.mrf.mxu0
        %v660 = vadd.f32 %v600, %v659
        %v661 = vpop.f32.mrf.mxu0
        %662 = vdwg.mxu0
        %v663 = vlaneseq
        %v664 = vand.u32 %v663, 127
        %v665 = vadd.s32 %v664, 128
        %vm666 = vcmp.lt.s32.totalorder %v664, 0
        %v667 = vsub.s32 0, %v664
        %v668 = vsel %vm666, %v667, %v664
        %v669 = vshrl.u32 %v668, 6
        %v670 = vand.u32 %v668, 63
        %v671 = vsub.s32 0, %v670
        %v672 = vsel %vm666, %v671, %v670
        %vm673 = vcmp.lt.s32.totalorder %v665, 0
        %v674 = vsub.s32 0, %v665
        %v675 = vsel %vm673, %v674, %v665
        %v676 = vshrl.u32 %v675, 6
        %v677 = vand.u32 %v675, 63
        %v678 = vsub.s32 0, %v677
        %v679 = vsel %vm673, %v678, %v677
        %vm680 = vcmp.ne.s32.totalorder %v672, 0
        %vm681 = vcmp.ne.s32.totalorder %v679, 0
        %vm682 = vcmp.lt.s32.totalorder %v672, 0
        %vm683 = vcmp.lt.s32.totalorder %v679, 0
        %vm684 = vmand %vm682, %vm680
        %vm685 = vmand %vm683, %vm681
        %v686 = vadd.s32 %v672, 64
        %v687 = vadd.s32 %v679, 64
        %v688 = vsel %vm684, %v686, %v672
        %v689 = vsel %vm685, %v687, %v679
        %vm690 = vcmp.lt.s32.totalorder %v688, 32
        %vm691 = vcmp.lt.s32.totalorder %v689, 32
        %v694 = vrot.slane %v647, 7
        %v695 = vrot.slane %v660, 7
        %v698 = vsel %vm690, %v647, %v694
        %v699 = vsel %vm691, %v660, %v695
        %v708 = vunpack.c.l.b16 %v589
        %v709 = vunpack.c.h.b16 %v589
        %v710 = vunpack.c.l.b16 %v590
        %v711 = vunpack.c.h.b16 %v590
        %v712 = vunpack.c.l.b16 %v591
        %v713 = vunpack.c.h.b16 %v591
        %v714 = vunpack.c.l.b16 %v592
        %v715 = vunpack.c.h.b16 %v592
        %v716 = vunpack.c.l.b16 %v593
        %v717 = vunpack.c.h.b16 %v593
        %v718 = vunpack.c.l.b16 %v594
        %v719 = vunpack.c.h.b16 %v594
        %v720 = vunpack.c.l.b16 %v595
        %v721 = vunpack.c.h.b16 %v595
        %v722 = vunpack.c.l.b16 %v596
        %v723 = vunpack.c.h.b16 %v596
        %v724 = vpack.c.b16 %v710, %v708
        %v725 = vpack.c.b16 %v711, %v709
        %v726 = vpack.c.b16 %v714, %v712
        %v727 = vpack.c.b16 %v715, %v713
        %v728 = vpack.c.b16 %v718, %v716
        %v729 = vpack.c.b16 %v719, %v717
        %v730 = vpack.c.b16 %v722, %v720
        %v731 = vpack.c.b16 %v723, %v721
        %vm740 = vcmask 523264
        %v742 = vsel %vm740, 0, 0
        %744 = vmatpush.bf16.msra.mxu0 0
        %745 = vmatpush.bf16.msra.mxu0 0
        %746 = vmatpush.bf16.msra.mxu0 0
        %747 = vmatpush.bf16.msra.mxu0 0
        %748 = vmatpush.bf16.msra.mxu0 %v730
        %749 = vmatpush.bf16.msra.mxu0 %v728
        %750 = vmatpush.bf16.msra.mxu0 %v726
        %751 = vmatpush.bf16.msra.mxu0 %v724
        %752 = vmatmul.bf16.gmra.mxu0 %v742
        %v753 = vpop.f32.mrf.mxu0
        %v754 = vadd.f32 0.0, %v753
        %v755 = vpop.f32.mrf.mxu0
        %756 = vdwg.mxu0
        %757 = vmatpush.bf16.msra.mxu0 0
        %758 = vmatpush.bf16.msra.mxu0 0
        %759 = vmatpush.bf16.msra.mxu0 0
        %760 = vmatpush.bf16.msra.mxu0 0
        %761 = vmatpush.bf16.msra.mxu0 %v731
        %762 = vmatpush.bf16.msra.mxu0 %v729
        %763 = vmatpush.bf16.msra.mxu0 %v727
        %764 = vmatpush.bf16.msra.mxu0 %v725
        %765 = vmatmul.bf16.gmra.mxu0 %v742
        %v766 = vpop.f32.mrf.mxu0
        %v767 = vadd.f32 0.0, %v766
        %v768 = vpop.f32.mrf.mxu0
        %769 = vdwg.mxu0
        %v770 = vadd.f32 %v698, %v754
        %v771 = vadd.f32 %v699, %v767
        %v772 = vxor.u32 %v770, 2147483648
        %v773 = vxor.u32 %v771, 2147483648
        %v774 = vmul.f32 %v772, 1.442695
        %v775 = vpow.pop %v774
        %v776 = vmul.f32 %v773, 1.442695
        %v777 = vpow.pop %v776
        %v778 = vadd.f32 %v775, 1.0
        %v779 = vadd.f32 %v777, 1.0
        %v780 = vrcp.pop %v778
        %v781 = vmul.f32 %v778, %v780
        %v782 = vsub.f32 1.0, %v781
        %v783 = vmul.f32 %v780, %v782
        %v784 = vadd.f32 %v780, %v783
        %vm785 = vweird.f32 %v778
        %vm786 = vweird.f32 %v780
        %vm787 = vmor %vm785, %vm786
        %v788 = vsel %vm787, %v780, %v784
        %v789 = vand.u32 2147483647, %v778
        %vm790 = vcmp.eq.f32.partialorder %v789, 8.507059e+37
        %v791 = vand.u32 %v778, 2147483648
        %v792 = vor.u32 1.1754944e-38, %v791
        %v793 = vsel %vm790, %v792, %v788
        %v794 = vmul.f32 1.0, %v793
        %v795 = vrcp.pop %v779
        %v796 = vmul.f32 %v779, %v795
        %v797 = vsub.f32 1.0, %v796
        %v798 = vmul.f32 %v795, %v797
        %v799 = vadd.f32 %v795, %v798
        %vm800 = vweird.f32 %v779
        %vm801 = vweird.f32 %v795
        %vm802 = vmor %vm800, %vm801
        %v803 = vsel %vm802, %v795, %v799
        %v804 = vand.u32 2147483647, %v779
        %vm805 = vcmp.eq.f32.partialorder %v804, 8.507059e+37
        %v806 = vand.u32 %v779, 2147483648
        %v807 = vor.u32 1.1754944e-38, %v806
        %v808 = vsel %vm805, %v807, %v803
        %v809 = vmul.f32 1.0, %v808
        %v810 = vtanh.pop %v771
        %v811 = vmul.f32 %v794, 0.0
        %v812 = vmul.f32 %v794, %v810
        %814 = vrot.lane.b32.xlu0 %v812, 64
        %v815 = vpop.permute.xlu0 %814
        %v817 = vadd.f32 %v811, %v815
        %v818 = vtanh.pop %v817
        %v819 = vmul.f32 %v809, %v818
        %821 = vrot.lane.b32.xlu0 %v819, 64
        %v822 = vpop.permute.xlu0 %821
        %vm824 = vcmask 253952
        %825 = vst.msk [vmem:[#allocation2] sm:$0x1] %vm824, %v822
        %vm826 = vcmask 516352
        %827 = vst.msk [vmem:[#allocation2 + $0x7] sm:$0x1] %vm826, %v822
        %v828 = vrot.slane %v647, 5
        %v829 = vrot.slane %v660, 5
        %v832 = vsel %vm690, %v647, %v828
        %v833 = vsel %vm691, %v660, %v829
        %v834 = vpack.c.bf16 %v819, %v819
        %836 = vrot.lane.b32.xlu0 %v834, 64
        %v837 = vpop.permute.xlu0 %836
        %v839 = vsel %vm740, %v837, 0
        %841 = vmatpush.bf16.msra.mxu0 0
        %842 = vmatpush.bf16.msra.mxu0 0
        %843 = vmatpush.bf16.msra.mxu0 0
        %844 = vmatpush.bf16.msra.mxu0 0
        %845 = vmatpush.bf16.msra.mxu0 %v730
        %846 = vmatpush.bf16.msra.mxu0 %v728
        %847 = vmatpush.bf16.msra.mxu0 %v726
        %848 = vmatpush.bf16.msra.mxu0 %v724
        %849 = vmatmul.bf16.gmra.mxu0 %v839
        %v850 = vpop.f32.mrf.mxu0
        %v851 = vadd.f32 0.0, %v850
        %v852 = vpop.f32.mrf.mxu0
        %853 = vdwg.mxu0
        %854 = vmatpush.bf16.msra.mxu0 0
        %855 = vmatpush.bf16.msra.mxu0 0
        %856 = vmatpush.bf16.msra.mxu0 0
        %857 = vmatpush.bf16.msra.mxu0 0
        %858 = vmatpush.bf16.msra.mxu0 %v731
        %859 = vmatpush.bf16.msra.mxu0 %v729
        %860 = vmatpush.bf16.msra.mxu0 %v727
        %861 = vmatpush.bf16.msra.mxu0 %v725
        %862 = vmatmul.bf16.gmra.mxu0 %v839
        %v863 = vpop.f32.mrf.mxu0
        %v864 = vadd.f32 0.0, %v863
        %v865 = vpop.f32.mrf.mxu0
        %866 = vdwg.mxu0
        %v869 = vrot.slane %v851, 7
        %v870 = vrot.slane %v864, 7
        %v873 = vadd.f32 %v832, %v869
        %v874 = vadd.f32 %v833, %v870
        %v875 = vxor.u32 %v873, 2147483648
        %v876 = vxor.u32 %v874, 2147483648
        %v877 = vmul.f32 %v875, 1.442695
        %v878 = vpow.pop %v877
        %v879 = vmul.f32 %v876, 1.442695
        %v880 = vpow.pop %v879
        %v881 = vadd.f32 %v878, 1.0
        %v882 = vadd.f32 %v880, 1.0
        %v883 = vrcp.pop %v881
        %v884 = vmul.f32 %v881, %v883
        %v885 = vsub.f32 1.0, %v884
        %v886 = vmul.f32 %v883, %v885
        %v887 = vadd.f32 %v883, %v886
        %vm888 = vweird.f32 %v881
        %vm889 = vweird.f32 %v883
        %vm890 = vmor %vm888, %vm889
        %v891 = vsel %vm890, %v883, %v887
        %v892 = vand.u32 2147483647, %v881
        %vm893 = vcmp.eq.f32.partialorder %v892, 8.507059e+37
        %v894 = vand.u32 %v881, 2147483648
        %v895 = vor.u32 1.1754944e-38, %v894
        %v896 = vsel %vm893, %v895, %v891
        %v897 = vmul.f32 1.0, %v896
        %v898 = vrcp.pop %v882
        %v899 = vmul.f32 %v882, %v898
        %v900 = vsub.f32 1.0, %v899
        %v901 = vmul.f32 %v898, %v900
        %v902 = vadd.f32 %v898, %v901
        %vm903 = vweird.f32 %v882
        %vm904 = vweird.f32 %v898
        %vm905 = vmor %vm903, %vm904
        %v906 = vsel %vm905, %v898, %v902
        %v907 = vand.u32 2147483647, %v882
        %vm908 = vcmp.eq.f32.partialorder %v907, 8.507059e+37
        %v909 = vand.u32 %v882, 2147483648
        %v910 = vor.u32 1.1754944e-38, %v909
        %v911 = vsel %vm908, %v910, %v906
        %v912 = vmul.f32 1.0, %v911
        %v913 = vtanh.pop %v874
        %v915 = vrot.slane %v817, 7
        %v917 = vmul.f32 %v897, %v915
        %v918 = vmul.f32 %v897, %v913
        %920 = vrot.lane.b32.xlu0 %v918, 64
        %v921 = vpop.permute.xlu0 %920
        %v923 = vadd.f32 %v917, %v921
        %v924 = vtanh.pop %v923
        %v925 = vmul.f32 %v912, %v924
        %927 = vrot.lane.b32.xlu0 %v925, 64
        %v928 = vpop.permute.xlu0 %927
        %vm930 = vcmask 254977
        %931 = vst.msk [vmem:[#allocation2] sm:$0x2] %vm930, %v928
        %vm932 = vcmask 517377
        %933 = vst.msk [vmem:[#allocation2 + $0x5] sm:$0x2] %vm932, %v928
        %v934 = vrot.slane %v647, 3
        %v935 = vrot.slane %v660, 3
        %v938 = vsel %vm690, %v647, %v934
        %v939 = vsel %vm691, %v660, %v935
        %v940 = vpack.c.bf16 %v925, %v925
        %v942 = vshrl.u32 %v940, 16
        %944 = vrot.lane.b32.xlu0 %v942, 64
        %v945 = vpop.permute.xlu0 %944
        %v947 = vsel %vm740, %v945, 0
        %949 = vmatpush.bf16.msra.mxu0 0
        %950 = vmatpush.bf16.msra.mxu0 0
        %951 = vmatpush.bf16.msra.mxu0 0
        %952 = vmatpush.bf16.msra.mxu0 0
        %953 = vmatpush.bf16.msra.mxu0 %v730
        %954 = vmatpush.bf16.msra.mxu0 %v728
        %955 = vmatpush.bf16.msra.mxu0 %v726
        %956 = vmatpush.bf16.msra.mxu0 %v724
        %957 = vmatmul.bf16.gmra.mxu0 %v947
        %v958 = vpop.f32.mrf.mxu0
        %v959 = vadd.f32 0.0, %v958
        %v960 = vpop.f32.mrf.mxu0
        %961 = vdwg.mxu0
        %962 = vmatpush.bf16.msra.mxu0 0
        %963 = vmatpush.bf16.msra.mxu0 0
        %964 = vmatpush.bf16.msra.mxu0 0
        %965 = vmatpush.bf16.msra.mxu0 0
        %966 = vmatpush.bf16.msra.mxu0 %v731
        %967 = vmatpush.bf16.msra.mxu0 %v729
        %968 = vmatpush.bf16.msra.mxu0 %v727
        %969 = vmatpush.bf16.msra.mxu0 %v725
        %970 = vmatmul.bf16.gmra.mxu0 %v947
        %v971 = vpop.f32.mrf.mxu0
        %v972 = vadd.f32 0.0, %v971
        %v973 = vpop.f32.mrf.mxu0
        %974 = vdwg.mxu0
        %v977 = vrot.slane %v959, 6
        %v978 = vrot.slane %v972, 6
        %v981 = vadd.f32 %v938, %v977
        %v982 = vadd.f32 %v939, %v978
        %v983 = vxor.u32 %v981, 2147483648
        %v984 = vxor.u32 %v982, 2147483648
        %v985 = vmul.f32 %v983, 1.442695
        %v986 = vpow.pop %v985
        %v987 = vmul.f32 %v984, 1.442695
        %v988 = vpow.pop %v987
        %v989 = vadd.f32 %v986, 1.0
        %v990 = vadd.f32 %v988, 1.0
        %v991 = vrcp.pop %v989
        %v992 = vmul.f32 %v989, %v991
        %v993 = vsub.f32 1.0, %v992
        %v994 = vmul.f32 %v991, %v993
        %v995 = vadd.f32 %v991, %v994
        %vm996 = vweird.f32 %v989
        %vm997 = vweird.f32 %v991
        %vm998 = vmor %vm996, %vm997
        %v999 = vsel %vm998, %v991, %v995
        %v1000 = vand.u32 2147483647, %v989
        %vm1001 = vcmp.eq.f32.partialorder %v1000, 8.507059e+37
        %v1002 = vand.u32 %v989, 2147483648
        %v1003 = vor.u32 1.1754944e-38, %v1002
        %v1004 = vsel %vm1001, %v1003, %v999
        %v1005 = vmul.f32 1.0, %v1004
        %v1006 = vrcp.pop %v990
        %v1007 = vmul.f32 %v990, %v1006
        %v1008 = vsub.f32 1.0, %v1007
        %v1009 = vmul.f32 %v1006, %v1008
        %v1010 = vadd.f32 %v1006, %v1009
        %vm1011 = vweird.f32 %v990
        %vm1012 = vweird.f32 %v1006
        %vm1013 = vmor %vm1011, %vm1012
        %v1014 = vsel %vm1013, %v1006, %v1010
        %v1015 = vand.u32 2147483647, %v990
        %vm1016 = vcmp.eq.f32.partialorder %v1015, 8.507059e+37
        %v1017 = vand.u32 %v990, 2147483648
        %v1018 = vor.u32 1.1754944e-38, %v1017
        %v1019 = vsel %vm1016, %v1018, %v1014
        %v1020 = vmul.f32 1.0, %v1019
        %v1021 = vtanh.pop %v982
        %v1023 = vrot.slane %v923, 7
        %v1025 = vmul.f32 %v1005, %v1023
        %v1026 = vmul.f32 %v1005, %v1021
        %1028 = vrot.lane.b32.xlu0 %v1026, 64
        %v1029 = vpop.permute.xlu0 %1028
        %v1031 = vadd.f32 %v1025, %v1029
        %v1032 = vtanh.pop %v1031
        %v1033 = vmul.f32 %v1020, %v1032
        %1035 = vrot.lane.b32.xlu0 %v1033, 64
        %v1036 = vpop.permute.xlu0 %1035
        %vm1038 = vcmask 256002
        %1039 = vst.msk [vmem:[#allocation2] sm:$0x4] %vm1038, %v1036
        %vm1040 = vcmask 518402
        %1041 = vst.msk [vmem:[#allocation2 + $0x3] sm:$0x4] %vm1040, %v1036
        %v1042 = vrot.slane %v647, 1
        %v1043 = vrot.slane %v660, 1
        %v1046 = vsel %vm690, %v647, %v1042
        %v1047 = vsel %vm691, %v660, %v1043
        %v1048 = vpack.c.bf16 %v1033, %v1033
        %v1050 = vrot.slane %v1048, 1
        %1051 = vrot.lane.b32.xlu0 %v1050, 64
        %v1052 = vpop.permute.xlu0 %1051
        %v1054 = vsel %vm740, %v1052, 0
        %1056 = vmatpush.bf16.msra.mxu0 0
        %1057 = vmatpush.bf16.msra.mxu0 0
        %1058 = vmatpush.bf16.msra.mxu0 0
        %1059 = vmatpush.bf16.msra.mxu0 0
        %1060 = vmatpush.bf16.msra.mxu0 %v730
        %1061 = vmatpush.bf16.msra.mxu0 %v728
        %1062 = vmatpush.bf16.msra.mxu0 %v726
        %1063 = vmatpush.bf16.msra.mxu0 %v724
        %1064 = vmatmul.bf16.gmra.mxu0 %v1054
        %v1065 = vpop.f32.mrf.mxu0
        %v1066 = vadd.f32 0.0, %v1065
        %v1067 = vpop.f32.mrf.mxu0
        %1068 = vdwg.mxu0
        %1069 = vmatpush.bf16.msra.mxu0 0
        %1070 = vmatpush.bf16.msra.mxu0 0
        %1071 = vmatpush.bf16.msra.mxu0 0
        %1072 = vmatpush.bf16.msra.mxu0 0
        %1073 = vmatpush.bf16.msra.mxu0 %v731
        %1074 = vmatpush.bf16.msra.mxu0 %v729
        %1075 = vmatpush.bf16.msra.mxu0 %v727
        %1076 = vmatpush.bf16.msra.mxu0 %v725
        %1077 = vmatmul.bf16.gmra.mxu0 %v1054
        %v1078 = vpop.f32.mrf.mxu0
        %v1079 = vadd.f32 0.0, %v1078
        %v1080 = vpop.f32.mrf.mxu0
        %1081 = vdwg.mxu0
        %v1084 = vrot.slane %v1066, 5
        %v1085 = vrot.slane %v1079, 5
        %v1088 = vadd.f32 %v1046, %v1084
        %v1089 = vadd.f32 %v1047, %v1085
        %v1090 = vxor.u32 %v1088, 2147483648
        %v1091 = vxor.u32 %v1089, 2147483648
        %v1092 = vmul.f32 %v1090, 1.442695
        %v1093 = vpow.pop %v1092
        %v1094 = vmul.f32 %v1091, 1.442695
        %v1095 = vpow.pop %v1094
        %v1096 = vadd.f32 %v1093, 1.0
        %v1097 = vadd.f32 %v1095, 1.0
        %v1098 = vrcp.pop %v1096
        %v1099 = vmul.f32 %v1096, %v1098
        %v1100 = vsub.f32 1.0, %v1099
        %v1101 = vmul.f32 %v1098, %v1100
        %v1102 = vadd.f32 %v1098, %v1101
        %vm1103 = vweird.f32 %v1096
        %vm1104 = vweird.f32 %v1098
        %vm1105 = vmor %vm1103, %vm1104
        %v1106 = vsel %vm1105, %v1098, %v1102
        %v1107 = vand.u32 2147483647, %v1096
        %vm1108 = vcmp.eq.f32.partialorder %v1107, 8.507059e+37
        %v1109 = vand.u32 %v1096, 2147483648
        %v1110 = vor.u32 1.1754944e-38, %v1109
        %v1111 = vsel %vm1108, %v1110, %v1106
        %v1112 = vmul.f32 1.0, %v1111
        %v1113 = vrcp.pop %v1097
        %v1114 = vmul.f32 %v1097, %v1113
        %v1115 = vsub.f32 1.0, %v1114
        %v1116 = vmul.f32 %v1113, %v1115
        %v1117 = vadd.f32 %v1113, %v1116
        %vm1118 = vweird.f32 %v1097
        %vm1119 = vweird.f32 %v1113
        %vm1120 = vmor %vm1118, %vm1119
        %v1121 = vsel %vm1120, %v1113, %v1117
        %v1122 = vand.u32 2147483647, %v1097
        %vm1123 = vcmp.eq.f32.partialorder %v1122, 8.507059e+37
        %v1124 = vand.u32 %v1097, 2147483648
        %v1125 = vor.u32 1.1754944e-38, %v1124
        %v1126 = vsel %vm1123, %v1125, %v1121
        %v1127 = vmul.f32 1.0, %v1126
        %v1128 = vtanh.pop %v1089
        %v1130 = vrot.slane %v1031, 7
        %v1132 = vmul.f32 %v1112, %v1130
        %v1133 = vmul.f32 %v1112, %v1128
        %1135 = vrot.lane.b32.xlu0 %v1133, 64
        %v1136 = vpop.permute.xlu0 %1135
        %v1138 = vadd.f32 %v1132, %v1136
        %v1139 = vtanh.pop %v1138
        %v1140 = vmul.f32 %v1127, %v1139
        %1142 = vrot.lane.b32.xlu0 %v1140, 64
        %v1143 = vpop.permute.xlu0 %1142
        %vm1145 = vcmask 257027
        %1146 = vst.msk [vmem:[#allocation2] sm:$0x8] %vm1145, %v1143
        %vm1147 = vcmask 519427
        %1148 = vst.msk [vmem:[#allocation2 + $0x1] sm:$0x8] %vm1147, %v1143
        %v1149 = vpack.c.bf16 %v1140, %v1140
        %v1151 = vshrl.u32 %v1149, 16
        %v1153 = vrot.slane %v1151, 1
        %1154 = vrot.lane.b32.xlu0 %v1153, 64
        %v1155 = vpop.permute.xlu0 %1154
        %v1157 = vsel %vm740, %v1155, 0
        %1159 = vmatpush.bf16.msra.mxu0 0
        %1160 = vmatpush.bf16.msra.mxu0 0
        %1161 = vmatpush.bf16.msra.mxu0 0
        %1162 = vmatpush.bf16.msra.mxu0 0
        %1163 = vmatpush.bf16.msra.mxu0 %v730
        %1164 = vmatpush.bf16.msra.mxu0 %v728
        %1165 = vmatpush.bf16.msra.mxu0 %v726
        %1166 = vmatpush.bf16.msra.mxu0 %v724
        %1167 = vmatmul.bf16.gmra.mxu0 %v1157
        %v1168 = vpop.f32.mrf.mxu0
        %v1169 = vadd.f32 0.0, %v1168
        %v1170 = vpop.f32.mrf.mxu0
        %1171 = vdwg.mxu0
        %1172 = vmatpush.bf16.msra.mxu0 0
        %1173 = vmatpush.bf16.msra.mxu0 0
        %1174 = vmatpush.bf16.msra.mxu0 0
        %1175 = vmatpush.bf16.msra.mxu0 0
        %1176 = vmatpush.bf16.msra.mxu0 %v731
        %1177 = vmatpush.bf16.msra.mxu0 %v729
        %1178 = vmatpush.bf16.msra.mxu0 %v727
        %1179 = vmatpush.bf16.msra.mxu0 %v725
        %1180 = vmatmul.bf16.gmra.mxu0 %v1157
        %v1181 = vpop.f32.mrf.mxu0
        %v1182 = vadd.f32 0.0, %v1181
        %v1183 = vpop.f32.mrf.mxu0
        %1184 = vdwg.mxu0
        %v1187 = vrot.slane %v1169, 4
        %v1188 = vrot.slane %v1182, 4
        %v1191 = vadd.f32 %v698, %v1187
        %v1192 = vadd.f32 %v699, %v1188
        %v1193 = vxor.u32 %v1191, 2147483648
        %v1194 = vxor.u32 %v1192, 2147483648
        %v1195 = vmul.f32 %v1193, 1.442695
        %v1196 = vpow.pop %v1195
        %v1197 = vmul.f32 %v1194, 1.442695
        %v1198 = vpow.pop %v1197
        %v1199 = vadd.f32 %v1196, 1.0
        %v1200 = vadd.f32 %v1198, 1.0
        %v1201 = vrcp.pop %v1199
        %v1202 = vmul.f32 %v1199, %v1201
        %v1203 = vsub.f32 1.0, %v1202
        %v1204 = vmul.f32 %v1201, %v1203
        %v1205 = vadd.f32 %v1201, %v1204
        %vm1206 = vweird.f32 %v1199
        %vm1207 = vweird.f32 %v1201
        %vm1208 = vmor %vm1206, %vm1207
        %v1209 = vsel %vm1208, %v1201, %v1205
        %v1210 = vand.u32 2147483647, %v1199
        %vm1211 = vcmp.eq.f32.partialorder %v1210, 8.507059e+37
        %v1212 = vand.u32 %v1199, 2147483648
        %v1213 = vor.u32 1.1754944e-38, %v1212
        %v1214 = vsel %vm1211, %v1213, %v1209
        %v1215 = vmul.f32 1.0, %v1214
        %v1216 = vrcp.pop %v1200
        %v1217 = vmul.f32 %v1200, %v1216
        %v1218 = vsub.f32 1.0, %v1217
        %v1219 = vmul.f32 %v1216, %v1218
        %v1220 = vadd.f32 %v1216, %v1219
        %vm1221 = vweird.f32 %v1200
        %vm1222 = vweird.f32 %v1216
        %vm1223 = vmor %vm1221, %vm1222
        %v1224 = vsel %vm1223, %v1216, %v1220
        %v1225 = vand.u32 2147483647, %v1200
        %vm1226 = vcmp.eq.f32.partialorder %v1225, 8.507059e+37
        %v1227 = vand.u32 %v1200, 2147483648
        %v1228 = vor.u32 1.1754944e-38, %v1227
        %v1229 = vsel %vm1226, %v1228, %v1224
        %v1230 = vmul.f32 1.0, %v1229
        %v1231 = vtanh.pop %v1192
        %v1233 = vrot.slane %v1138, 7
        %v1235 = vmul.f32 %v1215, %v1233
        %v1236 = vmul.f32 %v1215, %v1231
        %1238 = vrot.lane.b32.xlu0 %v1236, 64
        %v1239 = vpop.permute.xlu0 %1238
        %v1241 = vadd.f32 %v1235, %v1239
        %v1242 = vtanh.pop %v1241
        %v1243 = vmul.f32 %v1230, %v1242
        %1245 = vrot.lane.b32.xlu0 %v1243, 64
        %v1246 = vpop.permute.xlu0 %1245
        %vm1248 = vcmask 258052
        %1249 = vst.msk [vmem:[#allocation2] sm:$0x10] %vm1248, %v1246
        %vm1250 = vcmask 520452
        %1251 = vst.msk [vmem:[#allocation2 - $0x1] sm:$0x10] %vm1250, %v1246
        %v1252 = vpack.c.bf16 %v1243, %v1243
        %v1254 = vrot.slane %v1252, 2
        %1255 = vrot.lane.b32.xlu0 %v1254, 64
        %v1256 = vpop.permute.xlu0 %1255
        %v1258 = vsel %vm740, %v1256, 0
        %1260 = vmatpush.bf16.msra.mxu0 0
        %1261 = vmatpush.bf16.msra.mxu0 0
        %1262 = vmatpush.bf16.msra.mxu0 0
        %1263 = vmatpush.bf16.msra.mxu0 0
        %1264 = vmatpush.bf16.msra.mxu0 %v730
        %1265 = vmatpush.bf16.msra.mxu0 %v728
        %1266 = vmatpush.bf16.msra.mxu0 %v726
        %1267 = vmatpush.bf16.msra.mxu0 %v724
        %1268 = vmatmul.bf16.gmra.mxu0 %v1258
        %v1269 = vpop.f32.mrf.mxu0
        %v1270 = vadd.f32 0.0, %v1269
        %v1271 = vpop.f32.mrf.mxu0
        %1272 = vdwg.mxu0
        %1273 = vmatpush.bf16.msra.mxu0 0
        %1274 = vmatpush.bf16.msra.mxu0 0
        %1275 = vmatpush.bf16.msra.mxu0 0
        %1276 = vmatpush.bf16.msra.mxu0 0
        %1277 = vmatpush.bf16.msra.mxu0 %v731
        %1278 = vmatpush.bf16.msra.mxu0 %v729
        %1279 = vmatpush.bf16.msra.mxu0 %v727
        %1280 = vmatpush.bf16.msra.mxu0 %v725
        %1281 = vmatmul.bf16.gmra.mxu0 %v1258
        %v1282 = vpop.f32.mrf.mxu0
        %v1283 = vadd.f32 0.0, %v1282
        %v1284 = vpop.f32.mrf.mxu0
        %1285 = vdwg.mxu0
        %v1288 = vrot.slane %v1270, 3
        %v1289 = vrot.slane %v1283, 3
        %v1292 = vadd.f32 %v832, %v1288
        %v1293 = vadd.f32 %v833, %v1289
        %v1294 = vxor.u32 %v1292, 2147483648
        %v1295 = vxor.u32 %v1293, 2147483648
        %v1296 = vmul.f32 %v1294, 1.442695
        %v1297 = vpow.pop %v1296
        %v1298 = vmul.f32 %v1295, 1.442695
        %v1299 = vpow.pop %v1298
        %v1300 = vadd.f32 %v1297, 1.0
        %v1301 = vadd.f32 %v1299, 1.0
        %v1302 = vrcp.pop %v1300
        %v1303 = vmul.f32 %v1300, %v1302
        %v1304 = vsub.f32 1.0, %v1303
        %v1305 = vmul.f32 %v1302, %v1304
        %v1306 = vadd.f32 %v1302, %v1305
        %vm1307 = vweird.f32 %v1300
        %vm1308 = vweird.f32 %v1302
        %vm1309 = vmor %vm1307, %vm1308
        %v1310 = vsel %vm1309, %v1302, %v1306
        %v1311 = vand.u32 2147483647, %v1300
        %vm1312 = vcmp.eq.f32.partialorder %v1311, 8.507059e+37
        %v1313 = vand.u32 %v1300, 2147483648
        %v1314 = vor.u32 1.1754944e-38, %v1313
        %v1315 = vsel %vm1312, %v1314, %v1310
        %v1316 = vmul.f32 1.0, %v1315
        %v1317 = vrcp.pop %v1301
        %v1318 = vmul.f32 %v1301, %v1317
        %v1319 = vsub.f32 1.0, %v1318
        %v1320 = vmul.f32 %v1317, %v1319
        %v1321 = vadd.f32 %v1317, %v1320
        %vm1322 = vweird.f32 %v1301
        %vm1323 = vweird.f32 %v1317
        %vm1324 = vmor %vm1322, %vm1323
        %v1325 = vsel %vm1324, %v1317, %v1321
        %v1326 = vand.u32 2147483647, %v1301
        %vm1327 = vcmp.eq.f32.partialorder %v1326, 8.507059e+37
        %v1328 = vand.u32 %v1301, 2147483648
        %v1329 = vor.u32 1.1754944e-38, %v1328
        %v1330 = vsel %vm1327, %v1329, %v1325
        %v1331 = vmul.f32 1.0, %v1330
        %v1332 = vtanh.pop %v1293
        %v1334 = vrot.slane %v1241, 7
        %v1336 = vmul.f32 %v1316, %v1334
        %v1337 = vmul.f32 %v1316, %v1332
        %1339 = vrot.lane.b32.xlu0 %v1337, 64
        %v1340 = vpop.permute.xlu0 %1339
        %v1342 = vadd.f32 %v1336, %v1340
        %v1343 = vtanh.pop %v1342
        %v1344 = vmul.f32 %v1331, %v1343
        %1346 = vrot.lane.b32.xlu0 %v1344, 64
        %v1347 = vpop.permute.xlu0 %1346
        %vm1349 = vcmask 259077
        %1350 = vst.msk [vmem:[#allocation2] sm:$0x20] %vm1349, %v1347
        %vm1351 = vcmask 521477
        %1352 = vst.msk [vmem:[#allocation2 - $0x3] sm:$0x20] %vm1351, %v1347
        %v1353 = vpack.c.bf16 %v1344, %v1344
        %v1355 = vshrl.u32 %v1353, 16
        %v1357 = vrot.slane %v1355, 2
        %1358 = vrot.lane.b32.xlu0 %v1357, 64
        %v1359 = vpop.permute.xlu0 %1358
        %v1361 = vsel %vm740, %v1359, 0
        %1363 = vmatpush.bf16.msra.mxu0 0
        %1364 = vmatpush.bf16.msra.mxu0 0
        %1365 = vmatpush.bf16.msra.mxu0 0
        %1366 = vmatpush.bf16.msra.mxu0 0
        %1367 = vmatpush.bf16.msra.mxu0 %v730
        %1368 = vmatpush.bf16.msra.mxu0 %v728
        %1369 = vmatpush.bf16.msra.mxu0 %v726
        %1370 = vmatpush.bf16.msra.mxu0 %v724
        %1371 = vmatmul.bf16.gmra.mxu0 %v1361
        %v1372 = vpop.f32.mrf.mxu0
        %v1373 = vadd.f32 0.0, %v1372
        %v1374 = vpop.f32.mrf.mxu0
        %1375 = vdwg.mxu0
        %1376 = vmatpush.bf16.msra.mxu0 0
        %1377 = vmatpush.bf16.msra.mxu0 0
        %1378 = vmatpush.bf16.msra.mxu0 0
        %1379 = vmatpush.bf16.msra.mxu0 0
        %1380 = vmatpush.bf16.msra.mxu0 %v731
        %1381 = vmatpush.bf16.msra.mxu0 %v729
        %1382 = vmatpush.bf16.msra.mxu0 %v727
        %1383 = vmatpush.bf16.msra.mxu0 %v725
        %1384 = vmatmul.bf16.gmra.mxu0 %v1361
        %v1385 = vpop.f32.mrf.mxu0
        %v1386 = vadd.f32 0.0, %v1385
        %v1387 = vpop.f32.mrf.mxu0
        %1388 = vdwg.mxu0
        %v1391 = vrot.slane %v1373, 2
        %v1392 = vrot.slane %v1386, 2
        %v1395 = vadd.f32 %v938, %v1391
        %v1396 = vadd.f32 %v939, %v1392
        %v1397 = vxor.u32 %v1395, 2147483648
        %v1398 = vxor.u32 %v1396, 2147483648
        %v1399 = vmul.f32 %v1397, 1.442695
        %v1400 = vpow.pop %v1399
        %v1401 = vmul.f32 %v1398, 1.442695
        %v1402 = vpow.pop %v1401
        %v1403 = vadd.f32 %v1400, 1.0
        %v1404 = vadd.f32 %v1402, 1.0
        %v1405 = vrcp.pop %v1403
        %v1406 = vmul.f32 %v1403, %v1405
        %v1407 = vsub.f32 1.0, %v1406
        %v1408 = vmul.f32 %v1405, %v1407
        %v1409 = vadd.f32 %v1405, %v1408
        %vm1410 = vweird.f32 %v1403
        %vm1411 = vweird.f32 %v1405
        %vm1412 = vmor %vm1410, %vm1411
        %v1413 = vsel %vm1412, %v1405, %v1409
        %v1414 = vand.u32 2147483647, %v1403
        %vm1415 = vcmp.eq.f32.partialorder %v1414, 8.507059e+37
        %v1416 = vand.u32 %v1403, 2147483648
        %v1417 = vor.u32 1.1754944e-38, %v1416
        %v1418 = vsel %vm1415, %v1417, %v1413
        %v1419 = vmul.f32 1.0, %v1418
        %v1420 = vrcp.pop %v1404
        %v1421 = vmul.f32 %v1404, %v1420
        %v1422 = vsub.f32 1.0, %v1421
        %v1423 = vmul.f32 %v1420, %v1422
        %v1424 = vadd.f32 %v1420, %v1423
        %vm1425 = vweird.f32 %v1404
        %vm1426 = vweird.f32 %v1420
        %vm1427 = vmor %vm1425, %vm1426
        %v1428 = vsel %vm1427, %v1420, %v1424
        %v1429 = vand.u32 2147483647, %v1404
        %vm1430 = vcmp.eq.f32.partialorder %v1429, 8.507059e+37
        %v1431 = vand.u32 %v1404, 2147483648
        %v1432 = vor.u32 1.1754944e-38, %v1431
        %v1433 = vsel %vm1430, %v1432, %v1428
        %v1434 = vmul.f32 1.0, %v1433
        %v1435 = vtanh.pop %v1396
        %v1437 = vrot.slane %v1342, 7
        %v1439 = vmul.f32 %v1419, %v1437
        %v1440 = vmul.f32 %v1419, %v1435
        %1442 = vrot.lane.b32.xlu0 %v1440, 64
        %v1443 = vpop.permute.xlu0 %1442
        %v1445 = vadd.f32 %v1439, %v1443
        %v1446 = vtanh.pop %v1445
        %v1447 = vmul.f32 %v1434, %v1446
        %1449 = vrot.lane.b32.xlu0 %v1447, 64
        %v1450 = vpop.permute.xlu0 %1449
        %vm1452 = vcmask 260102
        %1453 = vst.msk [vmem:[#allocation2] sm:$0x40] %vm1452, %v1450
        %vm1454 = vcmask 522502
        %1455 = vst.msk [vmem:[#allocation2 - $0x5] sm:$0x40] %vm1454, %v1450
        %v1456 = vpack.c.bf16 %v1447, %v1447
        %v1458 = vrot.slane %v1456, 3
        %1459 = vrot.lane.b32.xlu0 %v1458, 64
        %v1460 = vpop.permute.xlu0 %1459
        %v1462 = vsel %vm740, %v1460, 0
        %1464 = vmatpush.bf16.msra.mxu0 0
        %1465 = vmatpush.bf16.msra.mxu0 0
        %1466 = vmatpush.bf16.msra.mxu0 0
        %1467 = vmatpush.bf16.msra.mxu0 0
        %1468 = vmatpush.bf16.msra.mxu0 %v730
        %1469 = vmatpush.bf16.msra.mxu0 %v728
        %1470 = vmatpush.bf16.msra.mxu0 %v726
        %1471 = vmatpush.bf16.msra.mxu0 %v724
        %1472 = vmatmul.bf16.gmra.mxu0 %v1462
        %v1473 = vpop.f32.mrf.mxu0
        %v1474 = vadd.f32 0.0, %v1473
        %v1475 = vpop.f32.mrf.mxu0
        %1476 = vdwg.mxu0
        %1477 = vmatpush.bf16.msra.mxu0 0
        %1478 = vmatpush.bf16.msra.mxu0 0
        %1479 = vmatpush.bf16.msra.mxu0 0
        %1480 = vmatpush.bf16.msra.mxu0 0
        %1481 = vmatpush.bf16.msra.mxu0 %v731
        %1482 = vmatpush.bf16.msra.mxu0 %v729
        %1483 = vmatpush.bf16.msra.mxu0 %v727
        %1484 = vmatpush.bf16.msra.mxu0 %v725
        %1485 = vmatmul.bf16.gmra.mxu0 %v1462
        %v1486 = vpop.f32.mrf.mxu0
        %v1487 = vadd.f32 0.0, %v1486
        %v1488 = vpop.f32.mrf.mxu0
        %1489 = vdwg.mxu0
        %v1492 = vrot.slane %v1474, 1
        %v1493 = vrot.slane %v1487, 1
        %v1496 = vadd.f32 %v1046, %v1492
        %v1497 = vadd.f32 %v1047, %v1493
        %v1498 = vxor.u32 %v1496, 2147483648
        %v1499 = vxor.u32 %v1497, 2147483648
        %v1500 = vmul.f32 %v1498, 1.442695
        %v1501 = vpow.pop %v1500
        %v1502 = vmul.f32 %v1499, 1.442695
        %v1503 = vpow.pop %v1502
        %v1504 = vadd.f32 %v1501, 1.0
        %v1505 = vadd.f32 %v1503, 1.0
        %v1506 = vrcp.pop %v1504
        %v1507 = vmul.f32 %v1504, %v1506
        %v1508 = vsub.f32 1.0, %v1507
        %v1509 = vmul.f32 %v1506, %v1508
        %v1510 = vadd.f32 %v1506, %v1509
        %vm1511 = vweird.f32 %v1504
        %vm1512 = vweird.f32 %v1506
        %vm1513 = vmor %vm1511, %vm1512
        %v1514 = vsel %vm1513, %v1506, %v1510
        %v1515 = vand.u32 2147483647, %v1504
        %vm1516 = vcmp.eq.f32.partialorder %v1515, 8.507059e+37
        %v1517 = vand.u32 %v1504, 2147483648
        %v1518 = vor.u32 1.1754944e-38, %v1517
        %v1519 = vsel %vm1516, %v1518, %v1514
        %v1520 = vmul.f32 1.0, %v1519
        %v1521 = vrcp.pop %v1505
        %v1522 = vmul.f32 %v1505, %v1521
        %v1523 = vsub.f32 1.0, %v1522
        %v1524 = vmul.f32 %v1521, %v1523
        %v1525 = vadd.f32 %v1521, %v1524
        %vm1526 = vweird.f32 %v1505
        %vm1527 = vweird.f32 %v1521
        %vm1528 = vmor %vm1526, %vm1527
        %v1529 = vsel %vm1528, %v1521, %v1525
        %v1530 = vand.u32 2147483647, %v1505
        %vm1531 = vcmp.eq.f32.partialorder %v1530, 8.507059e+37
        %v1532 = vand.u32 %v1505, 2147483648
        %v1533 = vor.u32 1.1754944e-38, %v1532
        %v1534 = vsel %vm1531, %v1533, %v1529
        %v1535 = vmul.f32 1.0, %v1534
        %v1536 = vtanh.pop %v1497
        %v1538 = vrot.slane %v1445, 7
        %v1540 = vmul.f32 %v1520, %v1538
        %v1541 = vmul.f32 %v1520, %v1536
        %1543 = vrot.lane.b32.xlu0 %v1541, 64
        %v1544 = vpop.permute.xlu0 %1543
        %v1546 = vadd.f32 %v1540, %v1544
        %v1547 = vtanh.pop %v1546
        %v1548 = vmul.f32 %v1535, %v1547
        %1550 = vrot.lane.b32.xlu0 %v1548, 64
        %v1551 = vpop.permute.xlu0 %1550
        %vm1553 = vcmask 261127
        %1554 = vst.msk [vmem:[#allocation2] sm:$0x80] %vm1553, %v1551
        %vm1555 = vcmask 523527
        %1556 = vst.msk [vmem:[#allocation2 - $0x7] sm:$0x80] %vm1555, %v1551
        %v1557 = vld [vmem:[#allocation2] sm:$0xff]
        %v1558 = vpack.c.bf16 %v1557, %v1557
        %v1559 = vld [vmem:[%s576] sm:$0x7]
        %v1560 = vld [vmem:[%s576 + $0x4] sm:$0x7]
        %v1561 = vld [vmem:[%s576 + $0x8] sm:$0x7]
        %v1562 = vld [vmem:[%s576 + $0xc] sm:$0x7]
        %v1563 = vld [vmem:[%s580] sm:$0xf]
        %v1564 = vperm.slane %v1563, 0
        %v1565 = vlaneseq
        %v1566 = vshrl.u32 %v1565, 7
        %1568 = vset.pattern.permute.xlu0 %v1566
        %1569 = vperm.xlu0 %1568, %v1564
        %v1570 = vpop.permute.xlu0 %1569
        %v1571 = vperm.slane %v1563, 1
        %v1572 = vlaneseq
        %v1573 = vshrl.u32 %v1572, 7
        %1575 = vset.pattern.permute.xlu0 %v1573
        %1576 = vperm.xlu0 %1575, %v1571
        %v1577 = vpop.permute.xlu0 %1576
        %v1578 = vperm.slane %v1563, 2
        %v1579 = vlaneseq
        %v1580 = vshrl.u32 %v1579, 7
        %1582 = vset.pattern.permute.xlu0 %v1580
        %1583 = vperm.xlu0 %1582, %v1578
        %v1584 = vpop.permute.xlu0 %1583
        %v1585 = vperm.slane %v1563, 3
        %v1586 = vlaneseq
        %v1587 = vshrl.u32 %v1586, 7
        %1589 = vset.pattern.permute.xlu0 %v1587
        %1590 = vperm.xlu0 %1589, %v1585
        %v1591 = vpop.permute.xlu0 %1590
        %v1592 = vmul.f32 %v1570, %v1559
        %v1593 = vmul.f32 %v1577, %v1560
        %v1594 = vmul.f32 %v1584, %v1561
        %v1595 = vmul.f32 %v1591, %v1562
        %vm1596 = vcmask 256000
        %v1597 = vsel %vm1596, %v1592, 0.0
        %v1598 = vrot.slane %v1597, 4
        %v1599 = vadd.f32 %v1597, %v1598
        %v1600 = vrot.slane %v1599, 2
        %v1601 = vadd.f32 %v1599, %v1600
        %v1602 = vrot.slane %v1601, 1
        %v1603 = vadd.f32 %v1601, %v1602
        %v1604 = vsel %vm1596, %v1593, 0.0
        %v1605 = vrot.slane %v1604, 4
        %v1606 = vadd.f32 %v1604, %v1605
        %v1607 = vrot.slane %v1606, 2
        %v1608 = vadd.f32 %v1606, %v1607
        %v1609 = vrot.slane %v1608, 1
        %v1610 = vadd.f32 %v1608, %v1609
        %v1611 = vsel %vm1596, %v1594, 0.0
        %v1612 = vrot.slane %v1611, 4
        %v1613 = vadd.f32 %v1611, %v1612
        %v1614 = vrot.slane %v1613, 2
        %v1615 = vadd.f32 %v1613, %v1614
        %v1616 = vrot.slane %v1615, 1
        %v1617 = vadd.f32 %v1615, %v1616
        %v1618 = vsel %vm1596, %v1595, 0.0
        %v1619 = vrot.slane %v1618, 4
        %v1620 = vadd.f32 %v1618, %v1619
        %v1621 = vrot.slane %v1620, 2
        %v1622 = vadd.f32 %v1620, %v1621
        %v1623 = vrot.slane %v1622, 1
        %v1624 = vadd.f32 %v1622, %v1623
        %vm1625 = vcmask 19456
        %v1626 = vsel %vm1625, %v1563, 0.0
        %1627 = vadd.xlane.f32.xlu0 %v1626
        %v1628 = vpop.xlane.xlu0 %1627
        %v1629 = vmax.f32 %v1628, 1.0
        %v1631 = vrot.slane %v1629, 1
        %v1632 = vrot.slane %v1629, 2
        %v1633 = vrot.slane %v1629, 3
        %v1638 = vrcp.pop %v1629
        %v1639 = vmul.f32 %v1629, %v1638
        %v1640 = vsub.f32 1.0, %v1639
        %v1641 = vmul.f32 %v1638, %v1640
        %v1642 = vadd.f32 %v1638, %v1641
        %vm1643 = vweird.f32 %v1629
        %vm1644 = vweird.f32 %v1638
        %vm1645 = vmor %vm1643, %vm1644
        %v1646 = vsel %vm1645, %v1638, %v1642
        %v1647 = vand.u32 2147483647, %v1629
        %vm1648 = vcmp.eq.f32.partialorder %v1647, 8.507059e+37
        %v1649 = vand.u32 %v1629, 2147483648
        %v1650 = vor.u32 1.1754944e-38, %v1649
        %v1651 = vsel %vm1648, %v1650, %v1646
        %v1652 = vmul.f32 %v1603, %v1651
        %v1653 = vrcp.pop %v1631
        %v1654 = vmul.f32 %v1631, %v1653
        %v1655 = vsub.f32 1.0, %v1654
        %v1656 = vmul.f32 %v1653, %v1655
        %v1657 = vadd.f32 %v1653, %v1656
        %vm1658 = vweird.f32 %v1631
        %vm1659 = vweird.f32 %v1653
        %vm1660 = vmor %vm1658, %vm1659
        %v1661 = vsel %vm1660, %v1653, %v1657
        %v1662 = vand.u32 2147483647, %v1631
        %vm1663 = vcmp.eq.f32.partialorder %v1662, 8.507059e+37
        %v1664 = vand.u32 %v1631, 2147483648
        %v1665 = vor.u32 1.1754944e-38, %v1664
        %v1666 = vsel %vm1663, %v1665, %v1661
        %v1667 = vmul.f32 %v1610, %v1666
        %v1668 = vrcp.pop %v1632
        %v1669 = vmul.f32 %v1632, %v1668
        %v1670 = vsub.f32 1.0, %v1669
        %v1671 = vmul.f32 %v1668, %v1670
        %v1672 = vadd.f32 %v1668, %v1671
        %vm1673 = vweird.f32 %v1632
        %vm1674 = vweird.f32 %v1668
        %vm1675 = vmor %vm1673, %vm1674
        %v1676 = vsel %vm1675, %v1668, %v1672
        %v1677 = vand.u32 2147483647, %v1632
        %vm1678 = vcmp.eq.f32.partialorder %v1677, 8.507059e+37
        %v1679 = vand.u32 %v1632, 2147483648
        %v1680 = vor.u32 1.1754944e-38, %v1679
        %v1681 = vsel %vm1678, %v1680, %v1676
        %v1682 = vmul.f32 %v1617, %v1681
        %v1683 = vrcp.pop %v1633
        %v1684 = vmul.f32 %v1633, %v1683
        %v1685 = vsub.f32 1.0, %v1684
        %v1686 = vmul.f32 %v1683, %v1685
        %v1687 = vadd.f32 %v1683, %v1686
        %vm1688 = vweird.f32 %v1633
        %vm1689 = vweird.f32 %v1683
        %vm1690 = vmor %vm1688, %vm1689
        %v1691 = vsel %vm1690, %v1683, %v1687
        %v1692 = vand.u32 2147483647, %v1633
        %vm1693 = vcmp.eq.f32.partialorder %v1692, 8.507059e+37
        %v1694 = vand.u32 %v1633, 2147483648
        %v1695 = vor.u32 1.1754944e-38, %v1694
        %v1696 = vsel %vm1693, %v1695, %v1691
        %v1697 = vmul.f32 %v1624, %v1696
        %v1698 = vpack.c.bf16 %v1652, %v1652
        %v1699 = vpack.c.bf16 %v1667, %v1667
        %v1700 = vpack.c.bf16 %v1682, %v1682
        %v1701 = vpack.c.bf16 %v1697, %v1697
        %v1702 = vld [vmem:[%s6] sm:$0xf]
        %v1703 = vld [vmem:[%s6 + $0x4] sm:$0xf]
        %v1704 = vld [vmem:[%s6 + $0x8] sm:$0xf]
        %v1705 = vld [vmem:[%s6 + $0xc] sm:$0xf]
        %v1706 = vld [vmem:[%s7] sm:$0xf]
        %v1707 = vld [vmem:[%s7 + $0x4] sm:$0xf]
        %v1708 = vld [vmem:[%s7 + $0x8] sm:$0xf]
        %v1709 = vld [vmem:[%s7 + $0xc] sm:$0xf]
        %v1710 = vld [vmem:[%s8] sm:$0x1]
        %v1712 = vperm.slane %v1710, 0
        %v1718 = vunpack.c.l.b16 %v1698
        %v1719 = vunpack.c.l.b16 %v1699
        %v1720 = vunpack.c.l.b16 %v1700
        %v1721 = vunpack.c.l.b16 %v1701
        %v1722 = vrot.slane %v1719, 7
        %vm1723 = vcmask 1041409
        %v1724 = vsel %vm1723, %v1722, %v1718
        %v1725 = vrot.slane %v1720, 6
        %vm1726 = vcmask 1042434
        %v1727 = vsel %vm1726, %v1725, %v1724
        %v1728 = vrot.slane %v1721, 5
        %vm1729 = vcmask 1043459
        %v1730 = vsel %vm1729, %v1728, %v1727
        %v1731 = vpack.c.b16 %v1730, %v1730
        %v1736 = vunpack.c.l.b16 %v1702
        %v1737 = vunpack.c.l.b16 %v1703
        %v1738 = vunpack.c.l.b16 %v1704
        %v1739 = vunpack.c.l.b16 %v1705
        %v1740 = vpack.c.b16 %v1737, %v1736
        %v1741 = vpack.c.b16 %v1739, %v1738
        %vm1744 = vcmask 261120
        %v1746 = vsel %vm1744, %v1731, 0
        %1748 = vmatpush.bf16.msra.mxu0 0
        %1749 = vmatpush.bf16.msra.mxu0 0
        %1750 = vmatpush.bf16.msra.mxu0 0
        %1751 = vmatpush.bf16.msra.mxu0 0
        %1752 = vmatpush.bf16.msra.mxu0 0
        %1753 = vmatpush.bf16.msra.mxu0 0
        %1754 = vmatpush.bf16.msra.mxu0 %v1741
        %1755 = vmatpush.bf16.msra.mxu0 %v1740
        %1756 = vmatmul.bf16.gmra.mxu0 %v1746
        %v1757 = vpop.f32.mrf.mxu0
        %v1758 = vadd.f32 %v1712, %v1757
        %v1759 = vpop.f32.mrf.mxu0
        %1760 = vdwg.mxu0
        %vm1761 = vcmp.lt.s32.totalorder %v664, 0
        %v1762 = vsub.s32 0, %v664
        %v1763 = vsel %vm1761, %v1762, %v664
        %v1764 = vshrl.u32 %v1763, 5
        %v1765 = vand.u32 %v1763, 31
        %v1766 = vsub.s32 0, %v1765
        %v1767 = vsel %vm1761, %v1766, %v1765
        %vm1768 = vcmp.ne.s32.totalorder %v1767, 0
        %vm1769 = vcmp.lt.s32.totalorder %v1767, 0
        %vm1770 = vmand %vm1769, %vm1768
        %v1771 = vadd.s32 %v1767, 32
        %v1772 = vsel %vm1770, %v1771, %v1767
        %vm1773 = vcmp.lt.s32.totalorder %v1772, 16
        %v1775 = vrot.slane %v1758, 3
        %v1777 = vsel %vm1773, %v1758, %v1775
        %v1782 = vunpack.c.l.b16 %v1706
        %v1783 = vunpack.c.l.b16 %v1707
        %v1784 = vunpack.c.l.b16 %v1708
        %v1785 = vunpack.c.l.b16 %v1709
        %v1786 = vpack.c.b16 %v1783, %v1782
        %v1787 = vpack.c.b16 %v1785, %v1784
        %v1790 = vsel %vm1744, 0, 0
        %1792 = vmatpush.bf16.msra.mxu0 0
        %1793 = vmatpush.bf16.msra.mxu0 0
        %1794 = vmatpush.bf16.msra.mxu0 0
        %1795 = vmatpush.bf16.msra.mxu0 0
        %1796 = vmatpush.bf16.msra.mxu0 0
        %1797 = vmatpush.bf16.msra.mxu0 0
        %1798 = vmatpush.bf16.msra.mxu0 %v1787
        %1799 = vmatpush.bf16.msra.mxu0 %v1786
        %1800 = vmatmul.bf16.gmra.mxu0 %v1790
        %v1801 = vpop.f32.mrf.mxu0
        %v1802 = vadd.f32 0.0, %v1801
        %v1803 = vpop.f32.mrf.mxu0
        %1804 = vdwg.mxu0
        %v1805 = vadd.f32 %v1777, %v1802
        %v1806 = vxor.u32 %v1805, 2147483648
        %v1807 = vmul.f32 %v1806, 1.442695
        %v1808 = vpow.pop %v1807
        %v1809 = vadd.f32 %v1808, 1.0
        %v1810 = vrcp.pop %v1809
        %v1811 = vmul.f32 %v1809, %v1810
        %v1812 = vsub.f32 1.0, %v1811
        %v1813 = vmul.f32 %v1810, %v1812
        %v1814 = vadd.f32 %v1810, %v1813
        %vm1815 = vweird.f32 %v1809
        %vm1816 = vweird.f32 %v1810
        %vm1817 = vmor %vm1815, %vm1816
        %v1818 = vsel %vm1817, %v1810, %v1814
        %v1819 = vand.u32 2147483647, %v1809
        %vm1820 = vcmp.eq.f32.partialorder %v1819, 8.507059e+37
        %v1821 = vand.u32 %v1809, 2147483648
        %v1822 = vor.u32 1.1754944e-38, %v1821
        %v1823 = vsel %vm1820, %v1822, %v1818
        %v1824 = vmul.f32 1.0, %v1823
        %v1825 = vtanh.pop %v1805
        %v1826 = vmul.f32 %v1824, 0.0
        %1828 = vrot.lane.b32.xlu0 %v1825, 64
        %v1829 = vpop.permute.xlu0 %1828
        %v1831 = vmul.f32 %v1824, %v1829
        %1833 = vrot.lane.b32.xlu0 %v1831, 32
        %v1834 = vpop.permute.xlu0 %1833
        %v1836 = vadd.f32 %v1826, %v1834
        %v1837 = vtanh.pop %v1836
        %1839 = vrot.lane.b32.xlu0 %v1837, 64
        %v1840 = vpop.permute.xlu0 %1839
        %v1842 = vmul.f32 %v1824, %v1840
        %1844 = vrot.lane.b32.xlu0 %v1842, 32
        %v1845 = vpop.permute.xlu0 %1844
        %vm1847 = vcmask 122880
        %1848 = vst.msk [vmem:[#allocation3] sm:$0x1] %vm1847, %v1845
        %vm1849 = vcmask 254080
        %1850 = vst.msk [vmem:[#allocation3 + $0x3] sm:$0x1] %vm1849, %v1845
        %v1851 = vrot.slane %v1758, 1
        %v1853 = vsel %vm1773, %v1758, %v1851
        %v1854 = vpack.c.bf16 %v1842, %v1842
        %1856 = vrot.lane.b32.xlu0 %v1854, 32
        %v1857 = vpop.permute.xlu0 %1856
        %v1859 = vsel %vm1744, %v1857, 0
        %1861 = vmatpush.bf16.msra.mxu0 0
        %1862 = vmatpush.bf16.msra.mxu0 0
        %1863 = vmatpush.bf16.msra.mxu0 0
        %1864 = vmatpush.bf16.msra.mxu0 0
        %1865 = vmatpush.bf16.msra.mxu0 0
        %1866 = vmatpush.bf16.msra.mxu0 0
        %1867 = vmatpush.bf16.msra.mxu0 %v1787
        %1868 = vmatpush.bf16.msra.mxu0 %v1786
        %1869 = vmatmul.bf16.gmra.mxu0 %v1859
        %v1870 = vpop.f32.mrf.mxu0
        %v1871 = vadd.f32 0.0, %v1870
        %v1872 = vpop.f32.mrf.mxu0
        %1873 = vdwg.mxu0
        %v1875 = vrot.slane %v1871, 7
        %v1877 = vadd.f32 %v1853, %v1875
        %v1878 = vxor.u32 %v1877, 2147483648
        %v1879 = vmul.f32 %v1878, 1.442695
        %v1880 = vpow.pop %v1879
        %v1881 = vadd.f32 %v1880, 1.0
        %v1882 = vrcp.pop %v1881
        %v1883 = vmul.f32 %v1881, %v1882
        %v1884 = vsub.f32 1.0, %v1883
        %v1885 = vmul.f32 %v1882, %v1884
        %v1886 = vadd.f32 %v1882, %v1885
        %vm1887 = vweird.f32 %v1881
        %vm1888 = vweird.f32 %v1882
        %vm1889 = vmor %vm1887, %vm1888
        %v1890 = vsel %vm1889, %v1882, %v1886
        %v1891 = vand.u32 2147483647, %v1881
        %vm1892 = vcmp.eq.f32.partialorder %v1891, 8.507059e+37
        %v1893 = vand.u32 %v1881, 2147483648
        %v1894 = vor.u32 1.1754944e-38, %v1893
        %v1895 = vsel %vm1892, %v1894, %v1890
        %v1896 = vmul.f32 1.0, %v1895
        %v1897 = vtanh.pop %v1877
        %v1899 = vrot.slane %v1836, 7
        %v1901 = vmul.f32 %v1896, %v1899
        %1903 = vrot.lane.b32.xlu0 %v1897, 64
        %v1904 = vpop.permute.xlu0 %1903
        %v1906 = vmul.f32 %v1896, %v1904
        %1908 = vrot.lane.b32.xlu0 %v1906, 32
        %v1909 = vpop.permute.xlu0 %1908
        %v1911 = vadd.f32 %v1901, %v1909
        %v1912 = vtanh.pop %v1911
        %1914 = vrot.lane.b32.xlu0 %v1912, 64
        %v1915 = vpop.permute.xlu0 %1914
        %v1917 = vmul.f32 %v1896, %v1915
        %1919 = vrot.lane.b32.xlu0 %v1917, 32
        %v1920 = vpop.permute.xlu0 %1919
        %vm1922 = vcmask 123905
        %1923 = vst.msk [vmem:[#allocation3] sm:$0x2] %vm1922, %v1920
        %vm1924 = vcmask 255105
        %1925 = vst.msk [vmem:[#allocation3 + $0x1] sm:$0x2] %vm1924, %v1920
        %v1926 = vrot.slane %v1758, 7
        %v1928 = vsel %vm1773, %v1758, %v1926
        %v1929 = vpack.c.bf16 %v1917, %v1917
        %v1931 = vshrl.u32 %v1929, 16
        %1933 = vrot.lane.b32.xlu0 %v1931, 32
        %v1934 = vpop.permute.xlu0 %1933
        %v1936 = vsel %vm1744, %v1934, 0
        %1938 = vmatpush.bf16.msra.mxu0 0
        %1939 = vmatpush.bf16.msra.mxu0 0
        %1940 = vmatpush.bf16.msra.mxu0 0
        %1941 = vmatpush.bf16.msra.mxu0 0
        %1942 = vmatpush.bf16.msra.mxu0 0
        %1943 = vmatpush.bf16.msra.mxu0 0
        %1944 = vmatpush.bf16.msra.mxu0 %v1787
        %1945 = vmatpush.bf16.msra.mxu0 %v1786
        %1946 = vmatmul.bf16.gmra.mxu0 %v1936
        %v1947 = vpop.f32.mrf.mxu0
        %v1948 = vadd.f32 0.0, %v1947
        %v1949 = vpop.f32.mrf.mxu0
        %1950 = vdwg.mxu0
        %v1952 = vrot.slane %v1948, 6
        %v1954 = vadd.f32 %v1928, %v1952
        %v1955 = vxor.u32 %v1954, 2147483648
        %v1956 = vmul.f32 %v1955, 1.442695
        %v1957 = vpow.pop %v1956
        %v1958 = vadd.f32 %v1957, 1.0
        %v1959 = vrcp.pop %v1958
        %v1960 = vmul.f32 %v1958, %v1959
        %v1961 = vsub.f32 1.0, %v1960
        %v1962 = vmul.f32 %v1959, %v1961
        %v1963 = vadd.f32 %v1959, %v1962
        %vm1964 = vweird.f32 %v1958
        %vm1965 = vweird.f32 %v1959
        %vm1966 = vmor %vm1964, %vm1965
        %v1967 = vsel %vm1966, %v1959, %v1963
        %v1968 = vand.u32 2147483647, %v1958
        %vm1969 = vcmp.eq.f32.partialorder %v1968, 8.507059e+37
        %v1970 = vand.u32 %v1958, 2147483648
        %v1971 = vor.u32 1.1754944e-38, %v1970
        %v1972 = vsel %vm1969, %v1971, %v1967
        %v1973 = vmul.f32 1.0, %v1972
        %v1974 = vtanh.pop %v1954
        %v1976 = vrot.slane %v1911, 7
        %v1978 = vmul.f32 %v1973, %v1976
        %1980 = vrot.lane.b32.xlu0 %v1974, 64
        %v1981 = vpop.permute.xlu0 %1980
        %v1983 = vmul.f32 %v1973, %v1981
        %1985 = vrot.lane.b32.xlu0 %v1983, 32
        %v1986 = vpop.permute.xlu0 %1985
        %v1988 = vadd.f32 %v1978, %v1986
        %v1989 = vtanh.pop %v1988
        %1991 = vrot.lane.b32.xlu0 %v1989, 64
        %v1992 = vpop.permute.xlu0 %1991
        %v1994 = vmul.f32 %v1973, %v1992
        %1996 = vrot.lane.b32.xlu0 %v1994, 32
        %v1997 = vpop.permute.xlu0 %1996
        %vm1999 = vcmask 124930
        %2000 = vst.msk [vmem:[#allocation3] sm:$0x4] %vm1999, %v1997
        %vm2001 = vcmask 256130
        %2002 = vst.msk [vmem:[#allocation3 - $0x1] sm:$0x4] %vm2001, %v1997
        %v2003 = vrot.slane %v1758, 5
        %v2005 = vsel %vm1773, %v1758, %v2003
        %v2006 = vpack.c.bf16 %v1994, %v1994
        %v2008 = vrot.slane %v2006, 1
        %2009 = vrot.lane.b32.xlu0 %v2008, 32
        %v2010 = vpop.permute.xlu0 %2009
        %v2012 = vsel %vm1744, %v2010, 0
        %2014 = vmatpush.bf16.msra.mxu0 0
        %2015 = vmatpush.bf16.msra.mxu0 0
        %2016 = vmatpush.bf16.msra.mxu0 0
        %2017 = vmatpush.bf16.msra.mxu0 0
        %2018 = vmatpush.bf16.msra.mxu0 0
        %2019 = vmatpush.bf16.msra.mxu0 0
        %2020 = vmatpush.bf16.msra.mxu0 %v1787
        %2021 = vmatpush.bf16.msra.mxu0 %v1786
        %2022 = vmatmul.bf16.gmra.mxu0 %v2012
        %v2023 = vpop.f32.mrf.mxu0
        %v2024 = vadd.f32 0.0, %v2023
        %v2025 = vpop.f32.mrf.mxu0
        %2026 = vdwg.mxu0
        %v2028 = vrot.slane %v2024, 5
        %v2030 = vadd.f32 %v2005, %v2028
        %v2031 = vxor.u32 %v2030, 2147483648
        %v2032 = vmul.f32 %v2031, 1.442695
        %v2033 = vpow.pop %v2032
        %v2034 = vadd.f32 %v2033, 1.0
        %v2035 = vrcp.pop %v2034
        %v2036 = vmul.f32 %v2034, %v2035
        %v2037 = vsub.f32 1.0, %v2036
        %v2038 = vmul.f32 %v2035, %v2037
        %v2039 = vadd.f32 %v2035, %v2038
        %vm2040 = vweird.f32 %v2034
        %vm2041 = vweird.f32 %v2035
        %vm2042 = vmor %vm2040, %vm2041
        %v2043 = vsel %vm2042, %v2035, %v2039
        %v2044 = vand.u32 2147483647, %v2034
        %vm2045 = vcmp.eq.f32.partialorder %v2044, 8.507059e+37
        %v2046 = vand.u32 %v2034, 2147483648
        %v2047 = vor.u32 1.1754944e-38, %v2046
        %v2048 = vsel %vm2045, %v2047, %v2043
        %v2049 = vmul.f32 1.0, %v2048
        %v2050 = vtanh.pop %v2030
        %v2052 = vrot.slane %v1988, 7
        %v2054 = vmul.f32 %v2049, %v2052
        %2056 = vrot.lane.b32.xlu0 %v2050, 64
        %v2057 = vpop.permute.xlu0 %2056
        %v2059 = vmul.f32 %v2049, %v2057
        %2061 = vrot.lane.b32.xlu0 %v2059, 32
        %v2062 = vpop.permute.xlu0 %2061
        %v2064 = vadd.f32 %v2054, %v2062
        %v2065 = vtanh.pop %v2064
        %2067 = vrot.lane.b32.xlu0 %v2065, 64
        %v2068 = vpop.permute.xlu0 %2067
        %v2070 = vmul.f32 %v2049, %v2068
        %2072 = vrot.lane.b32.xlu0 %v2070, 32
        %v2073 = vpop.permute.xlu0 %2072
        %vm2075 = vcmask 125955
        %2076 = vst.msk [vmem:[#allocation3] sm:$0x8] %vm2075, %v2073
        %vm2077 = vcmask 257155
        %2078 = vst.msk [vmem:[#allocation3 - $0x3] sm:$0x8] %vm2077, %v2073
        %v2079 = vld [vmem:[#allocation3] sm:$0xf]
        %v2080 = vpack.c.bf16 %v2079, %v2079
        %v2081 = vld [vmem:[%s9] sm:$0xf]
        %v2082 = vld [vmem:[%s9 + $0x4] sm:$0xf]
        %v2083 = vld [vmem:[%s9 + $0x8] sm:$0xf]
        %v2084 = vld [vmem:[%s9 + $0xc] sm:$0xf]
        %v2085 = vld [vmem:[%s10] sm:$0xf]
        %v2086 = vld [vmem:[%s10 + $0x4] sm:$0xf]
        %v2087 = vld [vmem:[%s10 + $0x8] sm:$0xf]
        %v2088 = vld [vmem:[%s10 + $0xc] sm:$0xf]
        %v2089 = vld [vmem:[%s10 + $0x10] sm:$0xf]
        %v2090 = vld [vmem:[%s10 + $0x14] sm:$0xf]
        %v2091 = vld [vmem:[%s10 + $0x18] sm:$0xf]
        %v2092 = vld [vmem:[%s10 + $0x1c] sm:$0xf]
        %v2101 = vunpack.c.l.b16 %v2085
        %v2102 = vunpack.c.l.b16 %v2086
        %v2103 = vunpack.c.l.b16 %v2087
        %v2104 = vunpack.c.l.b16 %v2088
        %v2105 = vunpack.c.l.b16 %v2089
        %v2106 = vunpack.c.l.b16 %v2090
        %v2107 = vunpack.c.l.b16 %v2091
        %v2108 = vunpack.c.l.b16 %v2092
        %v2109 = vpack.c.b16 %v2102, %v2101
        %v2110 = vpack.c.b16 %v2104, %v2103
        %v2111 = vpack.c.b16 %v2106, %v2105
        %v2112 = vpack.c.b16 %v2108, %v2107
        %v2118 = vsel %vm740, %v1558, 0
        %2120 = vmatpush.bf16.msra.mxu0 0
        %2121 = vmatpush.bf16.msra.mxu0 0
        %2122 = vmatpush.bf16.msra.mxu0 0
        %2123 = vmatpush.bf16.msra.mxu0 0
        %2124 = vmatpush.bf16.msra.mxu0 %v2112
        %2125 = vmatpush.bf16.msra.mxu0 %v2111
        %2126 = vmatpush.bf16.msra.mxu0 %v2110
        %2127 = vmatpush.bf16.msra.mxu0 %v2109
        %2128 = vmatmul.bf16.gmra.mxu0 %v2118
        %v2129 = vpop.f32.mrf.mxu0
        %v2130 = vadd.f32 0.0, %v2129
        %v2131 = vpop.f32.mrf.mxu0
        %2132 = vdwg.mxu0
        %v2134 = vrot.slane %v2130, 1
        %2135 = vrot.lane.b32.xlu0 %v2134, 16
        %v2136 = vpop.permute.xlu0 %2135
        %v2138 = vrot.slane %v2130, 2
        %2139 = vrot.lane.b32.xlu0 %v2138, 32
        %v2140 = vpop.permute.xlu0 %2139
        %v2142 = vrot.slane %v2130, 3
        %2143 = vrot.lane.b32.xlu0 %v2142, 48
        %v2144 = vpop.permute.xlu0 %2143
        %v2146 = vrot.slane %v2130, 4
        %2147 = vrot.lane.b32.xlu0 %v2146, 64
        %v2148 = vpop.permute.xlu0 %2147
        %v2150 = vrot.slane %v2130, 5
        %2151 = vrot.lane.b32.xlu0 %v2150, 80
        %v2152 = vpop.permute.xlu0 %2151
        %v2154 = vrot.slane %v2130, 6
        %2155 = vrot.lane.b32.xlu0 %v2154, 96
        %v2156 = vpop.permute.xlu0 %2155
        %v2158 = vrot.slane %v2130, 7
        %2159 = vrot.lane.b32.xlu0 %v2158, 112
        %v2160 = vpop.permute.xlu0 %2159
        %vm2162 = vcmask 130048
        %v2163 = vsel %vm2162, %v2130, %v2136
        %v2164 = vsel %vm1744, %v2163, %v2140
        %v2165 = vsel %vm633, %v2164, %v2144
        %v2166 = vsel %vm740, %v2165, %v2148
        %vm2167 = vcmask 654336
        %v2168 = vsel %vm2167, %v2166, %v2152
        %vm2169 = vcmask 785408
        %v2170 = vsel %vm2169, %v2168, %v2156
        %vm2171 = vcmask 916480
        %v2172 = vsel %vm2171, %v2170, %v2160
        %v2173 = vperm.slane %v2172, 0
        %v2178 = vunpack.c.l.b16 %v2081
        %v2179 = vunpack.c.l.b16 %v2082
        %v2180 = vunpack.c.l.b16 %v2083
        %v2181 = vunpack.c.l.b16 %v2084
        %v2182 = vpack.c.b16 %v2179, %v2178
        %v2183 = vpack.c.b16 %v2181, %v2180
        %v2187 = vsel %vm1744, %v2080, 0
        %2189 = vmatpush.bf16.msra.mxu0 0
        %2190 = vmatpush.bf16.msra.mxu0 0
        %2191 = vmatpush.bf16.msra.mxu0 0
        %2192 = vmatpush.bf16.msra.mxu0 0
        %2193 = vmatpush.bf16.msra.mxu0 0
        %2194 = vmatpush.bf16.msra.mxu0 0
        %2195 = vmatpush.bf16.msra.mxu0 %v2183
        %2196 = vmatpush.bf16.msra.mxu0 %v2182
        %2197 = vmatmul.bf16.gmra.mxu0 %v2187
        %v2198 = vpop.f32.mrf.mxu0
        %v2199 = vadd.f32 %v2173, %v2198
        %v2200 = vpop.f32.mrf.mxu0
        %2201 = vdwg.mxu0
        %v2202 = vtanh.pop %v2199
        %v2203 = vpack.c.bf16 %v2202, %v2202
        %v2204 = vld [vmem:[%s11] sm:$0xf]
        %v2205 = vld [vmem:[%s11 + $0x4] sm:$0xf]
        %v2206 = vld [vmem:[%s11 + $0x8] sm:$0xf]
        %v2207 = vld [vmem:[%s11 + $0xc] sm:$0xf]
        %v2208 = vld [vmem:[%s11 + $0x10] sm:$0xf]
        %v2209 = vld [vmem:[%s11 + $0x14] sm:$0xf]
        %v2210 = vld [vmem:[%s11 + $0x18] sm:$0xf]
        %v2211 = vld [vmem:[%s11 + $0x1c] sm:$0xf]
        %v2212 = vld [vmem:[%s11 + $0x20] sm:$0xf]
        %v2213 = vld [vmem:[%s11 + $0x24] sm:$0xf]
        %v2214 = vld [vmem:[%s11 + $0x28] sm:$0xf]
        %v2215 = vld [vmem:[%s11 + $0x2c] sm:$0xf]
        %v2216 = vld [vmem:[%s11 + $0x30] sm:$0xf]
        %v2217 = vld [vmem:[%s11 + $0x34] sm:$0xf]
        %v2218 = vld [vmem:[%s11 + $0x38] sm:$0xf]
        %v2219 = vld [vmem:[%s11 + $0x3c] sm:$0xf]
        %v2236 = vunpack.c.l.b16 %v2204
        %v2237 = vunpack.c.l.b16 %v2205
        %v2238 = vunpack.c.l.b16 %v2206
        %v2239 = vunpack.c.l.b16 %v2207
        %v2240 = vunpack.c.l.b16 %v2208
        %v2241 = vunpack.c.l.b16 %v2209
        %v2242 = vunpack.c.l.b16 %v2210
        %v2243 = vunpack.c.l.b16 %v2211
        %v2244 = vunpack.c.l.b16 %v2212
        %v2245 = vunpack.c.l.b16 %v2213
        %v2246 = vunpack.c.l.b16 %v2214
        %v2247 = vunpack.c.l.b16 %v2215
        %v2248 = vunpack.c.l.b16 %v2216
        %v2249 = vunpack.c.l.b16 %v2217
        %v2250 = vunpack.c.l.b16 %v2218
        %v2251 = vunpack.c.l.b16 %v2219
        %v2252 = vpack.c.b16 %v2237, %v2236
        %v2253 = vpack.c.b16 %v2239, %v2238
        %v2254 = vpack.c.b16 %v2241, %v2240
        %v2255 = vpack.c.b16 %v2243, %v2242
        %v2256 = vpack.c.b16 %v2245, %v2244
        %v2257 = vpack.c.b16 %v2247, %v2246
        %v2258 = vpack.c.b16 %v2249, %v2248
        %v2259 = vpack.c.b16 %v2251, %v2250
        %2268 = vmatpush.bf16.msra.mxu0 %v2259
        %2269 = vmatpush.bf16.msra.mxu0 %v2258
        %2270 = vmatpush.bf16.msra.mxu0 %v2257
        %2271 = vmatpush.bf16.msra.mxu0 %v2256
        %2272 = vmatpush.bf16.msra.mxu0 %v2255
        %2273 = vmatpush.bf16.msra.mxu0 %v2254
        %2274 = vmatpush.bf16.msra.mxu0 %v2253
        %2275 = vmatpush.bf16.msra.mxu0 %v2252
        %2276 = vmatmul.bf16.gmra.mxu0 %v2203
        %v2277 = vpop.f32.mrf.mxu0
        %v2278 = vadd.f32 0.0, %v2277
        %v2279 = vpop.f32.mrf.mxu0
        %2280 = vdwg.mxu0
        %vm2281 = vcmask 60416
        %v2282 = vsel %vm2281, %v2278, -inf
        %2283 = vmax.xlane.f32.xlu0 %v2282
        %v2284 = vpop.xlane.xlu0 %2283
        %v2285 = vsub.f32 %v2278, %v2284
        %v2286 = vmul.f32 %v2285, 1.442695
        %v2287 = vpow.pop %v2286
        %v2288 = vsel %vm2281, %v2287, 0.0
        %2289 = vadd.xlane.f32.xlu0 %v2288
        %v2290 = vpop.xlane.xlu0 %2289
        %v2291 = vrcp.pop %v2290
        %v2292 = vmul.f32 %v2287, %v2291
        %v2293 = vpack.c.bf16 %v2292, %v2292
        %vm2294 = vcmask 64512
        %v2296 = vsel %vm2294, %v2293, 0
        %vm2298 = vcmask 1043456
        %v2299 = vsel %vm2298, %v1558, 0
        %2301 = vmatpush.bf16.msra.mxu0 0
        %2302 = vmatpush.bf16.msra.mxu0 0
        %2303 = vmatpush.bf16.msra.mxu0 0
        %2304 = vmatpush.bf16.msra.mxu0 0
        %2305 = vmatpush.bf16.msra.mxu0 0
        %2306 = vmatpush.bf16.msra.mxu0 0
        %2307 = vmatpush.bf16.msra.mxu0 0
        %2308 = vmatpush.bf16.msra.mxu0 %v2299
        %2309 = vmatmul.bf16.gmra.mxu0 %v2296
        %v2310 = vpop.f32.mrf.mxu0
        %v2311 = vadd.f32 0.0, %v2310
        %v2312 = vpop.f32.mrf.mxu0
        %2313 = vdwg.mxu0
        %v2314 = vld [vmem:[%s12] sm:$0xf]
        %v2315 = vld [vmem:[%s12 + $0x4] sm:$0xf]
        %v2316 = vld [vmem:[%s12 + $0x8] sm:$0xf]
        %v2317 = vld [vmem:[%s12 + $0xc] sm:$0xf]
        %v2318 = vpack.c.bf16 %v2311, %v2311
        %v2319 = vld [vmem:[%s13] sm:$0xf]
        %v2320 = vld [vmem:[%s13 + $0x4] sm:$0xf]
        %v2321 = vld [vmem:[%s13 + $0x8] sm:$0xf]
        %v2322 = vld [vmem:[%s13 + $0xc] sm:$0xf]
        %v2323 = vld [vmem:[%s13 + $0x10] sm:$0xf]
        %v2324 = vld [vmem:[%s13 + $0x14] sm:$0xf]
        %v2325 = vld [vmem:[%s13 + $0x18] sm:$0xf]
        %v2326 = vld [vmem:[%s13 + $0x1c] sm:$0xf]
        %v2335 = vunpack.c.l.b16 %v2319
        %v2336 = vunpack.c.l.b16 %v2320
        %v2337 = vunpack.c.l.b16 %v2321
        %v2338 = vunpack.c.l.b16 %v2322
        %v2339 = vunpack.c.l.b16 %v2323
        %v2340 = vunpack.c.l.b16 %v2324
        %v2341 = vunpack.c.l.b16 %v2325
        %v2342 = vunpack.c.l.b16 %v2326
        %v2343 = vpack.c.b16 %v2336, %v2335
        %v2344 = vpack.c.b16 %v2338, %v2337
        %v2345 = vpack.c.b16 %v2340, %v2339
        %v2346 = vpack.c.b16 %v2342, %v2341
        %v2352 = vsel %vm740, %v2318, 0
        %2354 = vmatpush.bf16.msra.mxu0 0
        %2355 = vmatpush.bf16.msra.mxu0 0
        %2356 = vmatpush.bf16.msra.mxu0 0
        %2357 = vmatpush.bf16.msra.mxu0 0
        %2358 = vmatpush.bf16.msra.mxu0 %v2346
        %2359 = vmatpush.bf16.msra.mxu0 %v2345
        %2360 = vmatpush.bf16.msra.mxu0 %v2344
        %2361 = vmatpush.bf16.msra.mxu0 %v2343
        %2362 = vmatmul.bf16.gmra.mxu0 %v2352
        %v2363 = vpop.f32.mrf.mxu0
        %v2364 = vadd.f32 0.0, %v2363
        %v2365 = vpop.f32.mrf.mxu0
        %2366 = vdwg.mxu0
        %v2371 = vunpack.c.l.b16 %v2314
        %v2372 = vunpack.c.l.b16 %v2315
        %v2373 = vunpack.c.l.b16 %v2316
        %v2374 = vunpack.c.l.b16 %v2317
        %v2375 = vpack.c.b16 %v2372, %v2371
        %v2376 = vpack.c.b16 %v2374, %v2373
        %2379 = vmatpush.bf16.msra.mxu0 0
        %2380 = vmatpush.bf16.msra.mxu0 0
        %2381 = vmatpush.bf16.msra.mxu0 0
        %2382 = vmatpush.bf16.msra.mxu0 0
        %2383 = vmatpush.bf16.msra.mxu0 0
        %2384 = vmatpush.bf16.msra.mxu0 0
        %2385 = vmatpush.bf16.msra.mxu0 %v2376
        %2386 = vmatpush.bf16.msra.mxu0 %v2375
        %2387 = vmatmul.bf16.gmra.mxu0 %v2187
        %v2388 = vpop.f32.mrf.mxu0
        %v2389 = vadd.f32 %v2364, %v2388
        %v2390 = vpop.f32.mrf.mxu0
        %2391 = vdwg.mxu0
        %v2392 = vld [vmem:[%s14] sm:$0x1]
        %v2394 = vperm.slane %v2392, 0
        %v2396 = vadd.f32 %v2389, %v2394
        %v2397 = vmax.f32 %v2396, 0.0
        %v2398 = vpack.c.bf16 %v2397, %v2397
        %v2399 = vld [vmem:[%s15] sm:$0xf]
        %v2400 = vld [vmem:[%s15 + $0x4] sm:$0xf]
        %v2401 = vld [vmem:[%s15 + $0x8] sm:$0xf]
        %v2402 = vld [vmem:[%s15 + $0xc] sm:$0xf]
        %v2403 = vld [vmem:[%s16] sm:$0x1]
        %v2405 = vperm.slane %v2403, 0
        %v2411 = vunpack.c.l.b16 %v2399
        %v2412 = vunpack.c.l.b16 %v2400
        %v2413 = vunpack.c.l.b16 %v2401
        %v2414 = vunpack.c.l.b16 %v2402
        %v2415 = vpack.c.b16 %v2412, %v2411
        %v2416 = vpack.c.b16 %v2414, %v2413
        %v2420 = vsel %vm1744, %v2398, 0
        %2422 = vmatpush.bf16.msra.mxu0 0
        %2423 = vmatpush.bf16.msra.mxu0 0
        %2424 = vmatpush.bf16.msra.mxu0 0
        %2425 = vmatpush.bf16.msra.mxu0 0
        %2426 = vmatpush.bf16.msra.mxu0 0
        %2427 = vmatpush.bf16.msra.mxu0 0
        %2428 = vmatpush.bf16.msra.mxu0 %v2416
        %2429 = vmatpush.bf16.msra.mxu0 %v2415
        %2430 = vmatmul.bf16.gmra.mxu0 %v2420
        %v2431 = vpop.f32.mrf.mxu0
        %v2432 = vadd.f32 %v2405, %v2431
        %v2433 = vpop.f32.mrf.mxu0
        %2434 = vdwg.mxu0
        %vm2435 = vcmask 27648
        %2436 = vst.msk [vmem:[%s567] sm:$0xf] %vm2435, %v2432
        %s2437 = sand.u32 %s411, 1
        %s2438 = scalar_lea.sflag [#allocation5], %s2437
        %s2439 = sand.u32 %s411, 1
        %s2440 = smul.addr %s2439, 4
        %s2441 = scalar_lea.vmem [#allocation4], %s2440
        // Predicated region
        $region89: #{tpu_custom_call.1} parent=87 // pred_check
          %p2442 = pneg %p421
        $region90: #{tpu_custom_call.1} parent=87 // pred_check_branch
          %2444 = sbr.rel (%p2442) target = $region92
        $region91: #{tpu_custom_call.1} parent=87 // pred_region
          %2446 = vsyncadd %s2438, 0
          %s2447 = smul.addr %s31, 4
          %s2448 = scalar_lea.hbm %s17, %s2447
          %s2450 = sshll.u32 %s2441, 4
          %s2451 = int_to_ptr.vmem [resolvable:$true] %s2450
          %s2452 = sshll.u32 %s2448, 4
          %s2453 = int_to_ptr.hbm [resolvable:$true] %s2452
          %2455 = dma.vmem_to_hbm [thread:$0]  %s2451, 64, %s2453, %s2438
        $region92: #{tpu_custom_call.1} parent=87 // pred_fallthru
          _
      $region88: #{tpu_custom_call.1} parent=5 // pred_fallthru
        _
      %p2456 = scmp.le.s32.totalorder 2, %s26
      // Predicated region
      $region93: #{tpu_custom_call.1} parent=5 // pred_check
        %p2457 = pneg %p2456
      $region94: #{tpu_custom_call.1} parent=5 // pred_check_branch
        %2459 = sbr.rel (%p2457) target = $region96
      $region95: #{tpu_custom_call.1} parent=5 // pred_region
        %s2460 = ssub.s32 %s26, 2
        // Predicated region
        $region97: #{tpu_custom_call.1} parent=95 // pred_check
          %p2461 = pneg %p427
        $region98: #{tpu_custom_call.1} parent=95 // pred_check_branch
          %2463 = sbr.rel (%p2461) target = $region100
        $region99: #{tpu_custom_call.1} parent=95 // pred_region
          %s2464 = sand.u32 %s412, 1
          %s2465 = scalar_lea.sflag [#allocation5], %s2464
          %s2466 = sand.u32 %s412, 1
          %s2467 = smul.addr %s2466, 4
          %s2468 = scalar_lea.vmem [#allocation4], %s2467
          %2470 = dma.done %s2465, 64
        $region100: #{tpu_custom_call.1} parent=95 // pred_fallthru
          _
      $region96: #{tpu_custom_call.1} parent=5 // pred_fallthru
        _
    $region6: #{tpu_custom_call.1} parent=1 // loop_footer
      %s30 = sadd.s32 1, %s26
    $region7: #{tpu_custom_call.1} parent=1 // loop_footer_branch
      %25 = sbr.rel target = $region3
    $region8: #{tpu_custom_call.1} parent=1 // loop_exit
      _
    %2471 = vsyncpa [#allocation5], 1
    %s2472 = scalar_lea.sflag [#allocation5], 1
    %2473 = vsyncpa %s2472, 1

</llo_original>
